<compile_context>
chip_gen: v7x
topology: tpu7x:2x2x1
jax: 0.10.0
libtpu: 0.0.40
codegen_flags: <defaults>
</compile_context>

<pallas_src>
import jax
import jax.numpy as jnp
from jax.experimental import pallas as pl
from jax.experimental import pallas as _pl_unused  # noqa: F401
from jax.experimental.pallas import tpu as pltpu  # noqa: F401  (imported per harness spec)


def pointer_decoder_forward(params, emb, emb_mask, enc, enc_mask, max_len):
    B, NC, demb = emb.shape
    _, TE, denc = enc.shape
    ddec = params["w_hh"].shape[1]
    T = int(max_len)

    D4 = 4 * ddec
    DH = denc + demb + 1          # fused h-projection width  [dec_trans | feat_emb_h | feat_pick_h]
    DA = demb + 1                 # fused attn-projection width [feat_emb_a | feat_pick_a]
    WPAD = max(D4, DH, DA)        # common (lane) width for the packed slabs
    R0, R1, R2 = demb + ddec, ddec, denc

    def _pad_cols(x, width):
        return jnp.pad(x, ((0, 0), (0, width - x.shape[1])))

    # ---------------- one-time host-side weight repacking ----------------
    # fused LSTM: gates = [x | h] @ w_cat + b_cat  (PyTorch gate order i,f,g,o)
    w_cat = jnp.concatenate([params["w_ih"], params["w_hh"]], axis=1).T      # (demb+ddec, 4*ddec)
    b_cat = params["b_ih"] + params["b_hh"]                                  # (1, 4*ddec)
    w_feat = params["w_feat"]                                                # (demb+1, ddec+denc), in = [h | attn]
    # all h-projections in one matrix, all attn-projections in one matrix
    W_h_all = jnp.concatenate([params["w_dt"].T,                             # (ddec, denc)
                               w_feat[:demb, :ddec].T,                       # (ddec, demb)
                               w_feat[demb:, :ddec].T], axis=1)              # (ddec, 1)  -> (ddec, DH)
    W_a_all = jnp.concatenate([w_feat[:demb, ddec:].T,                       # (denc, demb)
                               w_feat[demb:, ddec:].T], axis=1)              # (denc, 1)  -> (denc, DA)
    b_h_all = jnp.concatenate([params["b_dt"],                               # (1, denc)
                               params["b_feat"][:, :demb],                   # (1, demb)
                               params["b_feat"][:, demb:]], axis=1)          # (1, 1)     -> (1, DH)

    # two contiguous slabs: one bf16 weight slab, one f32 bias/constant slab
    wslab = jnp.concatenate([_pad_cols(w_cat, WPAD),
                             _pad_cols(W_h_all, WPAD),
                             _pad_cols(W_a_all, WPAD)], axis=0).astype(jnp.bfloat16)  # (R0+R1+R2, WPAD)
    bslab = jnp.concatenate([_pad_cols(b_cat, WPAD),
                             _pad_cols(b_h_all, WPAD),
                             _pad_cols(params["go"], WPAD)], axis=0).astype(jnp.float32)  # (3, WPAD)

    def decoder_kernel(emb_ref, emb_mask_ref, enc_ref, enc_mask_ref,
                       wslab_ref, bslab_ref, out_ref):
        # ---- loop-invariant loads / static slab slices (issued once) ----
        emb_v = emb_ref[...]                                     # (B, NC, demb) f32
        enc_v = enc_ref[...]                                     # (B, TE, denc) f32
        neg_enc = (1.0 - enc_mask_ref[...]) * 1e20               # (B, TE)
        neg_emb = (1.0 - emb_mask_ref[...]) * 1e20               # (B, NC)

        wslab_v = wslab_ref[...]                                 # bf16, resident
        w_cat_v = wslab_v[0:R0, :]                               # (demb+ddec, WPAD)
        w_h_all_v = wslab_v[R0:R0 + R1, :]                       # (ddec, WPAD)
        w_a_all_v = wslab_v[R0 + R1:R0 + R1 + R2, :]             # (denc, WPAD)
        bslab_v = bslab_ref[...]                                 # f32
        b_cat_v = bslab_v[0:1, :]                                # (1, WPAD) (zero-padded)
        b_h_all_v = bslab_v[1:2, :]                              # (1, WPAD) (zero-padded)
        go_v = bslab_v[2:3, 0:demb]                              # (1, demb)

        cand_idx = jax.lax.broadcasted_iota(jnp.int32, (B, NC), 1)

        D = ddec
        # ---- initial state: state0=None -> zeros; emb_t = go; picked = 0 ----
        h = jnp.zeros((B, D), jnp.float32)
        c = jnp.zeros((B, D), jnp.float32)
        emb_t = jnp.broadcast_to(go_v, (B, demb))                # (B, demb)
        picked = jnp.zeros((B, NC), jnp.float32)                 # (B, NC)

        score_list = []
        # ---- fully unrolled decode loop (short, fixed trip count) ----
        for t in range(T):
            # LSTM cell: single fused MXU matmul over [x | h] (bf16 ops, f32 accum)
            xh = jnp.concatenate([emb_t, h], axis=-1).astype(jnp.bfloat16)       # (B, demb+ddec)
            gates = jnp.dot(xh, w_cat_v,
                            preferred_element_type=jnp.float32) + b_cat_v        # (B, WPAD)
            i_g = jax.nn.sigmoid(gates[:, 0:D])
            f_g = jax.nn.sigmoid(gates[:, D:2 * D])
            g_g = jnp.tanh(gates[:, 2 * D:3 * D])
            o_g = jax.nn.sigmoid(gates[:, 3 * D:4 * D])
            c = f_g * c + i_g * g_g
            h = o_g * jnp.tanh(c)                                                # (B, ddec) f32

            # ONE fused matmul for all h-projections (dec_trans + feat_lin h-parts)
            h_all = jnp.dot(h.astype(jnp.bfloat16), w_h_all_v,
                            preferred_element_type=jnp.float32) + b_h_all_v      # (B, WPAD)
            h_proj = h_all[:, 0:denc]                                            # dec_trans(h)+b_dt
            feat_emb = h_all[:, denc:denc + demb]                                # h part + b_fe
            feat_pick = h_all[:, denc + demb:denc + demb + 1]                    # h part + b_fp

            # DotAttn (VPU broadcast-mul + lane reduce; masked softmax; EUP recip)
            raw = jnp.sum(h_proj[:, None, :] * enc_v, axis=-1) - neg_enc         # (B, TE)
            raw = raw - jnp.max(raw, axis=-1, keepdims=True)
            p = jnp.exp(raw)
            p = p * pl.reciprocal(jnp.sum(p, axis=-1, keepdims=True), approx=True)
            attn = jnp.sum(p[:, :, None] * enc_v, axis=1)                        # (B, denc)

            # ONE fused matmul for all attn-projections
            a_all = jnp.dot(attn.astype(jnp.bfloat16), w_a_all_v,
                            preferred_element_type=jnp.float32)                  # (B, WPAD)
            feat_emb = feat_emb + a_all[:, 0:demb]                               # (B, demb)
            feat_pick = feat_pick + a_all[:, demb:demb + 1]                      # (B, 1)

            # pointer score (VPU mul + lane reduce over demb): emb.feat_emb + picked*feat_pick
            score = jnp.sum(feat_emb[:, None, :] * emb_v, axis=-1) \
                    + picked * feat_pick                                         # (B, NC)
            score = score - neg_emb
            score_list.append(score)

            # greedy pick (gt=None): first-occurrence argmax, update picked / emb_t
            maxv = jnp.max(score, axis=-1, keepdims=True)                        # (B, 1)
            max_pos = jnp.min(jnp.where(score >= maxv, cand_idx, NC),
                              axis=-1, keepdims=True)                            # (B, 1)
            onehot = (cand_idx == max_pos).astype(jnp.float32)                   # (B, NC)
            picked = jnp.maximum(picked, onehot)
            emb_t = jnp.sum(onehot[:, :, None] * emb_v, axis=1)                  # (B, demb)

        # single coalesced, lane-denser store: (B, T*NC); one HBM writeback at kernel end
        out_ref[...] = jnp.concatenate(score_list, axis=-1)

    out_flat = pl.pallas_call(
        decoder_kernel,
        out_shape=jax.ShapeDtypeStruct((B, T * NC), jnp.float32),
    )(emb, emb_mask, enc, enc_mask, wslab, bslab)
    return out_flat.reshape(B, T, NC)                          # (B, max_len, n_candidates)


def init_params(key, demb, denc, ddec):
    ks = jax.random.split(key, 10)
    u = lambda k, shape, s=0.1: jax.random.uniform(k, shape, jnp.float32, -s, s)
    return {
        "go":     u(ks[0], (1, demb)),                # nn.Parameter(demb), uniform(-0.1, 0.1)
        "w_ih":   u(ks[1], (4 * ddec, demb)),         # LSTM weight_ih_l0 (i,f,g,o)
        "b_ih":   u(ks[2], (1, 4 * ddec)),
        "w_hh":   u(ks[3], (4 * ddec, ddec)),         # LSTM weight_hh_l0
        "b_hh":   u(ks[4], (1, 4 * ddec)),
        "w_dt":   u(ks[5], (denc, ddec)),             # attn.dec_trans: Linear(ddec, denc)
        "b_dt":   u(ks[6], (1, denc)),
        "w_feat": u(ks[7], (demb + 1, ddec + denc)),  # feat_lin, input order [h | attn]
        "b_feat": u(ks[8], (1, demb + 1)),
    }


if __name__ == "__main__":
    key = jax.random.PRNGKey(0)
    B, NC, TE = 2, 8, 16
    demb = denc = ddec = 32
    max_len = 8

    k1, k2, kp = jax.random.split(key, 3)
    emb = jax.random.normal(k1, (B, NC, demb), jnp.float32) * 0.5
    enc = jax.random.normal(k2, (B, TE, denc), jnp.float32) * 0.5
    emb_mask = jnp.ones((B, NC), jnp.float32).at[1, NC - 1].set(0.0)
    enc_mask = jnp.ones((B, TE), jnp.float32).at[0, TE - 3:].set(0.0)

    params = init_params(kp, demb, denc, ddec)

    fwd = jax.jit(pointer_decoder_forward, static_argnames=("max_len",))
    scores = fwd(params, emb, emb_mask, enc, enc_mask, max_len=max_len)
    scores = jax.block_until_ready(scores)

    assert scores.shape == (B, max_len, NC), scores.shape
    assert bool(jnp.all(jnp.isfinite(scores)))
    print("KERNEL_OK")
</pallas_src>

<mosaic_0001>
module attributes {stable_mosaic.version = 11 : i64} {
  func.func @decoder_kernel(%arg0: memref<2x8x32xf32, #tpu.memory_space<vmem>>, %arg1: memref<2x8xf32, #tpu.memory_space<vmem>>, %arg2: memref<2x16x32xf32, #tpu.memory_space<vmem>>, %arg3: memref<2x16xf32, #tpu.memory_space<vmem>>, %arg4: memref<128x128xbf16, #tpu.memory_space<vmem>>, %arg5: memref<3x128xf32, #tpu.memory_space<vmem>>, %arg6: memref<2x64xf32, #tpu.memory_space<vmem>>) attributes {dimension_semantics = [], scalar_prefetch = 0 : i64, scratch_operands = 0 : i64, tpu.core_type = #tpu.core_type<tc>} {
    %c0 = arith.constant 0 : index
    %c0_0 = arith.constant 0 : index
    %c0_1 = arith.constant 0 : index
    %0 = vector.load %arg0[%c0, %c0_0, %c0_1] : memref<2x8x32xf32, #tpu.memory_space<vmem>>, vector<2x8x32xf32>
    %c0_2 = arith.constant 0 : index
    %c0_3 = arith.constant 0 : index
    %c0_4 = arith.constant 0 : index
    %1 = vector.load %arg2[%c0_2, %c0_3, %c0_4] : memref<2x16x32xf32, #tpu.memory_space<vmem>>, vector<2x16x32xf32>
    %c0_5 = arith.constant 0 : index
    %c0_6 = arith.constant 0 : index
    %2 = vector.load %arg3[%c0_5, %c0_6] : memref<2x16xf32, #tpu.memory_space<vmem>>, vector<2x16xf32>
    %cst = arith.constant 1.000000e+00 : f32
    %3 = vector.broadcast %cst : f32 to vector<2x16xf32>
    %4 = arith.subf %3, %2 : vector<2x16xf32>
    %cst_7 = arith.constant 1.000000e+20 : f32
    %5 = vector.broadcast %cst_7 : f32 to vector<2x16xf32>
    %6 = arith.mulf %4, %5 : vector<2x16xf32>
    %c0_8 = arith.constant 0 : index
    %c0_9 = arith.constant 0 : index
    %7 = vector.load %arg1[%c0_8, %c0_9] : memref<2x8xf32, #tpu.memory_space<vmem>>, vector<2x8xf32>
    %cst_10 = arith.constant 1.000000e+00 : f32
    %8 = vector.broadcast %cst_10 : f32 to vector<2x8xf32>
    %9 = arith.subf %8, %7 : vector<2x8xf32>
    %cst_11 = arith.constant 1.000000e+20 : f32
    %10 = vector.broadcast %cst_11 : f32 to vector<2x8xf32>
    %11 = arith.mulf %9, %10 : vector<2x8xf32>
    %c0_12 = arith.constant 0 : index
    %c0_13 = arith.constant 0 : index
    %12 = vector.load %arg4[%c0_12, %c0_13] : memref<128x128xbf16, #tpu.memory_space<vmem>>, vector<128x128xbf16>
    %13 = vector.extract_strided_slice %12 {offsets = [0, 0], sizes = [64, 128], strides = [1, 1]} : vector<128x128xbf16> to vector<64x128xbf16>
    %14 = vector.extract_strided_slice %12 {offsets = [64, 0], sizes = [32, 128], strides = [1, 1]} : vector<128x128xbf16> to vector<32x128xbf16>
    %15 = vector.extract_strided_slice %12 {offsets = [96, 0], sizes = [32, 128], strides = [1, 1]} : vector<128x128xbf16> to vector<32x128xbf16>
    %c0_14 = arith.constant 0 : index
    %c0_15 = arith.constant 0 : index
    %16 = vector.load %arg5[%c0_14, %c0_15] : memref<3x128xf32, #tpu.memory_space<vmem>>, vector<3x128xf32>
    %17 = vector.extract_strided_slice %16 {offsets = [0, 0], sizes = [1, 128], strides = [1, 1]} : vector<3x128xf32> to vector<1x128xf32>
    %18 = vector.extract_strided_slice %16 {offsets = [1, 0], sizes = [1, 128], strides = [1, 1]} : vector<3x128xf32> to vector<1x128xf32>
    %19 = vector.extract_strided_slice %16 {offsets = [2, 0], sizes = [1, 32], strides = [1, 1]} : vector<3x128xf32> to vector<1x32xf32>
    %20 = tpu.iota {dimensions = array<i32: 1>} : vector<2x8xi32>
    %cst_16 = arith.constant 0.000000e+00 : f32
    %21 = vector.broadcast %cst_16 : f32 to vector<2x32xf32>
    %cst_17 = arith.constant 0.000000e+00 : f32
    %22 = vector.broadcast %cst_17 : f32 to vector<2x32xf32>
    %23 = vector.shape_cast %19 : vector<1x32xf32> to vector<1x32xf32>
    %24 = vector.broadcast %23 : vector<1x32xf32> to vector<2x32xf32>
    %cst_18 = arith.constant 0.000000e+00 : f32
    %25 = vector.broadcast %cst_18 : f32 to vector<2x8xf32>
    %26 = tpu.concatenate %24, %21 in 1 : vector<2x32xf32>, vector<2x32xf32> -> vector<2x64xf32>
    %27 = arith.truncf %26 : vector<2x64xf32> to vector<2x64xbf16>
    %cst_19 = arith.constant dense<0.000000e+00> : vector<2x128xf32>
    %28 = tpu.matmul %27, %13, %cst_19 {dimension_numbers = #tpu.dot_dimension_numbers<[1], [0], [0], [1], [0, 0, 1, 1], [], []>} : vector<2x64xbf16>, vector<64x128xbf16>, vector<2x128xf32> -> vector<2x128xf32>
    %29 = vector.broadcast %17 : vector<1x128xf32> to vector<2x128xf32>
    %30 = arith.addf %28, %29 : vector<2x128xf32>
    %31 = vector.extract_strided_slice %30 {offsets = [0, 0], sizes = [2, 32], strides = [1, 1]} : vector<2x128xf32> to vector<2x32xf32>
    %32 = arith.negf %31 : vector<2x32xf32>
    %33 = math.exp %32 : vector<2x32xf32>
    %cst_20 = arith.constant 1.000000e+00 : f32
    %34 = vector.broadcast %cst_20 : f32 to vector<2x32xf32>
    %35 = arith.addf %34, %33 : vector<2x32xf32>
    %36 = arith.divf %34, %35 : vector<2x32xf32>
    %37 = vector.extract_strided_slice %30 {offsets = [0, 32], sizes = [2, 32], strides = [1, 1]} : vector<2x128xf32> to vector<2x32xf32>
    %38 = arith.negf %37 : vector<2x32xf32>
    %39 = math.exp %38 : vector<2x32xf32>
    %cst_21 = arith.constant 1.000000e+00 : f32
    %40 = vector.broadcast %cst_21 : f32 to vector<2x32xf32>
    %41 = arith.addf %40, %39 : vector<2x32xf32>
    %42 = arith.divf %40, %41 : vector<2x32xf32>
    %43 = vector.extract_strided_slice %30 {offsets = [0, 64], sizes = [2, 32], strides = [1, 1]} : vector<2x128xf32> to vector<2x32xf32>
    %44 = math.tanh %43 : vector<2x32xf32>
    %45 = vector.extract_strided_slice %30 {offsets = [0, 96], sizes = [2, 32], strides = [1, 1]} : vector<2x128xf32> to vector<2x32xf32>
    %46 = arith.negf %45 : vector<2x32xf32>
    %47 = math.exp %46 : vector<2x32xf32>
    %cst_22 = arith.constant 1.000000e+00 : f32
    %48 = vector.broadcast %cst_22 : f32 to vector<2x32xf32>
    %49 = arith.addf %48, %47 : vector<2x32xf32>
    %50 = arith.divf %48, %49 : vector<2x32xf32>
    %51 = arith.mulf %42, %22 : vector<2x32xf32>
    %52 = arith.mulf %36, %44 : vector<2x32xf32>
    %53 = arith.addf %51, %52 : vector<2x32xf32>
    %54 = math.tanh %53 : vector<2x32xf32>
    %55 = arith.mulf %50, %54 : vector<2x32xf32>
    %56 = arith.truncf %55 : vector<2x32xf32> to vector<2x32xbf16>
    %cst_23 = arith.constant dense<0.000000e+00> : vector<2x128xf32>
    %57 = tpu.matmul %56, %14, %cst_23 {dimension_numbers = #tpu.dot_dimension_numbers<[1], [0], [0], [1], [0, 0, 1, 1], [], []>} : vector<2x32xbf16>, vector<32x128xbf16>, vector<2x128xf32> -> vector<2x128xf32>
    %58 = vector.broadcast %18 : vector<1x128xf32> to vector<2x128xf32>
    %59 = arith.addf %57, %58 : vector<2x128xf32>
    %60 = vector.extract_strided_slice %59 {offsets = [0, 0], sizes = [2, 32], strides = [1, 1]} : vector<2x128xf32> to vector<2x32xf32>
    %61 = vector.extract_strided_slice %59 {offsets = [0, 32], sizes = [2, 32], strides = [1, 1]} : vector<2x128xf32> to vector<2x32xf32>
    %62 = vector.extract_strided_slice %59 {offsets = [0, 64], sizes = [2, 1], strides = [1, 1]} : vector<2x128xf32> to vector<2x1xf32>
    %63 = vector.shape_cast %60 : vector<2x32xf32> to vector<2x1x32xf32>
    %64 = vector.broadcast %63 : vector<2x1x32xf32> to vector<2x16x32xf32>
    %65 = arith.mulf %64, %1 : vector<2x16x32xf32>
    %cst_24 = arith.constant dense<0.000000e+00> : vector<2x16xf32>
    %66 = vector.multi_reduction <add>, %65, %cst_24 [2] : vector<2x16x32xf32> to vector<2x16xf32>
    %67 = arith.subf %66, %6 : vector<2x16xf32>
    %cst_25 = arith.constant dense<0xFF800000> : vector<2xf32>
    %68 = vector.multi_reduction <maximumf>, %67, %cst_25 [1] : vector<2x16xf32> to vector<2xf32>
    %69 = vector.shape_cast %68 : vector<2xf32> to vector<2x1xf32>
    %70 = vector.broadcast %69 : vector<2x1xf32> to vector<2x16xf32>
    %71 = arith.subf %67, %70 : vector<2x16xf32>
    %72 = math.exp %71 : vector<2x16xf32>
    %cst_26 = arith.constant dense<0.000000e+00> : vector<2xf32>
    %73 = vector.multi_reduction <add>, %72, %cst_26 [1] : vector<2x16xf32> to vector<2xf32>
    %74 = vector.shape_cast %73 : vector<2xf32> to vector<2x1xf32>
    %75 = tpu.reciprocal %74 {approx = true} : vector<2x1xf32> -> vector<2x1xf32>
    %76 = vector.broadcast %75 : vector<2x1xf32> to vector<2x16xf32>
    %77 = arith.mulf %72, %76 : vector<2x16xf32>
    %78 = vector.shape_cast %77 : vector<2x16xf32> to vector<2x16x1xf32>
    %79 = vector.broadcast %78 : vector<2x16x1xf32> to vector<2x16x32xf32>
    %80 = arith.mulf %79, %1 : vector<2x16x32xf32>
    %cst_27 = arith.constant dense<0.000000e+00> : vector<2x32xf32>
    %81 = vector.multi_reduction <add>, %80, %cst_27 [1] : vector<2x16x32xf32> to vector<2x32xf32>
    %82 = arith.truncf %81 : vector<2x32xf32> to vector<2x32xbf16>
    %cst_28 = arith.constant dense<0.000000e+00> : vector<2x128xf32>
    %83 = tpu.matmul %82, %15, %cst_28 {dimension_numbers = #tpu.dot_dimension_numbers<[1], [0], [0], [1], [0, 0, 1, 1], [], []>} : vector<2x32xbf16>, vector<32x128xbf16>, vector<2x128xf32> -> vector<2x128xf32>
    %84 = vector.extract_strided_slice %83 {offsets = [0, 0], sizes = [2, 32], strides = [1, 1]} : vector<2x128xf32> to vector<2x32xf32>
    %85 = arith.addf %61, %84 : vector<2x32xf32>
    %86 = vector.extract_strided_slice %83 {offsets = [0, 32], sizes = [2, 1], strides = [1, 1]} : vector<2x128xf32> to vector<2x1xf32>
    %87 = arith.addf %62, %86 : vector<2x1xf32>
    %88 = vector.shape_cast %85 : vector<2x32xf32> to vector<2x1x32xf32>
    %89 = vector.broadcast %88 : vector<2x1x32xf32> to vector<2x8x32xf32>
    %90 = arith.mulf %89, %0 : vector<2x8x32xf32>
    %cst_29 = arith.constant dense<0.000000e+00> : vector<2x8xf32>
    %91 = vector.multi_reduction <add>, %90, %cst_29 [2] : vector<2x8x32xf32> to vector<2x8xf32>
    %92 = vector.broadcast %87 : vector<2x1xf32> to vector<2x8xf32>
    %93 = arith.mulf %25, %92 : vector<2x8xf32>
    %94 = arith.addf %91, %93 : vector<2x8xf32>
    %95 = arith.subf %94, %11 : vector<2x8xf32>
    %cst_30 = arith.constant dense<0xFF800000> : vector<2xf32>
    %96 = vector.multi_reduction <maximumf>, %95, %cst_30 [1] : vector<2x8xf32> to vector<2xf32>
    %97 = vector.shape_cast %96 : vector<2xf32> to vector<2x1xf32>
    %98 = vector.broadcast %97 : vector<2x1xf32> to vector<2x8xf32>
    %99 = arith.cmpf oge, %95, %98 : vector<2x8xf32>
    %c8_i32 = arith.constant 8 : i32
    %100 = vector.broadcast %c8_i32 : i32 to vector<2x8xi32>
    %101 = arith.select %99, %20, %100 : vector<2x8xi1>, vector<2x8xi32>
    %cst_31 = arith.constant dense<2147483647> : vector<2xi32>
    %102 = vector.multi_reduction <minsi>, %101, %cst_31 [1] : vector<2x8xi32> to vector<2xi32>
    %103 = vector.shape_cast %102 : vector<2xi32> to vector<2x1xi32>
    %104 = vector.broadcast %103 : vector<2x1xi32> to vector<2x8xi32>
    %105 = arith.cmpi eq, %20, %104 : vector<2x8xi32>
    %106 = arith.extui %105 : vector<2x8xi1> to vector<2x8xi32>
    %107 = arith.sitofp %106 : vector<2x8xi32> to vector<2x8xf32>
    %108 = arith.maximumf %25, %107 : vector<2x8xf32>
    %109 = vector.shape_cast %107 : vector<2x8xf32> to vector<2x8x1xf32>
    %110 = vector.broadcast %109 : vector<2x8x1xf32> to vector<2x8x32xf32>
    %111 = arith.mulf %110, %0 : vector<2x8x32xf32>
    %cst_32 = arith.constant dense<0.000000e+00> : vector<2x32xf32>
    %112 = vector.multi_reduction <add>, %111, %cst_32 [1] : vector<2x8x32xf32> to vector<2x32xf32>
    %113 = tpu.concatenate %112, %55 in 1 : vector<2x32xf32>, vector<2x32xf32> -> vector<2x64xf32>
    %114 = arith.truncf %113 : vector<2x64xf32> to vector<2x64xbf16>
    %cst_33 = arith.constant dense<0.000000e+00> : vector<2x128xf32>
    %115 = tpu.matmul %114, %13, %cst_33 {dimension_numbers = #tpu.dot_dimension_numbers<[1], [0], [0], [1], [0, 0, 1, 1], [], []>} : vector<2x64xbf16>, vector<64x128xbf16>, vector<2x128xf32> -> vector<2x128xf32>
    %116 = vector.broadcast %17 : vector<1x128xf32> to vector<2x128xf32>
    %117 = arith.addf %115, %116 : vector<2x128xf32>
    %118 = vector.extract_strided_slice %117 {offsets = [0, 0], sizes = [2, 32], strides = [1, 1]} : vector<2x128xf32> to vector<2x32xf32>
    %119 = arith.negf %118 : vector<2x32xf32>
    %120 = math.exp %119 : vector<2x32xf32>
    %cst_34 = arith.constant 1.000000e+00 : f32
    %121 = vector.broadcast %cst_34 : f32 to vector<2x32xf32>
    %122 = arith.addf %121, %120 : vector<2x32xf32>
    %123 = arith.divf %121, %122 : vector<2x32xf32>
    %124 = vector.extract_strided_slice %117 {offsets = [0, 32], sizes = [2, 32], strides = [1, 1]} : vector<2x128xf32> to vector<2x32xf32>
    %125 = arith.negf %124 : vector<2x32xf32>
    %126 = math.exp %125 : vector<2x32xf32>
    %cst_35 = arith.constant 1.000000e+00 : f32
    %127 = vector.broadcast %cst_35 : f32 to vector<2x32xf32>
    %128 = arith.addf %127, %126 : vector<2x32xf32>
    %129 = arith.divf %127, %128 : vector<2x32xf32>
    %130 = vector.extract_strided_slice %117 {offsets = [0, 64], sizes = [2, 32], strides = [1, 1]} : vector<2x128xf32> to vector<2x32xf32>
    %131 = math.tanh %130 : vector<2x32xf32>
    %132 = vector.extract_strided_slice %117 {offsets = [0, 96], sizes = [2, 32], strides = [1, 1]} : vector<2x128xf32> to vector<2x32xf32>
    %133 = arith.negf %132 : vector<2x32xf32>
    %134 = math.exp %133 : vector<2x32xf32>
    %cst_36 = arith.constant 1.000000e+00 : f32
    %135 = vector.broadcast %cst_36 : f32 to vector<2x32xf32>
    %136 = arith.addf %135, %134 : vector<2x32xf32>
    %137 = arith.divf %135, %136 : vector<2x32xf32>
    %138 = arith.mulf %129, %53 : vector<2x32xf32>
    %139 = arith.mulf %123, %131 : vector<2x32xf32>
    %140 = arith.addf %138, %139 : vector<2x32xf32>
    %141 = math.tanh %140 : vector<2x32xf32>
    %142 = arith.mulf %137, %141 : vector<2x32xf32>
    %143 = arith.truncf %142 : vector<2x32xf32> to vector<2x32xbf16>
    %cst_37 = arith.constant dense<0.000000e+00> : vector<2x128xf32>
    %144 = tpu.matmul %143, %14, %cst_37 {dimension_numbers = #tpu.dot_dimension_numbers<[1], [0], [0], [1], [0, 0, 1, 1], [], []>} : vector<2x32xbf16>, vector<32x128xbf16>, vector<2x128xf32> -> vector<2x128xf32>
    %145 = vector.broadcast %18 : vector<1x128xf32> to vector<2x128xf32>
    %146 = arith.addf %144, %145 : vector<2x128xf32>
    %147 = vector.extract_strided_slice %146 {offsets = [0, 0], sizes = [2, 32], strides = [1, 1]} : vector<2x128xf32> to vector<2x32xf32>
    %148 = vector.extract_strided_slice %146 {offsets = [0, 32], sizes = [2, 32], strides = [1, 1]} : vector<2x128xf32> to vector<2x32xf32>
    %149 = vector.extract_strided_slice %146 {offsets = [0, 64], sizes = [2, 1], strides = [1, 1]} : vector<2x128xf32> to vector<2x1xf32>
    %150 = vector.shape_cast %147 : vector<2x32xf32> to vector<2x1x32xf32>
    %151 = vector.broadcast %150 : vector<2x1x32xf32> to vector<2x16x32xf32>
    %152 = arith.mulf %151, %1 : vector<2x16x32xf32>
    %cst_38 = arith.constant dense<0.000000e+00> : vector<2x16xf32>
    %153 = vector.multi_reduction <add>, %152, %cst_38 [2] : vector<2x16x32xf32> to vector<2x16xf32>
    %154 = arith.subf %153, %6 : vector<2x16xf32>
    %cst_39 = arith.constant dense<0xFF800000> : vector<2xf32>
    %155 = vector.multi_reduction <maximumf>, %154, %cst_39 [1] : vector<2x16xf32> to vector<2xf32>
    %156 = vector.shape_cast %155 : vector<2xf32> to vector<2x1xf32>
    %157 = vector.broadcast %156 : vector<2x1xf32> to vector<2x16xf32>
    %158 = arith.subf %154, %157 : vector<2x16xf32>
    %159 = math.exp %158 : vector<2x16xf32>
    %cst_40 = arith.constant dense<0.000000e+00> : vector<2xf32>
    %160 = vector.multi_reduction <add>, %159, %cst_40 [1] : vector<2x16xf32> to vector<2xf32>
    %161 = vector.shape_cast %160 : vector<2xf32> to vector<2x1xf32>
    %162 = tpu.reciprocal %161 {approx = true} : vector<2x1xf32> -> vector<2x1xf32>
    %163 = vector.broadcast %162 : vector<2x1xf32> to vector<2x16xf32>
    %164 = arith.mulf %159, %163 : vector<2x16xf32>
    %165 = vector.shape_cast %164 : vector<2x16xf32> to vector<2x16x1xf32>
    %166 = vector.broadcast %165 : vector<2x16x1xf32> to vector<2x16x32xf32>
    %167 = arith.mulf %166, %1 : vector<2x16x32xf32>
    %cst_41 = arith.constant dense<0.000000e+00> : vector<2x32xf32>
    %168 = vector.multi_reduction <add>, %167, %cst_41 [1] : vector<2x16x32xf32> to vector<2x32xf32>
    %169 = arith.truncf %168 : vector<2x32xf32> to vector<2x32xbf16>
    %cst_42 = arith.constant dense<0.000000e+00> : vector<2x128xf32>
    %170 = tpu.matmul %169, %15, %cst_42 {dimension_numbers = #tpu.dot_dimension_numbers<[1], [0], [0], [1], [0, 0, 1, 1], [], []>} : vector<2x32xbf16>, vector<32x128xbf16>, vector<2x128xf32> -> vector<2x128xf32>
    %171 = vector.extract_strided_slice %170 {offsets = [0, 0], sizes = [2, 32], strides = [1, 1]} : vector<2x128xf32> to vector<2x32xf32>
    %172 = arith.addf %148, %171 : vector<2x32xf32>
    %173 = vector.extract_strided_slice %170 {offsets = [0, 32], sizes = [2, 1], strides = [1, 1]} : vector<2x128xf32> to vector<2x1xf32>
    %174 = arith.addf %149, %173 : vector<2x1xf32>
    %175 = vector.shape_cast %172 : vector<2x32xf32> to vector<2x1x32xf32>
    %176 = vector.broadcast %175 : vector<2x1x32xf32> to vector<2x8x32xf32>
    %177 = arith.mulf %176, %0 : vector<2x8x32xf32>
    %cst_43 = arith.constant dense<0.000000e+00> : vector<2x8xf32>
    %178 = vector.multi_reduction <add>, %177, %cst_43 [2] : vector<2x8x32xf32> to vector<2x8xf32>
    %179 = vector.broadcast %174 : vector<2x1xf32> to vector<2x8xf32>
    %180 = arith.mulf %108, %179 : vector<2x8xf32>
    %181 = arith.addf %178, %180 : vector<2x8xf32>
    %182 = arith.subf %181, %11 : vector<2x8xf32>
    %cst_44 = arith.constant dense<0xFF800000> : vector<2xf32>
    %183 = vector.multi_reduction <maximumf>, %182, %cst_44 [1] : vector<2x8xf32> to vector<2xf32>
    %184 = vector.shape_cast %183 : vector<2xf32> to vector<2x1xf32>
    %185 = vector.broadcast %184 : vector<2x1xf32> to vector<2x8xf32>
    %186 = arith.cmpf oge, %182, %185 : vector<2x8xf32>
    %c8_i32_45 = arith.constant 8 : i32
    %187 = vector.broadcast %c8_i32_45 : i32 to vector<2x8xi32>
    %188 = arith.select %186, %20, %187 : vector<2x8xi1>, vector<2x8xi32>
    %cst_46 = arith.constant dense<2147483647> : vector<2xi32>
    %189 = vector.multi_reduction <minsi>, %188, %cst_46 [1] : vector<2x8xi32> to vector<2xi32>
    %190 = vector.shape_cast %189 : vector<2xi32> to vector<2x1xi32>
    %191 = vector.broadcast %190 : vector<2x1xi32> to vector<2x8xi32>
    %192 = arith.cmpi eq, %20, %191 : vector<2x8xi32>
    %193 = arith.extui %192 : vector<2x8xi1> to vector<2x8xi32>
    %194 = arith.sitofp %193 : vector<2x8xi32> to vector<2x8xf32>
    %195 = arith.maximumf %108, %194 : vector<2x8xf32>
    %196 = vector.shape_cast %194 : vector<2x8xf32> to vector<2x8x1xf32>
    %197 = vector.broadcast %196 : vector<2x8x1xf32> to vector<2x8x32xf32>
    %198 = arith.mulf %197, %0 : vector<2x8x32xf32>
    %cst_47 = arith.constant dense<0.000000e+00> : vector<2x32xf32>
    %199 = vector.multi_reduction <add>, %198, %cst_47 [1] : vector<2x8x32xf32> to vector<2x32xf32>
    %200 = tpu.concatenate %199, %142 in 1 : vector<2x32xf32>, vector<2x32xf32> -> vector<2x64xf32>
    %201 = arith.truncf %200 : vector<2x64xf32> to vector<2x64xbf16>
    %cst_48 = arith.constant dense<0.000000e+00> : vector<2x128xf32>
    %202 = tpu.matmul %201, %13, %cst_48 {dimension_numbers = #tpu.dot_dimension_numbers<[1], [0], [0], [1], [0, 0, 1, 1], [], []>} : vector<2x64xbf16>, vector<64x128xbf16>, vector<2x128xf32> -> vector<2x128xf32>
    %203 = vector.broadcast %17 : vector<1x128xf32> to vector<2x128xf32>
    %204 = arith.addf %202, %203 : vector<2x128xf32>
    %205 = vector.extract_strided_slice %204 {offsets = [0, 0], sizes = [2, 32], strides = [1, 1]} : vector<2x128xf32> to vector<2x32xf32>
    %206 = arith.negf %205 : vector<2x32xf32>
    %207 = math.exp %206 : vector<2x32xf32>
    %cst_49 = arith.constant 1.000000e+00 : f32
    %208 = vector.broadcast %cst_49 : f32 to vector<2x32xf32>
    %209 = arith.addf %208, %207 : vector<2x32xf32>
    %210 = arith.divf %208, %209 : vector<2x32xf32>
    %211 = vector.extract_strided_slice %204 {offsets = [0, 32], sizes = [2, 32], strides = [1, 1]} : vector<2x128xf32> to vector<2x32xf32>
    %212 = arith.negf %211 : vector<2x32xf32>
    %213 = math.exp %212 : vector<2x32xf32>
    %cst_50 = arith.constant 1.000000e+00 : f32
    %214 = vector.broadcast %cst_50 : f32 to vector<2x32xf32>
    %215 = arith.addf %214, %213 : vector<2x32xf32>
    %216 = arith.divf %214, %215 : vector<2x32xf32>
    %217 = vector.extract_strided_slice %204 {offsets = [0, 64], sizes = [2, 32], strides = [1, 1]} : vector<2x128xf32> to vector<2x32xf32>
    %218 = math.tanh %217 : vector<2x32xf32>
    %219 = vector.extract_strided_slice %204 {offsets = [0, 96], sizes = [2, 32], strides = [1, 1]} : vector<2x128xf32> to vector<2x32xf32>
    %220 = arith.negf %219 : vector<2x32xf32>
    %221 = math.exp %220 : vector<2x32xf32>
    %cst_51 = arith.constant 1.000000e+00 : f32
    %222 = vector.broadcast %cst_51 : f32 to vector<2x32xf32>
    %223 = arith.addf %222, %221 : vector<2x32xf32>
    %224 = arith.divf %222, %223 : vector<2x32xf32>
    %225 = arith.mulf %216, %140 : vector<2x32xf32>
    %226 = arith.mulf %210, %218 : vector<2x32xf32>
    %227 = arith.addf %225, %226 : vector<2x32xf32>
    %228 = math.tanh %227 : vector<2x32xf32>
    %229 = arith.mulf %224, %228 : vector<2x32xf32>
    %230 = arith.truncf %229 : vector<2x32xf32> to vector<2x32xbf16>
    %cst_52 = arith.constant dense<0.000000e+00> : vector<2x128xf32>
    %231 = tpu.matmul %230, %14, %cst_52 {dimension_numbers = #tpu.dot_dimension_numbers<[1], [0], [0], [1], [0, 0, 1, 1], [], []>} : vector<2x32xbf16>, vector<32x128xbf16>, vector<2x128xf32> -> vector<2x128xf32>
    %232 = vector.broadcast %18 : vector<1x128xf32> to vector<2x128xf32>
    %233 = arith.addf %231, %232 : vector<2x128xf32>
    %234 = vector.extract_strided_slice %233 {offsets = [0, 0], sizes = [2, 32], strides = [1, 1]} : vector<2x128xf32> to vector<2x32xf32>
    %235 = vector.extract_strided_slice %233 {offsets = [0, 32], sizes = [2, 32], strides = [1, 1]} : vector<2x128xf32> to vector<2x32xf32>
    %236 = vector.extract_strided_slice %233 {offsets = [0, 64], sizes = [2, 1], strides = [1, 1]} : vector<2x128xf32> to vector<2x1xf32>
    %237 = vector.shape_cast %234 : vector<2x32xf32> to vector<2x1x32xf32>
    %238 = vector.broadcast %237 : vector<2x1x32xf32> to vector<2x16x32xf32>
    %239 = arith.mulf %238, %1 : vector<2x16x32xf32>
    %cst_53 = arith.constant dense<0.000000e+00> : vector<2x16xf32>
    %240 = vector.multi_reduction <add>, %239, %cst_53 [2] : vector<2x16x32xf32> to vector<2x16xf32>
    %241 = arith.subf %240, %6 : vector<2x16xf32>
    %cst_54 = arith.constant dense<0xFF800000> : vector<2xf32>
    %242 = vector.multi_reduction <maximumf>, %241, %cst_54 [1] : vector<2x16xf32> to vector<2xf32>
    %243 = vector.shape_cast %242 : vector<2xf32> to vector<2x1xf32>
    %244 = vector.broadcast %243 : vector<2x1xf32> to vector<2x16xf32>
    %245 = arith.subf %241, %244 : vector<2x16xf32>
    %246 = math.exp %245 : vector<2x16xf32>
    %cst_55 = arith.constant dense<0.000000e+00> : vector<2xf32>
    %247 = vector.multi_reduction <add>, %246, %cst_55 [1] : vector<2x16xf32> to vector<2xf32>
    %248 = vector.shape_cast %247 : vector<2xf32> to vector<2x1xf32>
    %249 = tpu.reciprocal %248 {approx = true} : vector<2x1xf32> -> vector<2x1xf32>
    %250 = vector.broadcast %249 : vector<2x1xf32> to vector<2x16xf32>
    %251 = arith.mulf %246, %250 : vector<2x16xf32>
    %252 = vector.shape_cast %251 : vector<2x16xf32> to vector<2x16x1xf32>
    %253 = vector.broadcast %252 : vector<2x16x1xf32> to vector<2x16x32xf32>
    %254 = arith.mulf %253, %1 : vector<2x16x32xf32>
    %cst_56 = arith.constant dense<0.000000e+00> : vector<2x32xf32>
    %255 = vector.multi_reduction <add>, %254, %cst_56 [1] : vector<2x16x32xf32> to vector<2x32xf32>
    %256 = arith.truncf %255 : vector<2x32xf32> to vector<2x32xbf16>
    %cst_57 = arith.constant dense<0.000000e+00> : vector<2x128xf32>
    %257 = tpu.matmul %256, %15, %cst_57 {dimension_numbers = #tpu.dot_dimension_numbers<[1], [0], [0], [1], [0, 0, 1, 1], [], []>} : vector<2x32xbf16>, vector<32x128xbf16>, vector<2x128xf32> -> vector<2x128xf32>
    %258 = vector.extract_strided_slice %257 {offsets = [0, 0], sizes = [2, 32], strides = [1, 1]} : vector<2x128xf32> to vector<2x32xf32>
    %259 = arith.addf %235, %258 : vector<2x32xf32>
    %260 = vector.extract_strided_slice %257 {offsets = [0, 32], sizes = [2, 1], strides = [1, 1]} : vector<2x128xf32> to vector<2x1xf32>
    %261 = arith.addf %236, %260 : vector<2x1xf32>
    %262 = vector.shape_cast %259 : vector<2x32xf32> to vector<2x1x32xf32>
    %263 = vector.broadcast %262 : vector<2x1x32xf32> to vector<2x8x32xf32>
    %264 = arith.mulf %263, %0 : vector<2x8x32xf32>
    %cst_58 = arith.constant dense<0.000000e+00> : vector<2x8xf32>
    %265 = vector.multi_reduction <add>, %264, %cst_58 [2] : vector<2x8x32xf32> to vector<2x8xf32>
    %266 = vector.broadcast %261 : vector<2x1xf32> to vector<2x8xf32>
    %267 = arith.mulf %195, %266 : vector<2x8xf32>
    %268 = arith.addf %265, %267 : vector<2x8xf32>
    %269 = arith.subf %268, %11 : vector<2x8xf32>
    %cst_59 = arith.constant dense<0xFF800000> : vector<2xf32>
    %270 = vector.multi_reduction <maximumf>, %269, %cst_59 [1] : vector<2x8xf32> to vector<2xf32>
    %271 = vector.shape_cast %270 : vector<2xf32> to vector<2x1xf32>
    %272 = vector.broadcast %271 : vector<2x1xf32> to vector<2x8xf32>
    %273 = arith.cmpf oge, %269, %272 : vector<2x8xf32>
    %c8_i32_60 = arith.constant 8 : i32
    %274 = vector.broadcast %c8_i32_60 : i32 to vector<2x8xi32>
    %275 = arith.select %273, %20, %274 : vector<2x8xi1>, vector<2x8xi32>
    %cst_61 = arith.constant dense<2147483647> : vector<2xi32>
    %276 = vector.multi_reduction <minsi>, %275, %cst_61 [1] : vector<2x8xi32> to vector<2xi32>
    %277 = vector.shape_cast %276 : vector<2xi32> to vector<2x1xi32>
    %278 = vector.broadcast %277 : vector<2x1xi32> to vector<2x8xi32>
    %279 = arith.cmpi eq, %20, %278 : vector<2x8xi32>
    %280 = arith.extui %279 : vector<2x8xi1> to vector<2x8xi32>
    %281 = arith.sitofp %280 : vector<2x8xi32> to vector<2x8xf32>
    %282 = arith.maximumf %195, %281 : vector<2x8xf32>
    %283 = vector.shape_cast %281 : vector<2x8xf32> to vector<2x8x1xf32>
    %284 = vector.broadcast %283 : vector<2x8x1xf32> to vector<2x8x32xf32>
    %285 = arith.mulf %284, %0 : vector<2x8x32xf32>
    %cst_62 = arith.constant dense<0.000000e+00> : vector<2x32xf32>
    %286 = vector.multi_reduction <add>, %285, %cst_62 [1] : vector<2x8x32xf32> to vector<2x32xf32>
    %287 = tpu.concatenate %286, %229 in 1 : vector<2x32xf32>, vector<2x32xf32> -> vector<2x64xf32>
    %288 = arith.truncf %287 : vector<2x64xf32> to vector<2x64xbf16>
    %cst_63 = arith.constant dense<0.000000e+00> : vector<2x128xf32>
    %289 = tpu.matmul %288, %13, %cst_63 {dimension_numbers = #tpu.dot_dimension_numbers<[1], [0], [0], [1], [0, 0, 1, 1], [], []>} : vector<2x64xbf16>, vector<64x128xbf16>, vector<2x128xf32> -> vector<2x128xf32>
    %290 = vector.broadcast %17 : vector<1x128xf32> to vector<2x128xf32>
    %291 = arith.addf %289, %290 : vector<2x128xf32>
    %292 = vector.extract_strided_slice %291 {offsets = [0, 0], sizes = [2, 32], strides = [1, 1]} : vector<2x128xf32> to vector<2x32xf32>
    %293 = arith.negf %292 : vector<2x32xf32>
    %294 = math.exp %293 : vector<2x32xf32>
    %cst_64 = arith.constant 1.000000e+00 : f32
    %295 = vector.broadcast %cst_64 : f32 to vector<2x32xf32>
    %296 = arith.addf %295, %294 : vector<2x32xf32>
    %297 = arith.divf %295, %296 : vector<2x32xf32>
    %298 = vector.extract_strided_slice %291 {offsets = [0, 32], sizes = [2, 32], strides = [1, 1]} : vector<2x128xf32> to vector<2x32xf32>
    %299 = arith.negf %298 : vector<2x32xf32>
    %300 = math.exp %299 : vector<2x32xf32>
    %cst_65 = arith.constant 1.000000e+00 : f32
    %301 = vector.broadcast %cst_65 : f32 to vector<2x32xf32>
    %302 = arith.addf %301, %300 : vector<2x32xf32>
    %303 = arith.divf %301, %302 : vector<2x32xf32>
    %304 = vector.extract_strided_slice %291 {offsets = [0, 64], sizes = [2, 32], strides = [1, 1]} : vector<2x128xf32> to vector<2x32xf32>
    %305 = math.tanh %304 : vector<2x32xf32>
    %306 = vector.extract_strided_slice %291 {offsets = [0, 96], sizes = [2, 32], strides = [1, 1]} : vector<2x128xf32> to vector<2x32xf32>
    %307 = arith.negf %306 : vector<2x32xf32>
    %308 = math.exp %307 : vector<2x32xf32>
    %cst_66 = arith.constant 1.000000e+00 : f32
    %309 = vector.broadcast %cst_66 : f32 to vector<2x32xf32>
    %310 = arith.addf %309, %308 : vector<2x32xf32>
    %311 = arith.divf %309, %310 : vector<2x32xf32>
    %312 = arith.mulf %303, %227 : vector<2x32xf32>
    %313 = arith.mulf %297, %305 : vector<2x32xf32>
    %314 = arith.addf %312, %313 : vector<2x32xf32>
    %315 = math.tanh %314 : vector<2x32xf32>
    %316 = arith.mulf %311, %315 : vector<2x32xf32>
    %317 = arith.truncf %316 : vector<2x32xf32> to vector<2x32xbf16>
    %cst_67 = arith.constant dense<0.000000e+00> : vector<2x128xf32>
    %318 = tpu.matmul %317, %14, %cst_67 {dimension_numbers = #tpu.dot_dimension_numbers<[1], [0], [0], [1], [0, 0, 1, 1], [], []>} : vector<2x32xbf16>, vector<32x128xbf16>, vector<2x128xf32> -> vector<2x128xf32>
    %319 = vector.broadcast %18 : vector<1x128xf32> to vector<2x128xf32>
    %320 = arith.addf %318, %319 : vector<2x128xf32>
    %321 = vector.extract_strided_slice %320 {offsets = [0, 0], sizes = [2, 32], strides = [1, 1]} : vector<2x128xf32> to vector<2x32xf32>
    %322 = vector.extract_strided_slice %320 {offsets = [0, 32], sizes = [2, 32], strides = [1, 1]} : vector<2x128xf32> to vector<2x32xf32>
    %323 = vector.extract_strided_slice %320 {offsets = [0, 64], sizes = [2, 1], strides = [1, 1]} : vector<2x128xf32> to vector<2x1xf32>
    %324 = vector.shape_cast %321 : vector<2x32xf32> to vector<2x1x32xf32>
    %325 = vector.broadcast %324 : vector<2x1x32xf32> to vector<2x16x32xf32>
    %326 = arith.mulf %325, %1 : vector<2x16x32xf32>
    %cst_68 = arith.constant dense<0.000000e+00> : vector<2x16xf32>
    %327 = vector.multi_reduction <add>, %326, %cst_68 [2] : vector<2x16x32xf32> to vector<2x16xf32>
    %328 = arith.subf %327, %6 : vector<2x16xf32>
    %cst_69 = arith.constant dense<0xFF800000> : vector<2xf32>
    %329 = vector.multi_reduction <maximumf>, %328, %cst_69 [1] : vector<2x16xf32> to vector<2xf32>
    %330 = vector.shape_cast %329 : vector<2xf32> to vector<2x1xf32>
    %331 = vector.broadcast %330 : vector<2x1xf32> to vector<2x16xf32>
    %332 = arith.subf %328, %331 : vector<2x16xf32>
    %333 = math.exp %332 : vector<2x16xf32>
    %cst_70 = arith.constant dense<0.000000e+00> : vector<2xf32>
    %334 = vector.multi_reduction <add>, %333, %cst_70 [1] : vector<2x16xf32> to vector<2xf32>
    %335 = vector.shape_cast %334 : vector<2xf32> to vector<2x1xf32>
    %336 = tpu.reciprocal %335 {approx = true} : vector<2x1xf32> -> vector<2x1xf32>
    %337 = vector.broadcast %336 : vector<2x1xf32> to vector<2x16xf32>
    %338 = arith.mulf %333, %337 : vector<2x16xf32>
    %339 = vector.shape_cast %338 : vector<2x16xf32> to vector<2x16x1xf32>
    %340 = vector.broadcast %339 : vector<2x16x1xf32> to vector<2x16x32xf32>
    %341 = arith.mulf %340, %1 : vector<2x16x32xf32>
    %cst_71 = arith.constant dense<0.000000e+00> : vector<2x32xf32>
    %342 = vector.multi_reduction <add>, %341, %cst_71 [1] : vector<2x16x32xf32> to vector<2x32xf32>
    %343 = arith.truncf %342 : vector<2x32xf32> to vector<2x32xbf16>
    %cst_72 = arith.constant dense<0.000000e+00> : vector<2x128xf32>
    %344 = tpu.matmul %343, %15, %cst_72 {dimension_numbers = #tpu.dot_dimension_numbers<[1], [0], [0], [1], [0, 0, 1, 1], [], []>} : vector<2x32xbf16>, vector<32x128xbf16>, vector<2x128xf32> -> vector<2x128xf32>
    %345 = vector.extract_strided_slice %344 {offsets = [0, 0], sizes = [2, 32], strides = [1, 1]} : vector<2x128xf32> to vector<2x32xf32>
    %346 = arith.addf %322, %345 : vector<2x32xf32>
    %347 = vector.extract_strided_slice %344 {offsets = [0, 32], sizes = [2, 1], strides = [1, 1]} : vector<2x128xf32> to vector<2x1xf32>
    %348 = arith.addf %323, %347 : vector<2x1xf32>
    %349 = vector.shape_cast %346 : vector<2x32xf32> to vector<2x1x32xf32>
    %350 = vector.broadcast %349 : vector<2x1x32xf32> to vector<2x8x32xf32>
    %351 = arith.mulf %350, %0 : vector<2x8x32xf32>
    %cst_73 = arith.constant dense<0.000000e+00> : vector<2x8xf32>
    %352 = vector.multi_reduction <add>, %351, %cst_73 [2] : vector<2x8x32xf32> to vector<2x8xf32>
    %353 = vector.broadcast %348 : vector<2x1xf32> to vector<2x8xf32>
    %354 = arith.mulf %282, %353 : vector<2x8xf32>
    %355 = arith.addf %352, %354 : vector<2x8xf32>
    %356 = arith.subf %355, %11 : vector<2x8xf32>
    %cst_74 = arith.constant dense<0xFF800000> : vector<2xf32>
    %357 = vector.multi_reduction <maximumf>, %356, %cst_74 [1] : vector<2x8xf32> to vector<2xf32>
    %358 = vector.shape_cast %357 : vector<2xf32> to vector<2x1xf32>
    %359 = vector.broadcast %358 : vector<2x1xf32> to vector<2x8xf32>
    %360 = arith.cmpf oge, %356, %359 : vector<2x8xf32>
    %c8_i32_75 = arith.constant 8 : i32
    %361 = vector.broadcast %c8_i32_75 : i32 to vector<2x8xi32>
    %362 = arith.select %360, %20, %361 : vector<2x8xi1>, vector<2x8xi32>
    %cst_76 = arith.constant dense<2147483647> : vector<2xi32>
    %363 = vector.multi_reduction <minsi>, %362, %cst_76 [1] : vector<2x8xi32> to vector<2xi32>
    %364 = vector.shape_cast %363 : vector<2xi32> to vector<2x1xi32>
    %365 = vector.broadcast %364 : vector<2x1xi32> to vector<2x8xi32>
    %366 = arith.cmpi eq, %20, %365 : vector<2x8xi32>
    %367 = arith.extui %366 : vector<2x8xi1> to vector<2x8xi32>
    %368 = arith.sitofp %367 : vector<2x8xi32> to vector<2x8xf32>
    %369 = arith.maximumf %282, %368 : vector<2x8xf32>
    %370 = vector.shape_cast %368 : vector<2x8xf32> to vector<2x8x1xf32>
    %371 = vector.broadcast %370 : vector<2x8x1xf32> to vector<2x8x32xf32>
    %372 = arith.mulf %371, %0 : vector<2x8x32xf32>
    %cst_77 = arith.constant dense<0.000000e+00> : vector<2x32xf32>
    %373 = vector.multi_reduction <add>, %372, %cst_77 [1] : vector<2x8x32xf32> to vector<2x32xf32>
    %374 = tpu.concatenate %373, %316 in 1 : vector<2x32xf32>, vector<2x32xf32> -> vector<2x64xf32>
    %375 = arith.truncf %374 : vector<2x64xf32> to vector<2x64xbf16>
    %cst_78 = arith.constant dense<0.000000e+00> : vector<2x128xf32>
    %376 = tpu.matmul %375, %13, %cst_78 {dimension_numbers = #tpu.dot_dimension_numbers<[1], [0], [0], [1], [0, 0, 1, 1], [], []>} : vector<2x64xbf16>, vector<64x128xbf16>, vector<2x128xf32> -> vector<2x128xf32>
    %377 = vector.broadcast %17 : vector<1x128xf32> to vector<2x128xf32>
    %378 = arith.addf %376, %377 : vector<2x128xf32>
    %379 = vector.extract_strided_slice %378 {offsets = [0, 0], sizes = [2, 32], strides = [1, 1]} : vector<2x128xf32> to vector<2x32xf32>
    %380 = arith.negf %379 : vector<2x32xf32>
    %381 = math.exp %380 : vector<2x32xf32>
    %cst_79 = arith.constant 1.000000e+00 : f32
    %382 = vector.broadcast %cst_79 : f32 to vector<2x32xf32>
    %383 = arith.addf %382, %381 : vector<2x32xf32>
    %384 = arith.divf %382, %383 : vector<2x32xf32>
    %385 = vector.extract_strided_slice %378 {offsets = [0, 32], sizes = [2, 32], strides = [1, 1]} : vector<2x128xf32> to vector<2x32xf32>
    %386 = arith.negf %385 : vector<2x32xf32>
    %387 = math.exp %386 : vector<2x32xf32>
    %cst_80 = arith.constant 1.000000e+00 : f32
    %388 = vector.broadcast %cst_80 : f32 to vector<2x32xf32>
    %389 = arith.addf %388, %387 : vector<2x32xf32>
    %390 = arith.divf %388, %389 : vector<2x32xf32>
    %391 = vector.extract_strided_slice %378 {offsets = [0, 64], sizes = [2, 32], strides = [1, 1]} : vector<2x128xf32> to vector<2x32xf32>
    %392 = math.tanh %391 : vector<2x32xf32>
    %393 = vector.extract_strided_slice %378 {offsets = [0, 96], sizes = [2, 32], strides = [1, 1]} : vector<2x128xf32> to vector<2x32xf32>
    %394 = arith.negf %393 : vector<2x32xf32>
    %395 = math.exp %394 : vector<2x32xf32>
    %cst_81 = arith.constant 1.000000e+00 : f32
    %396 = vector.broadcast %cst_81 : f32 to vector<2x32xf32>
    %397 = arith.addf %396, %395 : vector<2x32xf32>
    %398 = arith.divf %396, %397 : vector<2x32xf32>
    %399 = arith.mulf %390, %314 : vector<2x32xf32>
    %400 = arith.mulf %384, %392 : vector<2x32xf32>
    %401 = arith.addf %399, %400 : vector<2x32xf32>
    %402 = math.tanh %401 : vector<2x32xf32>
    %403 = arith.mulf %398, %402 : vector<2x32xf32>
    %404 = arith.truncf %403 : vector<2x32xf32> to vector<2x32xbf16>
    %cst_82 = arith.constant dense<0.000000e+00> : vector<2x128xf32>
    %405 = tpu.matmul %404, %14, %cst_82 {dimension_numbers = #tpu.dot_dimension_numbers<[1], [0], [0], [1], [0, 0, 1, 1], [], []>} : vector<2x32xbf16>, vector<32x128xbf16>, vector<2x128xf32> -> vector<2x128xf32>
    %406 = vector.broadcast %18 : vector<1x128xf32> to vector<2x128xf32>
    %407 = arith.addf %405, %406 : vector<2x128xf32>
    %408 = vector.extract_strided_slice %407 {offsets = [0, 0], sizes = [2, 32], strides = [1, 1]} : vector<2x128xf32> to vector<2x32xf32>
    %409 = vector.extract_strided_slice %407 {offsets = [0, 32], sizes = [2, 32], strides = [1, 1]} : vector<2x128xf32> to vector<2x32xf32>
    %410 = vector.extract_strided_slice %407 {offsets = [0, 64], sizes = [2, 1], strides = [1, 1]} : vector<2x128xf32> to vector<2x1xf32>
    %411 = vector.shape_cast %408 : vector<2x32xf32> to vector<2x1x32xf32>
    %412 = vector.broadcast %411 : vector<2x1x32xf32> to vector<2x16x32xf32>
    %413 = arith.mulf %412, %1 : vector<2x16x32xf32>
    %cst_83 = arith.constant dense<0.000000e+00> : vector<2x16xf32>
    %414 = vector.multi_reduction <add>, %413, %cst_83 [2] : vector<2x16x32xf32> to vector<2x16xf32>
    %415 = arith.subf %414, %6 : vector<2x16xf32>
    %cst_84 = arith.constant dense<0xFF800000> : vector<2xf32>
    %416 = vector.multi_reduction <maximumf>, %415, %cst_84 [1] : vector<2x16xf32> to vector<2xf32>
    %417 = vector.shape_cast %416 : vector<2xf32> to vector<2x1xf32>
    %418 = vector.broadcast %417 : vector<2x1xf32> to vector<2x16xf32>
    %419 = arith.subf %415, %418 : vector<2x16xf32>
    %420 = math.exp %419 : vector<2x16xf32>
    %cst_85 = arith.constant dense<0.000000e+00> : vector<2xf32>
    %421 = vector.multi_reduction <add>, %420, %cst_85 [1] : vector<2x16xf32> to vector<2xf32>
    %422 = vector.shape_cast %421 : vector<2xf32> to vector<2x1xf32>
    %423 = tpu.reciprocal %422 {approx = true} : vector<2x1xf32> -> vector<2x1xf32>
    %424 = vector.broadcast %423 : vector<2x1xf32> to vector<2x16xf32>
    %425 = arith.mulf %420, %424 : vector<2x16xf32>
    %426 = vector.shape_cast %425 : vector<2x16xf32> to vector<2x16x1xf32>
    %427 = vector.broadcast %426 : vector<2x16x1xf32> to vector<2x16x32xf32>
    %428 = arith.mulf %427, %1 : vector<2x16x32xf32>
    %cst_86 = arith.constant dense<0.000000e+00> : vector<2x32xf32>
    %429 = vector.multi_reduction <add>, %428, %cst_86 [1] : vector<2x16x32xf32> to vector<2x32xf32>
    %430 = arith.truncf %429 : vector<2x32xf32> to vector<2x32xbf16>
    %cst_87 = arith.constant dense<0.000000e+00> : vector<2x128xf32>
    %431 = tpu.matmul %430, %15, %cst_87 {dimension_numbers = #tpu.dot_dimension_numbers<[1], [0], [0], [1], [0, 0, 1, 1], [], []>} : vector<2x32xbf16>, vector<32x128xbf16>, vector<2x128xf32> -> vector<2x128xf32>
    %432 = vector.extract_strided_slice %431 {offsets = [0, 0], sizes = [2, 32], strides = [1, 1]} : vector<2x128xf32> to vector<2x32xf32>
    %433 = arith.addf %409, %432 : vector<2x32xf32>
    %434 = vector.extract_strided_slice %431 {offsets = [0, 32], sizes = [2, 1], strides = [1, 1]} : vector<2x128xf32> to vector<2x1xf32>
    %435 = arith.addf %410, %434 : vector<2x1xf32>
    %436 = vector.shape_cast %433 : vector<2x32xf32> to vector<2x1x32xf32>
    %437 = vector.broadcast %436 : vector<2x1x32xf32> to vector<2x8x32xf32>
    %438 = arith.mulf %437, %0 : vector<2x8x32xf32>
    %cst_88 = arith.constant dense<0.000000e+00> : vector<2x8xf32>
    %439 = vector.multi_reduction <add>, %438, %cst_88 [2] : vector<2x8x32xf32> to vector<2x8xf32>
    %440 = vector.broadcast %435 : vector<2x1xf32> to vector<2x8xf32>
    %441 = arith.mulf %369, %440 : vector<2x8xf32>
    %442 = arith.addf %439, %441 : vector<2x8xf32>
    %443 = arith.subf %442, %11 : vector<2x8xf32>
    %cst_89 = arith.constant dense<0xFF800000> : vector<2xf32>
    %444 = vector.multi_reduction <maximumf>, %443, %cst_89 [1] : vector<2x8xf32> to vector<2xf32>
    %445 = vector.shape_cast %444 : vector<2xf32> to vector<2x1xf32>
    %446 = vector.broadcast %445 : vector<2x1xf32> to vector<2x8xf32>
    %447 = arith.cmpf oge, %443, %446 : vector<2x8xf32>
    %c8_i32_90 = arith.constant 8 : i32
    %448 = vector.broadcast %c8_i32_90 : i32 to vector<2x8xi32>
    %449 = arith.select %447, %20, %448 : vector<2x8xi1>, vector<2x8xi32>
    %cst_91 = arith.constant dense<2147483647> : vector<2xi32>
    %450 = vector.multi_reduction <minsi>, %449, %cst_91 [1] : vector<2x8xi32> to vector<2xi32>
    %451 = vector.shape_cast %450 : vector<2xi32> to vector<2x1xi32>
    %452 = vector.broadcast %451 : vector<2x1xi32> to vector<2x8xi32>
    %453 = arith.cmpi eq, %20, %452 : vector<2x8xi32>
    %454 = arith.extui %453 : vector<2x8xi1> to vector<2x8xi32>
    %455 = arith.sitofp %454 : vector<2x8xi32> to vector<2x8xf32>
    %456 = arith.maximumf %369, %455 : vector<2x8xf32>
    %457 = vector.shape_cast %455 : vector<2x8xf32> to vector<2x8x1xf32>
    %458 = vector.broadcast %457 : vector<2x8x1xf32> to vector<2x8x32xf32>
    %459 = arith.mulf %458, %0 : vector<2x8x32xf32>
    %cst_92 = arith.constant dense<0.000000e+00> : vector<2x32xf32>
    %460 = vector.multi_reduction <add>, %459, %cst_92 [1] : vector<2x8x32xf32> to vector<2x32xf32>
    %461 = tpu.concatenate %460, %403 in 1 : vector<2x32xf32>, vector<2x32xf32> -> vector<2x64xf32>
    %462 = arith.truncf %461 : vector<2x64xf32> to vector<2x64xbf16>
    %cst_93 = arith.constant dense<0.000000e+00> : vector<2x128xf32>
    %463 = tpu.matmul %462, %13, %cst_93 {dimension_numbers = #tpu.dot_dimension_numbers<[1], [0], [0], [1], [0, 0, 1, 1], [], []>} : vector<2x64xbf16>, vector<64x128xbf16>, vector<2x128xf32> -> vector<2x128xf32>
    %464 = vector.broadcast %17 : vector<1x128xf32> to vector<2x128xf32>
    %465 = arith.addf %463, %464 : vector<2x128xf32>
    %466 = vector.extract_strided_slice %465 {offsets = [0, 0], sizes = [2, 32], strides = [1, 1]} : vector<2x128xf32> to vector<2x32xf32>
    %467 = arith.negf %466 : vector<2x32xf32>
    %468 = math.exp %467 : vector<2x32xf32>
    %cst_94 = arith.constant 1.000000e+00 : f32
    %469 = vector.broadcast %cst_94 : f32 to vector<2x32xf32>
    %470 = arith.addf %469, %468 : vector<2x32xf32>
    %471 = arith.divf %469, %470 : vector<2x32xf32>
    %472 = vector.extract_strided_slice %465 {offsets = [0, 32], sizes = [2, 32], strides = [1, 1]} : vector<2x128xf32> to vector<2x32xf32>
    %473 = arith.negf %472 : vector<2x32xf32>
    %474 = math.exp %473 : vector<2x32xf32>
    %cst_95 = arith.constant 1.000000e+00 : f32
    %475 = vector.broadcast %cst_95 : f32 to vector<2x32xf32>
    %476 = arith.addf %475, %474 : vector<2x32xf32>
    %477 = arith.divf %475, %476 : vector<2x32xf32>
    %478 = vector.extract_strided_slice %465 {offsets = [0, 64], sizes = [2, 32], strides = [1, 1]} : vector<2x128xf32> to vector<2x32xf32>
    %479 = math.tanh %478 : vector<2x32xf32>
    %480 = vector.extract_strided_slice %465 {offsets = [0, 96], sizes = [2, 32], strides = [1, 1]} : vector<2x128xf32> to vector<2x32xf32>
    %481 = arith.negf %480 : vector<2x32xf32>
    %482 = math.exp %481 : vector<2x32xf32>
    %cst_96 = arith.constant 1.000000e+00 : f32
    %483 = vector.broadcast %cst_96 : f32 to vector<2x32xf32>
    %484 = arith.addf %483, %482 : vector<2x32xf32>
    %485 = arith.divf %483, %484 : vector<2x32xf32>
    %486 = arith.mulf %477, %401 : vector<2x32xf32>
    %487 = arith.mulf %471, %479 : vector<2x32xf32>
    %488 = arith.addf %486, %487 : vector<2x32xf32>
    %489 = math.tanh %488 : vector<2x32xf32>
    %490 = arith.mulf %485, %489 : vector<2x32xf32>
    %491 = arith.truncf %490 : vector<2x32xf32> to vector<2x32xbf16>
    %cst_97 = arith.constant dense<0.000000e+00> : vector<2x128xf32>
    %492 = tpu.matmul %491, %14, %cst_97 {dimension_numbers = #tpu.dot_dimension_numbers<[1], [0], [0], [1], [0, 0, 1, 1], [], []>} : vector<2x32xbf16>, vector<32x128xbf16>, vector<2x128xf32> -> vector<2x128xf32>
    %493 = vector.broadcast %18 : vector<1x128xf32> to vector<2x128xf32>
    %494 = arith.addf %492, %493 : vector<2x128xf32>
    %495 = vector.extract_strided_slice %494 {offsets = [0, 0], sizes = [2, 32], strides = [1, 1]} : vector<2x128xf32> to vector<2x32xf32>
    %496 = vector.extract_strided_slice %494 {offsets = [0, 32], sizes = [2, 32], strides = [1, 1]} : vector<2x128xf32> to vector<2x32xf32>
    %497 = vector.extract_strided_slice %494 {offsets = [0, 64], sizes = [2, 1], strides = [1, 1]} : vector<2x128xf32> to vector<2x1xf32>
    %498 = vector.shape_cast %495 : vector<2x32xf32> to vector<2x1x32xf32>
    %499 = vector.broadcast %498 : vector<2x1x32xf32> to vector<2x16x32xf32>
    %500 = arith.mulf %499, %1 : vector<2x16x32xf32>
    %cst_98 = arith.constant dense<0.000000e+00> : vector<2x16xf32>
    %501 = vector.multi_reduction <add>, %500, %cst_98 [2] : vector<2x16x32xf32> to vector<2x16xf32>
    %502 = arith.subf %501, %6 : vector<2x16xf32>
    %cst_99 = arith.constant dense<0xFF800000> : vector<2xf32>
    %503 = vector.multi_reduction <maximumf>, %502, %cst_99 [1] : vector<2x16xf32> to vector<2xf32>
    %504 = vector.shape_cast %503 : vector<2xf32> to vector<2x1xf32>
    %505 = vector.broadcast %504 : vector<2x1xf32> to vector<2x16xf32>
    %506 = arith.subf %502, %505 : vector<2x16xf32>
    %507 = math.exp %506 : vector<2x16xf32>
    %cst_100 = arith.constant dense<0.000000e+00> : vector<2xf32>
    %508 = vector.multi_reduction <add>, %507, %cst_100 [1] : vector<2x16xf32> to vector<2xf32>
    %509 = vector.shape_cast %508 : vector<2xf32> to vector<2x1xf32>
    %510 = tpu.reciprocal %509 {approx = true} : vector<2x1xf32> -> vector<2x1xf32>
    %511 = vector.broadcast %510 : vector<2x1xf32> to vector<2x16xf32>
    %512 = arith.mulf %507, %511 : vector<2x16xf32>
    %513 = vector.shape_cast %512 : vector<2x16xf32> to vector<2x16x1xf32>
    %514 = vector.broadcast %513 : vector<2x16x1xf32> to vector<2x16x32xf32>
    %515 = arith.mulf %514, %1 : vector<2x16x32xf32>
    %cst_101 = arith.constant dense<0.000000e+00> : vector<2x32xf32>
    %516 = vector.multi_reduction <add>, %515, %cst_101 [1] : vector<2x16x32xf32> to vector<2x32xf32>
    %517 = arith.truncf %516 : vector<2x32xf32> to vector<2x32xbf16>
    %cst_102 = arith.constant dense<0.000000e+00> : vector<2x128xf32>
    %518 = tpu.matmul %517, %15, %cst_102 {dimension_numbers = #tpu.dot_dimension_numbers<[1], [0], [0], [1], [0, 0, 1, 1], [], []>} : vector<2x32xbf16>, vector<32x128xbf16>, vector<2x128xf32> -> vector<2x128xf32>
    %519 = vector.extract_strided_slice %518 {offsets = [0, 0], sizes = [2, 32], strides = [1, 1]} : vector<2x128xf32> to vector<2x32xf32>
    %520 = arith.addf %496, %519 : vector<2x32xf32>
    %521 = vector.extract_strided_slice %518 {offsets = [0, 32], sizes = [2, 1], strides = [1, 1]} : vector<2x128xf32> to vector<2x1xf32>
    %522 = arith.addf %497, %521 : vector<2x1xf32>
    %523 = vector.shape_cast %520 : vector<2x32xf32> to vector<2x1x32xf32>
    %524 = vector.broadcast %523 : vector<2x1x32xf32> to vector<2x8x32xf32>
    %525 = arith.mulf %524, %0 : vector<2x8x32xf32>
    %cst_103 = arith.constant dense<0.000000e+00> : vector<2x8xf32>
    %526 = vector.multi_reduction <add>, %525, %cst_103 [2] : vector<2x8x32xf32> to vector<2x8xf32>
    %527 = vector.broadcast %522 : vector<2x1xf32> to vector<2x8xf32>
    %528 = arith.mulf %456, %527 : vector<2x8xf32>
    %529 = arith.addf %526, %528 : vector<2x8xf32>
    %530 = arith.subf %529, %11 : vector<2x8xf32>
    %cst_104 = arith.constant dense<0xFF800000> : vector<2xf32>
    %531 = vector.multi_reduction <maximumf>, %530, %cst_104 [1] : vector<2x8xf32> to vector<2xf32>
    %532 = vector.shape_cast %531 : vector<2xf32> to vector<2x1xf32>
    %533 = vector.broadcast %532 : vector<2x1xf32> to vector<2x8xf32>
    %534 = arith.cmpf oge, %530, %533 : vector<2x8xf32>
    %c8_i32_105 = arith.constant 8 : i32
    %535 = vector.broadcast %c8_i32_105 : i32 to vector<2x8xi32>
    %536 = arith.select %534, %20, %535 : vector<2x8xi1>, vector<2x8xi32>
    %cst_106 = arith.constant dense<2147483647> : vector<2xi32>
    %537 = vector.multi_reduction <minsi>, %536, %cst_106 [1] : vector<2x8xi32> to vector<2xi32>
    %538 = vector.shape_cast %537 : vector<2xi32> to vector<2x1xi32>
    %539 = vector.broadcast %538 : vector<2x1xi32> to vector<2x8xi32>
    %540 = arith.cmpi eq, %20, %539 : vector<2x8xi32>
    %541 = arith.extui %540 : vector<2x8xi1> to vector<2x8xi32>
    %542 = arith.sitofp %541 : vector<2x8xi32> to vector<2x8xf32>
    %543 = arith.maximumf %456, %542 : vector<2x8xf32>
    %544 = vector.shape_cast %542 : vector<2x8xf32> to vector<2x8x1xf32>
    %545 = vector.broadcast %544 : vector<2x8x1xf32> to vector<2x8x32xf32>
    %546 = arith.mulf %545, %0 : vector<2x8x32xf32>
    %cst_107 = arith.constant dense<0.000000e+00> : vector<2x32xf32>
    %547 = vector.multi_reduction <add>, %546, %cst_107 [1] : vector<2x8x32xf32> to vector<2x32xf32>
    %548 = tpu.concatenate %547, %490 in 1 : vector<2x32xf32>, vector<2x32xf32> -> vector<2x64xf32>
    %549 = arith.truncf %548 : vector<2x64xf32> to vector<2x64xbf16>
    %cst_108 = arith.constant dense<0.000000e+00> : vector<2x128xf32>
    %550 = tpu.matmul %549, %13, %cst_108 {dimension_numbers = #tpu.dot_dimension_numbers<[1], [0], [0], [1], [0, 0, 1, 1], [], []>} : vector<2x64xbf16>, vector<64x128xbf16>, vector<2x128xf32> -> vector<2x128xf32>
    %551 = vector.broadcast %17 : vector<1x128xf32> to vector<2x128xf32>
    %552 = arith.addf %550, %551 : vector<2x128xf32>
    %553 = vector.extract_strided_slice %552 {offsets = [0, 0], sizes = [2, 32], strides = [1, 1]} : vector<2x128xf32> to vector<2x32xf32>
    %554 = arith.negf %553 : vector<2x32xf32>
    %555 = math.exp %554 : vector<2x32xf32>
    %cst_109 = arith.constant 1.000000e+00 : f32
    %556 = vector.broadcast %cst_109 : f32 to vector<2x32xf32>
    %557 = arith.addf %556, %555 : vector<2x32xf32>
    %558 = arith.divf %556, %557 : vector<2x32xf32>
    %559 = vector.extract_strided_slice %552 {offsets = [0, 32], sizes = [2, 32], strides = [1, 1]} : vector<2x128xf32> to vector<2x32xf32>
    %560 = arith.negf %559 : vector<2x32xf32>
    %561 = math.exp %560 : vector<2x32xf32>
    %cst_110 = arith.constant 1.000000e+00 : f32
    %562 = vector.broadcast %cst_110 : f32 to vector<2x32xf32>
    %563 = arith.addf %562, %561 : vector<2x32xf32>
    %564 = arith.divf %562, %563 : vector<2x32xf32>
    %565 = vector.extract_strided_slice %552 {offsets = [0, 64], sizes = [2, 32], strides = [1, 1]} : vector<2x128xf32> to vector<2x32xf32>
    %566 = math.tanh %565 : vector<2x32xf32>
    %567 = vector.extract_strided_slice %552 {offsets = [0, 96], sizes = [2, 32], strides = [1, 1]} : vector<2x128xf32> to vector<2x32xf32>
    %568 = arith.negf %567 : vector<2x32xf32>
    %569 = math.exp %568 : vector<2x32xf32>
    %cst_111 = arith.constant 1.000000e+00 : f32
    %570 = vector.broadcast %cst_111 : f32 to vector<2x32xf32>
    %571 = arith.addf %570, %569 : vector<2x32xf32>
    %572 = arith.divf %570, %571 : vector<2x32xf32>
    %573 = arith.mulf %564, %488 : vector<2x32xf32>
    %574 = arith.mulf %558, %566 : vector<2x32xf32>
    %575 = arith.addf %573, %574 : vector<2x32xf32>
    %576 = math.tanh %575 : vector<2x32xf32>
    %577 = arith.mulf %572, %576 : vector<2x32xf32>
    %578 = arith.truncf %577 : vector<2x32xf32> to vector<2x32xbf16>
    %cst_112 = arith.constant dense<0.000000e+00> : vector<2x128xf32>
    %579 = tpu.matmul %578, %14, %cst_112 {dimension_numbers = #tpu.dot_dimension_numbers<[1], [0], [0], [1], [0, 0, 1, 1], [], []>} : vector<2x32xbf16>, vector<32x128xbf16>, vector<2x128xf32> -> vector<2x128xf32>
    %580 = vector.broadcast %18 : vector<1x128xf32> to vector<2x128xf32>
    %581 = arith.addf %579, %580 : vector<2x128xf32>
    %582 = vector.extract_strided_slice %581 {offsets = [0, 0], sizes = [2, 32], strides = [1, 1]} : vector<2x128xf32> to vector<2x32xf32>
    %583 = vector.extract_strided_slice %581 {offsets = [0, 32], sizes = [2, 32], strides = [1, 1]} : vector<2x128xf32> to vector<2x32xf32>
    %584 = vector.extract_strided_slice %581 {offsets = [0, 64], sizes = [2, 1], strides = [1, 1]} : vector<2x128xf32> to vector<2x1xf32>
    %585 = vector.shape_cast %582 : vector<2x32xf32> to vector<2x1x32xf32>
    %586 = vector.broadcast %585 : vector<2x1x32xf32> to vector<2x16x32xf32>
    %587 = arith.mulf %586, %1 : vector<2x16x32xf32>
    %cst_113 = arith.constant dense<0.000000e+00> : vector<2x16xf32>
    %588 = vector.multi_reduction <add>, %587, %cst_113 [2] : vector<2x16x32xf32> to vector<2x16xf32>
    %589 = arith.subf %588, %6 : vector<2x16xf32>
    %cst_114 = arith.constant dense<0xFF800000> : vector<2xf32>
    %590 = vector.multi_reduction <maximumf>, %589, %cst_114 [1] : vector<2x16xf32> to vector<2xf32>
    %591 = vector.shape_cast %590 : vector<2xf32> to vector<2x1xf32>
    %592 = vector.broadcast %591 : vector<2x1xf32> to vector<2x16xf32>
    %593 = arith.subf %589, %592 : vector<2x16xf32>
    %594 = math.exp %593 : vector<2x16xf32>
    %cst_115 = arith.constant dense<0.000000e+00> : vector<2xf32>
    %595 = vector.multi_reduction <add>, %594, %cst_115 [1] : vector<2x16xf32> to vector<2xf32>
    %596 = vector.shape_cast %595 : vector<2xf32> to vector<2x1xf32>
    %597 = tpu.reciprocal %596 {approx = true} : vector<2x1xf32> -> vector<2x1xf32>
    %598 = vector.broadcast %597 : vector<2x1xf32> to vector<2x16xf32>
    %599 = arith.mulf %594, %598 : vector<2x16xf32>
    %600 = vector.shape_cast %599 : vector<2x16xf32> to vector<2x16x1xf32>
    %601 = vector.broadcast %600 : vector<2x16x1xf32> to vector<2x16x32xf32>
    %602 = arith.mulf %601, %1 : vector<2x16x32xf32>
    %cst_116 = arith.constant dense<0.000000e+00> : vector<2x32xf32>
    %603 = vector.multi_reduction <add>, %602, %cst_116 [1] : vector<2x16x32xf32> to vector<2x32xf32>
    %604 = arith.truncf %603 : vector<2x32xf32> to vector<2x32xbf16>
    %cst_117 = arith.constant dense<0.000000e+00> : vector<2x128xf32>
    %605 = tpu.matmul %604, %15, %cst_117 {dimension_numbers = #tpu.dot_dimension_numbers<[1], [0], [0], [1], [0, 0, 1, 1], [], []>} : vector<2x32xbf16>, vector<32x128xbf16>, vector<2x128xf32> -> vector<2x128xf32>
    %606 = vector.extract_strided_slice %605 {offsets = [0, 0], sizes = [2, 32], strides = [1, 1]} : vector<2x128xf32> to vector<2x32xf32>
    %607 = arith.addf %583, %606 : vector<2x32xf32>
    %608 = vector.extract_strided_slice %605 {offsets = [0, 32], sizes = [2, 1], strides = [1, 1]} : vector<2x128xf32> to vector<2x1xf32>
    %609 = arith.addf %584, %608 : vector<2x1xf32>
    %610 = vector.shape_cast %607 : vector<2x32xf32> to vector<2x1x32xf32>
    %611 = vector.broadcast %610 : vector<2x1x32xf32> to vector<2x8x32xf32>
    %612 = arith.mulf %611, %0 : vector<2x8x32xf32>
    %cst_118 = arith.constant dense<0.000000e+00> : vector<2x8xf32>
    %613 = vector.multi_reduction <add>, %612, %cst_118 [2] : vector<2x8x32xf32> to vector<2x8xf32>
    %614 = vector.broadcast %609 : vector<2x1xf32> to vector<2x8xf32>
    %615 = arith.mulf %543, %614 : vector<2x8xf32>
    %616 = arith.addf %613, %615 : vector<2x8xf32>
    %617 = arith.subf %616, %11 : vector<2x8xf32>
    %cst_119 = arith.constant dense<0xFF800000> : vector<2xf32>
    %618 = vector.multi_reduction <maximumf>, %617, %cst_119 [1] : vector<2x8xf32> to vector<2xf32>
    %619 = vector.shape_cast %618 : vector<2xf32> to vector<2x1xf32>
    %620 = vector.broadcast %619 : vector<2x1xf32> to vector<2x8xf32>
    %621 = arith.cmpf oge, %617, %620 : vector<2x8xf32>
    %c8_i32_120 = arith.constant 8 : i32
    %622 = vector.broadcast %c8_i32_120 : i32 to vector<2x8xi32>
    %623 = arith.select %621, %20, %622 : vector<2x8xi1>, vector<2x8xi32>
    %cst_121 = arith.constant dense<2147483647> : vector<2xi32>
    %624 = vector.multi_reduction <minsi>, %623, %cst_121 [1] : vector<2x8xi32> to vector<2xi32>
    %625 = vector.shape_cast %624 : vector<2xi32> to vector<2x1xi32>
    %626 = vector.broadcast %625 : vector<2x1xi32> to vector<2x8xi32>
    %627 = arith.cmpi eq, %20, %626 : vector<2x8xi32>
    %628 = arith.extui %627 : vector<2x8xi1> to vector<2x8xi32>
    %629 = arith.sitofp %628 : vector<2x8xi32> to vector<2x8xf32>
    %630 = arith.maximumf %543, %629 : vector<2x8xf32>
    %631 = vector.shape_cast %629 : vector<2x8xf32> to vector<2x8x1xf32>
    %632 = vector.broadcast %631 : vector<2x8x1xf32> to vector<2x8x32xf32>
    %633 = arith.mulf %632, %0 : vector<2x8x32xf32>
    %cst_122 = arith.constant dense<0.000000e+00> : vector<2x32xf32>
    %634 = vector.multi_reduction <add>, %633, %cst_122 [1] : vector<2x8x32xf32> to vector<2x32xf32>
    %635 = tpu.concatenate %634, %577 in 1 : vector<2x32xf32>, vector<2x32xf32> -> vector<2x64xf32>
    %636 = arith.truncf %635 : vector<2x64xf32> to vector<2x64xbf16>
    %cst_123 = arith.constant dense<0.000000e+00> : vector<2x128xf32>
    %637 = tpu.matmul %636, %13, %cst_123 {dimension_numbers = #tpu.dot_dimension_numbers<[1], [0], [0], [1], [0, 0, 1, 1], [], []>} : vector<2x64xbf16>, vector<64x128xbf16>, vector<2x128xf32> -> vector<2x128xf32>
    %638 = vector.broadcast %17 : vector<1x128xf32> to vector<2x128xf32>
    %639 = arith.addf %637, %638 : vector<2x128xf32>
    %640 = vector.extract_strided_slice %639 {offsets = [0, 0], sizes = [2, 32], strides = [1, 1]} : vector<2x128xf32> to vector<2x32xf32>
    %641 = arith.negf %640 : vector<2x32xf32>
    %642 = math.exp %641 : vector<2x32xf32>
    %cst_124 = arith.constant 1.000000e+00 : f32
    %643 = vector.broadcast %cst_124 : f32 to vector<2x32xf32>
    %644 = arith.addf %643, %642 : vector<2x32xf32>
    %645 = arith.divf %643, %644 : vector<2x32xf32>
    %646 = vector.extract_strided_slice %639 {offsets = [0, 32], sizes = [2, 32], strides = [1, 1]} : vector<2x128xf32> to vector<2x32xf32>
    %647 = arith.negf %646 : vector<2x32xf32>
    %648 = math.exp %647 : vector<2x32xf32>
    %cst_125 = arith.constant 1.000000e+00 : f32
    %649 = vector.broadcast %cst_125 : f32 to vector<2x32xf32>
    %650 = arith.addf %649, %648 : vector<2x32xf32>
    %651 = arith.divf %649, %650 : vector<2x32xf32>
    %652 = vector.extract_strided_slice %639 {offsets = [0, 64], sizes = [2, 32], strides = [1, 1]} : vector<2x128xf32> to vector<2x32xf32>
    %653 = math.tanh %652 : vector<2x32xf32>
    %654 = vector.extract_strided_slice %639 {offsets = [0, 96], sizes = [2, 32], strides = [1, 1]} : vector<2x128xf32> to vector<2x32xf32>
    %655 = arith.negf %654 : vector<2x32xf32>
    %656 = math.exp %655 : vector<2x32xf32>
    %cst_126 = arith.constant 1.000000e+00 : f32
    %657 = vector.broadcast %cst_126 : f32 to vector<2x32xf32>
    %658 = arith.addf %657, %656 : vector<2x32xf32>
    %659 = arith.divf %657, %658 : vector<2x32xf32>
    %660 = arith.mulf %651, %575 : vector<2x32xf32>
    %661 = arith.mulf %645, %653 : vector<2x32xf32>
    %662 = arith.addf %660, %661 : vector<2x32xf32>
    %663 = math.tanh %662 : vector<2x32xf32>
    %664 = arith.mulf %659, %663 : vector<2x32xf32>
    %665 = arith.truncf %664 : vector<2x32xf32> to vector<2x32xbf16>
    %cst_127 = arith.constant dense<0.000000e+00> : vector<2x128xf32>
    %666 = tpu.matmul %665, %14, %cst_127 {dimension_numbers = #tpu.dot_dimension_numbers<[1], [0], [0], [1], [0, 0, 1, 1], [], []>} : vector<2x32xbf16>, vector<32x128xbf16>, vector<2x128xf32> -> vector<2x128xf32>
    %667 = vector.broadcast %18 : vector<1x128xf32> to vector<2x128xf32>
    %668 = arith.addf %666, %667 : vector<2x128xf32>
    %669 = vector.extract_strided_slice %668 {offsets = [0, 0], sizes = [2, 32], strides = [1, 1]} : vector<2x128xf32> to vector<2x32xf32>
    %670 = vector.extract_strided_slice %668 {offsets = [0, 32], sizes = [2, 32], strides = [1, 1]} : vector<2x128xf32> to vector<2x32xf32>
    %671 = vector.extract_strided_slice %668 {offsets = [0, 64], sizes = [2, 1], strides = [1, 1]} : vector<2x128xf32> to vector<2x1xf32>
    %672 = vector.shape_cast %669 : vector<2x32xf32> to vector<2x1x32xf32>
    %673 = vector.broadcast %672 : vector<2x1x32xf32> to vector<2x16x32xf32>
    %674 = arith.mulf %673, %1 : vector<2x16x32xf32>
    %cst_128 = arith.constant dense<0.000000e+00> : vector<2x16xf32>
    %675 = vector.multi_reduction <add>, %674, %cst_128 [2] : vector<2x16x32xf32> to vector<2x16xf32>
    %676 = arith.subf %675, %6 : vector<2x16xf32>
    %cst_129 = arith.constant dense<0xFF800000> : vector<2xf32>
    %677 = vector.multi_reduction <maximumf>, %676, %cst_129 [1] : vector<2x16xf32> to vector<2xf32>
    %678 = vector.shape_cast %677 : vector<2xf32> to vector<2x1xf32>
    %679 = vector.broadcast %678 : vector<2x1xf32> to vector<2x16xf32>
    %680 = arith.subf %676, %679 : vector<2x16xf32>
    %681 = math.exp %680 : vector<2x16xf32>
    %cst_130 = arith.constant dense<0.000000e+00> : vector<2xf32>
    %682 = vector.multi_reduction <add>, %681, %cst_130 [1] : vector<2x16xf32> to vector<2xf32>
    %683 = vector.shape_cast %682 : vector<2xf32> to vector<2x1xf32>
    %684 = tpu.reciprocal %683 {approx = true} : vector<2x1xf32> -> vector<2x1xf32>
    %685 = vector.broadcast %684 : vector<2x1xf32> to vector<2x16xf32>
    %686 = arith.mulf %681, %685 : vector<2x16xf32>
    %687 = vector.shape_cast %686 : vector<2x16xf32> to vector<2x16x1xf32>
    %688 = vector.broadcast %687 : vector<2x16x1xf32> to vector<2x16x32xf32>
    %689 = arith.mulf %688, %1 : vector<2x16x32xf32>
    %cst_131 = arith.constant dense<0.000000e+00> : vector<2x32xf32>
    %690 = vector.multi_reduction <add>, %689, %cst_131 [1] : vector<2x16x32xf32> to vector<2x32xf32>
    %691 = arith.truncf %690 : vector<2x32xf32> to vector<2x32xbf16>
    %cst_132 = arith.constant dense<0.000000e+00> : vector<2x128xf32>
    %692 = tpu.matmul %691, %15, %cst_132 {dimension_numbers = #tpu.dot_dimension_numbers<[1], [0], [0], [1], [0, 0, 1, 1], [], []>} : vector<2x32xbf16>, vector<32x128xbf16>, vector<2x128xf32> -> vector<2x128xf32>
    %693 = vector.extract_strided_slice %692 {offsets = [0, 0], sizes = [2, 32], strides = [1, 1]} : vector<2x128xf32> to vector<2x32xf32>
    %694 = arith.addf %670, %693 : vector<2x32xf32>
    %695 = vector.extract_strided_slice %692 {offsets = [0, 32], sizes = [2, 1], strides = [1, 1]} : vector<2x128xf32> to vector<2x1xf32>
    %696 = arith.addf %671, %695 : vector<2x1xf32>
    %697 = vector.shape_cast %694 : vector<2x32xf32> to vector<2x1x32xf32>
    %698 = vector.broadcast %697 : vector<2x1x32xf32> to vector<2x8x32xf32>
    %699 = arith.mulf %698, %0 : vector<2x8x32xf32>
    %cst_133 = arith.constant dense<0.000000e+00> : vector<2x8xf32>
    %700 = vector.multi_reduction <add>, %699, %cst_133 [2] : vector<2x8x32xf32> to vector<2x8xf32>
    %701 = vector.broadcast %696 : vector<2x1xf32> to vector<2x8xf32>
    %702 = arith.mulf %630, %701 : vector<2x8xf32>
    %703 = arith.addf %700, %702 : vector<2x8xf32>
    %704 = arith.subf %703, %11 : vector<2x8xf32>
    %705 = tpu.concatenate %95, %182, %269, %356, %443, %530, %617, %704 in 1 : vector<2x8xf32>, vector<2x8xf32>, vector<2x8xf32>, vector<2x8xf32>, vector<2x8xf32>, vector<2x8xf32>, vector<2x8xf32>, vector<2x8xf32> -> vector<2x64xf32>
    %c0_134 = arith.constant 0 : index
    %c0_135 = arith.constant 0 : index
    %706 = vector.load %arg6[%c0_134, %c0_135] : memref<2x64xf32, #tpu.memory_space<vmem>>, vector<2x64xf32>
    tpu.vector_store %arg6[%c0_134, %c0_135], %705 {strides = array<i32>} : memref<2x64xf32, #tpu.memory_space<vmem>>, vector<2x64xf32>,
    return
  }
}

</mosaic_0001>

<llo_original>
// kernel: pointer_decoder_forward.1
$region0: #{pointer_decoder_forward.1}
  #allocation0 [shape = 'u32[]', space=smem, size = 0x4, offset = 0x4, fixed_abs, tag = 'smem constant byte address 0x4 - core index']
  #allocation1 [shape = 'u32[144,128]{1,0:T(1,128)}', space=vmem, size = 0x12000, scoped, tag = 'internal scratch']
  %s0 = inlined_call_operand.vmem [shape: f32[2,8,32], index: 0, kind: input, shape index: {}]
  %s1 = inlined_call_operand.vmem [shape: f32[2,8], index: 1, kind: input, shape index: {}]
  %s2 = inlined_call_operand.vmem [shape: f32[2,16,32], index: 2, kind: input, shape index: {}]
  %s3 = inlined_call_operand.vmem [shape: f32[2,16], index: 3, kind: input, shape index: {}]
  %s4 = inlined_call_operand.vmem [shape: bf16[128,128], index: 4, kind: input, shape index: {}]
  %s5 = inlined_call_operand.vmem [shape: f32[3,128], index: 5, kind: input, shape index: {}]
  %s6 = inlined_call_operand.vmem [shape: f32[2,64], index: 6, kind: output, shape index: {}]
  %s7 = sld [smem:[#allocation0]]
  $region34: #{pointer_decoder_forward.1} parent=0
    _
  %s9 = ssub.s32 1, %s7
  %s10 = scalar_select 0, %s9, %s7
  // Predicated region
  $region2: #{pointer_decoder_forward.1} parent=0 // pred_check
    _
  $region3: #{pointer_decoder_forward.1} parent=0 // pred_check_branch
    %12 = sbr.rel (0) target = $region5
  $region4: #{pointer_decoder_forward.1} parent=0 // pred_region
    _
  $region5: #{pointer_decoder_forward.1} parent=0 // pred_fallthru
    _
  // Predicated region
  $region6: #{pointer_decoder_forward.1} parent=0 // pred_check
    _
  $region7: #{pointer_decoder_forward.1} parent=0 // pred_check_branch
    %14 = sbr.rel (0) target = $region9
  $region8: #{pointer_decoder_forward.1} parent=0 // pred_region
    _
  $region9: #{pointer_decoder_forward.1} parent=0 // pred_fallthru
    _
  // Predicated region
  $region10: #{pointer_decoder_forward.1} parent=0 // pred_check
    _
  $region11: #{pointer_decoder_forward.1} parent=0 // pred_check_branch
    %16 = sbr.rel (0) target = $region13
  $region12: #{pointer_decoder_forward.1} parent=0 // pred_region
    _
  $region13: #{pointer_decoder_forward.1} parent=0 // pred_fallthru
    _
  // Predicated region
  $region14: #{pointer_decoder_forward.1} parent=0 // pred_check
    _
  $region15: #{pointer_decoder_forward.1} parent=0 // pred_check_branch
    %18 = sbr.rel (0) target = $region17
  $region16: #{pointer_decoder_forward.1} parent=0 // pred_region
    _
  $region17: #{pointer_decoder_forward.1} parent=0 // pred_fallthru
    _
  // Predicated region
  $region18: #{pointer_decoder_forward.1} parent=0 // pred_check
    _
  $region19: #{pointer_decoder_forward.1} parent=0 // pred_check_branch
    %20 = sbr.rel (0) target = $region21
  $region20: #{pointer_decoder_forward.1} parent=0 // pred_region
    _
  $region21: #{pointer_decoder_forward.1} parent=0 // pred_fallthru
    _
  // Predicated region
  $region22: #{pointer_decoder_forward.1} parent=0 // pred_check
    _
  $region23: #{pointer_decoder_forward.1} parent=0 // pred_check_branch
    %22 = sbr.rel (0) target = $region25
  $region24: #{pointer_decoder_forward.1} parent=0 // pred_region
    _
  $region25: #{pointer_decoder_forward.1} parent=0 // pred_fallthru
    _
  %v24 = vld [vmem:[%s0] sm:$0xff]
  %v25 = vld [vmem:[%s0 + $0x8] sm:$0xff]
  %v26 = vld [vmem:[%s2] sm:$0xff]
  %v27 = vld [vmem:[%s2 + $0x8] sm:$0xff]
  %v28 = vld [vmem:[%s2 + $0x10] sm:$0xff]
  %v29 = vld [vmem:[%s2 + $0x18] sm:$0xff]
  %v30 = vld [vmem:[%s3] sm:$0x3]
  %v31 = vsub.f32 1.0, %v30
  %v32 = vmul.f32 %v31, 1e+20
  %v33 = vld [vmem:[%s1] sm:$0x3]
  %v34 = vsub.f32 1.0, %v33
  %v35 = vmul.f32 %v34, 1e+20
  %v36 = vld [vmem:[%s4] sm:$0xf]
  %v37 = vld [vmem:[%s4 + $0x4] sm:$0xf]
  %v38 = vld [vmem:[%s4 + $0x8] sm:$0xf]
  %v39 = vld [vmem:[%s4 + $0xc] sm:$0xf]
  %v40 = vld [vmem:[%s4 + $0x10] sm:$0xf]
  %v41 = vld [vmem:[%s4 + $0x14] sm:$0xf]
  %v42 = vld [vmem:[%s4 + $0x18] sm:$0xf]
  %v43 = vld [vmem:[%s4 + $0x1c] sm:$0xf]
  %v44 = vld [vmem:[%s4 + $0x20] sm:$0xf]
  %v45 = vld [vmem:[%s4 + $0x24] sm:$0xf]
  %v46 = vld [vmem:[%s4 + $0x28] sm:$0xf]
  %v47 = vld [vmem:[%s4 + $0x2c] sm:$0xf]
  %v48 = vld [vmem:[%s4 + $0x30] sm:$0xf]
  %v49 = vld [vmem:[%s4 + $0x34] sm:$0xf]
  %v50 = vld [vmem:[%s4 + $0x38] sm:$0xf]
  %v51 = vld [vmem:[%s4 + $0x3c] sm:$0xf]
  %v52 = vld [vmem:[%s5] sm:$0x7]
  %v53 = vlaneseq
  %v54 = vand.u32 %v53, 127
  %v55 = vlaneseq
  %v56 = vshrl.u32 %v55, 7
  %v57 = vsub.s32 2, %v56
  %v58 = vrot.slane %v52, %v57
  %vm59 = vcmask 261120
  %v60 = vsel %vm59, %v58, 0.0
  %v61 = vpack.c.bf16 %v60, %v60
  %v62 = vlaneseq
  %v63 = vshrl.u32 %v62, 7
  %v64 = vsub.s32 0, %v63
  %v65 = vrot.slane %v52, %v64
  %v74 = vunpack.c.l.b16 %v36
  %v75 = vunpack.c.l.b16 %v37
  %v76 = vunpack.c.l.b16 %v38
  %v77 = vunpack.c.l.b16 %v39
  %v78 = vunpack.c.l.b16 %v40
  %v79 = vunpack.c.l.b16 %v41
  %v80 = vunpack.c.l.b16 %v42
  %v81 = vunpack.c.l.b16 %v43
  %v82 = vpack.c.b16 %v75, %v74
  %v83 = vpack.c.b16 %v77, %v76
  %v84 = vpack.c.b16 %v79, %v78
  %v85 = vpack.c.b16 %v81, %v80
  %vm90 = vcmask 523264
  %v92 = vsel %vm90, %v61, 0
  %94 = vmatprep.subr.bf16.mxu0 0
  %95 = vmatpush1.bf16.msra.mxu0 %v82
  %96 = vmatprep.subr.bf16.mxu0 0
  %97 = vmatpush1.bf16.msra.mxu0 %v83
  %98 = vmatprep.subr.bf16.mxu0 0
  %99 = vmatpush1.bf16.msra.mxu0 %v84
  %100 = vmatprep.subr.bf16.mxu0 0
  %101 = vmatpush1.bf16.msra.mxu0 %v85
  %102 = vmatprep.subr.bf16.mxu0 0
  %103 = vmatpush1.bf16.msra.mxu0 0
  %104 = vmatprep.subr.bf16.mxu0 0
  %105 = vmatpush1.bf16.msra.mxu0 0
  %106 = vmatprep.subr.bf16.mxu0 0
  %107 = vmatpush1.bf16.msra.mxu0 0
  %108 = vmatprep.subr.bf16.mxu0 0
  %109 = vmatpush1.bf16.msra.mxu0 0
  %110 = vmatprep.subr.bf16.mxu0 0
  %111 = vmatpush1.bf16.msra.mxu0 0
  %112 = vmatprep.subr.bf16.mxu0 0
  %113 = vmatpush1.bf16.msra.mxu0 0
  %114 = vmatprep.subr.bf16.mxu0 0
  %115 = vmatpush1.bf16.msra.mxu0 0
  %116 = vmatprep.subr.bf16.mxu0 0
  %117 = vmatpush1.bf16.msra.mxu0 0
  %118 = vmatprep.subr.bf16.mxu0 0
  %119 = vmatpush1.bf16.msra.mxu0 0
  %120 = vmatprep.subr.bf16.mxu0 0
  %121 = vmatpush1.bf16.msra.mxu0 0
  %122 = vmatprep.subr.bf16.mxu0 0
  %123 = vmatpush1.bf16.msra.mxu0 0
  %124 = vmatprep.subr.bf16.mxu0 0
  %125 = vmatpush1.bf16.msra.mxu0 0
  %126 = vmatprep.mubr.bf16.mxu0 0
  %127 = vmatmul.mubr.bf16.gmra.mrb[0].mxu0 %v92
  %v128 = vpop.f32.mrb[0].mxu0
  %v129 = vadd.f32 %v65, %v128
  %v130 = vpop.f32.mrb[0].mxu0
  %v131 = vpop.f32.mrb[0].mxu0
  %v132 = vpop.f32.mrb[0].mxu0
  %133 = vdwg.mxu0
  %v134 = vxor.u32 %v129, 2147483648
  %v135 = vmul.f32 %v134, 1.442695
  %v136 = vpow.pop %v135
  %v137 = vadd.f32 %v136, 1.0
  %v138 = vrcp.pop %v137
  %v139 = vmul.f32 1.0, %v138
  %v140 = vtanh.pop %v129
  %v141 = vmul.f32 %v139, 0.0
  %143 = vrot.lane.b32.xlu0 %v140, 64
  %v144 = vpop.permute.xlu0 %143
  %v146 = vmul.f32 %v139, %v144
  %148 = vrot.lane.b32.xlu0 %v146, 32
  %v149 = vpop.permute.xlu0 %148
  %v151 = vadd.f32 %v141, %v149
  %v152 = vtanh.pop %v151
  %154 = vrot.lane.b32.xlu0 %v152, 64
  %v155 = vpop.permute.xlu0 %154
  %v157 = vmul.f32 %v139, %v155
  %v158 = vpack.c.bf16 %v157, %v157
  %v159 = vlaneseq
  %v160 = vshrl.u32 %v159, 7
  %v161 = vsub.s32 1, %v160
  %v162 = vrot.slane %v52, %v161
  %164 = vrot.lane.b32.xlu0 %v158, 32
  %v165 = vpop.permute.xlu0 %164
  %v170 = vunpack.c.l.b16 %v44
  %v171 = vunpack.c.l.b16 %v45
  %v172 = vunpack.c.l.b16 %v46
  %v173 = vunpack.c.l.b16 %v47
  %v174 = vpack.c.b16 %v171, %v170
  %v175 = vpack.c.b16 %v173, %v172
  %v179 = vsel %vm59, %v165, 0
  %181 = vmatprep.subr.bf16.mxu0 0
  %182 = vmatpush1.bf16.msra.mxu0 %v174
  %183 = vmatprep.subr.bf16.mxu0 0
  %184 = vmatpush1.bf16.msra.mxu0 %v175
  %185 = vmatprep.subr.bf16.mxu0 0
  %186 = vmatpush1.bf16.msra.mxu0 0
  %187 = vmatprep.subr.bf16.mxu0 0
  %188 = vmatpush1.bf16.msra.mxu0 0
  %189 = vmatprep.subr.bf16.mxu0 0
  %190 = vmatpush1.bf16.msra.mxu0 0
  %191 = vmatprep.subr.bf16.mxu0 0
  %192 = vmatpush1.bf16.msra.mxu0 0
  %193 = vmatprep.subr.bf16.mxu0 0
  %194 = vmatpush1.bf16.msra.mxu0 0
  %195 = vmatprep.subr.bf16.mxu0 0
  %196 = vmatpush1.bf16.msra.mxu0 0
  %197 = vmatprep.subr.bf16.mxu0 0
  %198 = vmatpush1.bf16.msra.mxu0 0
  %199 = vmatprep.subr.bf16.mxu0 0
  %200 = vmatpush1.bf16.msra.mxu0 0
  %201 = vmatprep.subr.bf16.mxu0 0
  %202 = vmatpush1.bf16.msra.mxu0 0
  %203 = vmatprep.subr.bf16.mxu0 0
  %204 = vmatpush1.bf16.msra.mxu0 0
  %205 = vmatprep.subr.bf16.mxu0 0
  %206 = vmatpush1.bf16.msra.mxu0 0
  %207 = vmatprep.subr.bf16.mxu0 0
  %208 = vmatpush1.bf16.msra.mxu0 0
  %209 = vmatprep.subr.bf16.mxu0 0
  %210 = vmatpush1.bf16.msra.mxu0 0
  %211 = vmatprep.subr.bf16.mxu0 0
  %212 = vmatpush1.bf16.msra.mxu0 0
  %213 = vmatprep.mubr.bf16.mxu0 0
  %214 = vmatmul.mubr.bf16.gmra.mrb[0].mxu0 %v179
  %v215 = vpop.f32.mrb[0].mxu0
  %v216 = vadd.f32 %v162, %v215
  %v217 = vpop.f32.mrb[0].mxu0
  %v218 = vpop.f32.mrb[0].mxu0
  %v219 = vpop.f32.mrb[0].mxu0
  %220 = vdwg.mxu0
  %v223 = vunpack.c.l.s4 1966171168
  %v224 = vunpack.c.0.s8 %v223
  %v225 = vlaneseq
  %v226 = vshrl.u32 %v225, 7
  %v227 = vsub.s32 %v224, %v226
  %v228 = vrot.slane %v216, %v227
  %v229 = vcombine.high %v228, %v228
  %v231 = vunpack.c.l.s4 1966171168
  %v232 = vunpack.c.0.s8 %v231
  %v233 = vlaneseq
  %v234 = vshrl.u32 %v233, 7
  %v235 = vsub.s32 %v232, %v234
  %v236 = vrot.slane %v228, %v235
  %v238 = vunpack.c.l.s4 1966171168
  %v239 = vunpack.c.0.s8 %v238
  %v240 = vlaneseq
  %v241 = vshrl.u32 %v240, 7
  %v242 = vsub.s32 %v239, %v241
  %v243 = vrot.slane %v229, %v242
  %v244 = vlaneseq
  %v245 = vshrl.u32 %v244, 7
  %v246 = vsub.s32 0, %v245
  %v247 = vrot.slane %v236, %v246
  %v248 = vlaneseq
  %v249 = vshrl.u32 %v248, 7
  %v250 = vsub.s32 0, %v249
  %v251 = vrot.slane %v243, %v250
  %v254 = vmul.f32 %v247, %v26
  %v255 = vmul.f32 %v247, %v27
  %v256 = vmul.f32 %v251, %v28
  %v257 = vmul.f32 %v251, %v29
  %v258 = vsel %vm59, %v254, 0.0
  %259 = vadd.xlane.f32.xlu0 %v258
  %v260 = vpop.xlane.xlu0 %259
  %v261 = vsel %vm59, %v255, 0.0
  %262 = vadd.xlane.f32.xlu0 %v261
  %v263 = vpop.xlane.xlu0 %262
  %v264 = vsel %vm59, %v256, 0.0
  %265 = vadd.xlane.f32.xlu0 %v264
  %v266 = vpop.xlane.xlu0 %265
  %v267 = vsel %vm59, %v257, 0.0
  %268 = vadd.xlane.f32.xlu0 %v267
  %v269 = vpop.xlane.xlu0 %268
  %v271 = vlaneseq
  %v272 = vshrl.u32 %v271, 7
  %v273 = vsub.s32 0, %v272
  %v274 = vrot.slane %v32, %v273
  %276 = vbcast.lane.b32.xlu0 %v274, 256
  %v277 = vpop.permute.xlu0 %276
  %s279 = sor.u32 256, 8
  %280 = vbcast.lane.b32.xlu0 %v274, %s279
  %v281 = vpop.permute.xlu0 %280
  %v282 = vlaneseq
  %v283 = vshrl.u32 %v282, 7
  %v284 = vsub.s32 1, %v283
  %v285 = vrot.slane %v32, %v284
  %287 = vbcast.lane.b32.xlu0 %v285, 256
  %v288 = vpop.permute.xlu0 %287
  %s290 = sor.u32 256, 8
  %291 = vbcast.lane.b32.xlu0 %v285, %s290
  %v292 = vpop.permute.xlu0 %291
  %v297 = vsub.f32 %v260, %v277
  %v298 = vsub.f32 %v263, %v281
  %v299 = vsub.f32 %v266, %v288
  %v300 = vsub.f32 %v269, %v292
  %305 = vset.pattern.permute.xlu0 0
  %306 = vperm.xlu0 %305, %v297
  %v307 = vpop.permute.xlu0 %306
  %308 = vset.pattern.permute.xlu0 0
  %309 = vperm.xlu0 %308, %v298
  %v310 = vpop.permute.xlu0 %309
  %311 = vset.pattern.permute.xlu0 0
  %312 = vperm.xlu0 %311, %v299
  %v313 = vpop.permute.xlu0 %312
  %314 = vset.pattern.permute.xlu0 0
  %315 = vperm.xlu0 %314, %v300
  %v316 = vpop.permute.xlu0 %315
  %v317 = vlaneseq
  %v318 = vshrl.u32 %v317, 7
  %v319 = vsub.s32 %v54, %v318
  %v320 = vrot.slane %v307, %v319
  %v321 = vadd.s32 %v54, 4294967288
  %v322 = vlaneseq
  %v323 = vshrl.u32 %v322, 7
  %v324 = vsub.s32 %v321, %v323
  %v325 = vrot.slane %v310, %v324
  %vm326 = vcmask 130112
  %v327 = vsel %vm326, %v325, %v320
  %v328 = vlaneseq
  %v329 = vshrl.u32 %v328, 7
  %v330 = vsub.s32 %v54, %v329
  %v331 = vrot.slane %v313, %v330
  %v332 = vlaneseq
  %v333 = vshrl.u32 %v332, 7
  %v334 = vsub.s32 %v321, %v333
  %v335 = vrot.slane %v316, %v334
  %v336 = vsel %vm326, %v335, %v331
  %vm337 = vcmask 1041409
  %v338 = vsel %vm337, %v336, %v327
  %vm340 = vcmask 123904
  %v341 = vsel %vm340, %v338, -inf
  %342 = vmax.xlane.f32.xlu0 %v341
  %v343 = vpop.xlane.xlu0 %342
  %v345 = vlaneseq
  %v346 = vshrl.u32 %v345, 7
  %v347 = vsub.s32 0, %v346
  %v348 = vrot.slane %v343, %v347
  %v349 = vlaneseq
  %v350 = vshrl.u32 %v349, 7
  %v351 = vsub.s32 1, %v350
  %v352 = vrot.slane %v343, %v351
  %v355 = vsub.f32 %v297, %v348
  %v356 = vsub.f32 %v298, %v348
  %v357 = vsub.f32 %v299, %v352
  %v358 = vsub.f32 %v300, %v352
  %v359 = vmul.f32 %v355, 1.442695
  %v360 = vpow.pop %v359
  %v361 = vmul.f32 %v356, 1.442695
  %v362 = vpow.pop %v361
  %v363 = vmul.f32 %v357, 1.442695
  %v364 = vpow.pop %v363
  %v365 = vmul.f32 %v358, 1.442695
  %v366 = vpow.pop %v365
  %371 = vset.pattern.permute.xlu0 0
  %372 = vperm.xlu0 %371, %v360
  %v373 = vpop.permute.xlu0 %372
  %374 = vset.pattern.permute.xlu0 0
  %375 = vperm.xlu0 %374, %v362
  %v376 = vpop.permute.xlu0 %375
  %377 = vset.pattern.permute.xlu0 0
  %378 = vperm.xlu0 %377, %v364
  %v379 = vpop.permute.xlu0 %378
  %380 = vset.pattern.permute.xlu0 0
  %381 = vperm.xlu0 %380, %v366
  %v382 = vpop.permute.xlu0 %381
  %v383 = vlaneseq
  %v384 = vshrl.u32 %v383, 7
  %v385 = vsub.s32 %v54, %v384
  %v386 = vrot.slane %v373, %v385
  %v387 = vlaneseq
  %v388 = vshrl.u32 %v387, 7
  %v389 = vsub.s32 %v321, %v388
  %v390 = vrot.slane %v376, %v389
  %v391 = vsel %vm326, %v390, %v386
  %v392 = vlaneseq
  %v393 = vshrl.u32 %v392, 7
  %v394 = vsub.s32 %v54, %v393
  %v395 = vrot.slane %v379, %v394
  %v396 = vlaneseq
  %v397 = vshrl.u32 %v396, 7
  %v398 = vsub.s32 %v321, %v397
  %v399 = vrot.slane %v382, %v398
  %v400 = vsel %vm326, %v399, %v395
  %v401 = vsel %vm337, %v400, %v391
  %v403 = vsel %vm340, %v401, 0.0
  %404 = vadd.xlane.f32.xlu0 %v403
  %v405 = vpop.xlane.xlu0 %404
  %v406 = vrcp.pop %v405
  %v408 = vlaneseq
  %v409 = vshrl.u32 %v408, 7
  %v410 = vsub.s32 0, %v409
  %v411 = vrot.slane %v406, %v410
  %v412 = vlaneseq
  %v413 = vshrl.u32 %v412, 7
  %v414 = vsub.s32 1, %v413
  %v415 = vrot.slane %v406, %v414
  %v418 = vmul.f32 %v360, %v411
  %v419 = vmul.f32 %v362, %v411
  %v420 = vmul.f32 %v364, %v415
  %v421 = vmul.f32 %v366, %v415
  %423 = vset.pattern.permute.xlu0 0
  %424 = vperm.xlu0 %423, %v418
  %v425 = vpop.permute.xlu0 %424
  %428 = vset.pattern.permute.xlu0 0
  %429 = vperm.xlu0 %428, %v419
  %v430 = vpop.permute.xlu0 %429
  %433 = vset.pattern.permute.xlu0 0
  %434 = vperm.xlu0 %433, %v420
  %v435 = vpop.permute.xlu0 %434
  %438 = vset.pattern.permute.xlu0 0
  %439 = vperm.xlu0 %438, %v421
  %v440 = vpop.permute.xlu0 %439
  %v442 = vmul.f32 %v425, %v26
  %v443 = vmul.f32 %v430, %v27
  %v444 = vmul.f32 %v435, %v28
  %v445 = vmul.f32 %v440, %v29
  %v446 = vsel %vm59, %v442, 0.0
  %v447 = vsel %vm59, %v443, 0.0
  %v448 = vadd.f32 %v446, %v447
  %v449 = vrot.slane %v448, 4
  %v450 = vadd.f32 %v448, %v449
  %v451 = vrot.slane %v450, 2
  %v452 = vadd.f32 %v450, %v451
  %v453 = vrot.slane %v452, 1
  %v454 = vadd.f32 %v452, %v453
  %v455 = vsel %vm59, %v444, 0.0
  %v456 = vsel %vm59, %v445, 0.0
  %v457 = vadd.f32 %v455, %v456
  %v458 = vrot.slane %v457, 4
  %v459 = vadd.f32 %v457, %v458
  %v460 = vrot.slane %v459, 2
  %v461 = vadd.f32 %v459, %v460
  %v462 = vrot.slane %v461, 1
  %v463 = vadd.f32 %v461, %v462
  %v464 = vpack.c.bf16 %v454, %v454
  %v465 = vpack.c.bf16 %v463, %v463
  %v468 = vunpack.c.l.b16 %v464
  %v469 = vunpack.c.l.b16 %v465
  %v470 = vsel %vm337, %v469, %v468
  %v471 = vpack.c.b16 %v470, %v470
  %v476 = vunpack.c.l.b16 %v48
  %v477 = vunpack.c.l.b16 %v49
  %v478 = vunpack.c.l.b16 %v50
  %v479 = vunpack.c.l.b16 %v51
  %v480 = vpack.c.b16 %v477, %v476
  %v481 = vpack.c.b16 %v479, %v478
  %v485 = vsel %vm59, %v471, 0
  %487 = vmatprep.subr.bf16.mxu0 0
  %488 = vmatpush1.bf16.msra.mxu0 %v480
  %489 = vmatprep.subr.bf16.mxu0 0
  %490 = vmatpush1.bf16.msra.mxu0 %v481
  %491 = vmatprep.subr.bf16.mxu0 0
  %492 = vmatpush1.bf16.msra.mxu0 0
  %493 = vmatprep.subr.bf16.mxu0 0
  %494 = vmatpush1.bf16.msra.mxu0 0
  %495 = vmatprep.subr.bf16.mxu0 0
  %496 = vmatpush1.bf16.msra.mxu0 0
  %497 = vmatprep.subr.bf16.mxu0 0
  %498 = vmatpush1.bf16.msra.mxu0 0
  %499 = vmatprep.subr.bf16.mxu0 0
  %500 = vmatpush1.bf16.msra.mxu0 0
  %501 = vmatprep.subr.bf16.mxu0 0
  %502 = vmatpush1.bf16.msra.mxu0 0
  %503 = vmatprep.subr.bf16.mxu0 0
  %504 = vmatpush1.bf16.msra.mxu0 0
  %505 = vmatprep.subr.bf16.mxu0 0
  %506 = vmatpush1.bf16.msra.mxu0 0
  %507 = vmatprep.subr.bf16.mxu0 0
  %508 = vmatpush1.bf16.msra.mxu0 0
  %509 = vmatprep.subr.bf16.mxu0 0
  %510 = vmatpush1.bf16.msra.mxu0 0
  %511 = vmatprep.subr.bf16.mxu0 0
  %512 = vmatpush1.bf16.msra.mxu0 0
  %513 = vmatprep.subr.bf16.mxu0 0
  %514 = vmatpush1.bf16.msra.mxu0 0
  %515 = vmatprep.subr.bf16.mxu0 0
  %516 = vmatpush1.bf16.msra.mxu0 0
  %517 = vmatprep.subr.bf16.mxu0 0
  %518 = vmatpush1.bf16.msra.mxu0 0
  %519 = vmatprep.mubr.bf16.mxu0 0
  %520 = vmatmul.mubr.bf16.gmra.mrb[0].mxu0 %v485
  %v521 = vpop.f32.mrb[0].mxu0
  %v522 = vadd.f32 0.0, %v521
  %v523 = vpop.f32.mrb[0].mxu0
  %v524 = vpop.f32.mrb[0].mxu0
  %v525 = vpop.f32.mrb[0].mxu0
  %526 = vdwg.mxu0
  %528 = vrot.lane.b32.xlu0 %v522, 32
  %v529 = vpop.permute.xlu0 %528
  %v531 = vadd.f32 %v216, %v529
  %v534 = vunpack.c.l.s4 1966171168
  %v535 = vunpack.c.0.s8 %v534
  %v536 = vlaneseq
  %v537 = vshrl.u32 %v536, 7
  %v538 = vsub.s32 %v535, %v537
  %v539 = vrot.slane %v531, %v538
  %v540 = vcombine.high %v539, %v539
  %v542 = vunpack.c.l.s4 1966171168
  %v543 = vunpack.c.0.s8 %v542
  %v544 = vlaneseq
  %v545 = vshrl.u32 %v544, 7
  %v546 = vsub.s32 %v543, %v545
  %v547 = vrot.slane %v539, %v546
  %v549 = vunpack.c.l.s4 1966171168
  %v550 = vunpack.c.0.s8 %v549
  %v551 = vlaneseq
  %v552 = vshrl.u32 %v551, 7
  %v553 = vsub.s32 %v550, %v552
  %v554 = vrot.slane %v540, %v553
  %v555 = vlaneseq
  %v556 = vshrl.u32 %v555, 7
  %v557 = vsub.s32 0, %v556
  %v558 = vrot.slane %v547, %v557
  %v559 = vlaneseq
  %v560 = vshrl.u32 %v559, 7
  %v561 = vsub.s32 0, %v560
  %v562 = vrot.slane %v554, %v561
  %567 = vrot.lane.b32.xlu0 %v24, 32
  %v568 = vpop.permute.xlu0 %567
  %569 = vrot.lane.b32.xlu0 %v25, 32
  %v570 = vpop.permute.xlu0 %569
  %v573 = vmul.f32 %v558, %v568
  %v574 = vmul.f32 %v562, %v570
  %577 = vrot.lane.b32.xlu0 %v573, 96
  %v578 = vpop.permute.xlu0 %577
  %579 = vrot.lane.b32.xlu0 %v574, 96
  %v580 = vpop.permute.xlu0 %579
  %v583 = vsel %vm59, %v578, 0.0
  %584 = vadd.xlane.f32.xlu0 %v583
  %v585 = vpop.xlane.xlu0 %584
  %v586 = vsel %vm59, %v580, 0.0
  %587 = vadd.xlane.f32.xlu0 %v586
  %v588 = vpop.xlane.xlu0 %587
  %589 = vset.pattern.permute.xlu0 64
  %590 = vperm.xlu0 %589, %v531
  %v591 = vpop.permute.xlu0 %590
  %v593 = vmul.f32 %v591, 0.0
  %v595 = vlaneseq
  %v596 = vshrl.u32 %v595, 7
  %v597 = vsub.s32 0, %v596
  %v598 = vrot.slane %v593, %v597
  %v599 = vlaneseq
  %v600 = vshrl.u32 %v599, 7
  %v601 = vsub.s32 1, %v600
  %v602 = vrot.slane %v593, %v601
  %v605 = vadd.f32 %v585, %v598
  %v606 = vadd.f32 %v588, %v602
  %v608 = vlaneseq
  %v609 = vshrl.u32 %v608, 7
  %v610 = vsub.s32 0, %v609
  %v611 = vrot.slane %v35, %v610
  %613 = vbcast.lane.b32.xlu0 %v611, 256
  %v614 = vpop.permute.xlu0 %613
  %v615 = vlaneseq
  %v616 = vshrl.u32 %v615, 7
  %v617 = vsub.s32 1, %v616
  %v618 = vrot.slane %v35, %v617
  %620 = vbcast.lane.b32.xlu0 %v618, 256
  %v621 = vpop.permute.xlu0 %620
  %v624 = vsub.f32 %v605, %v614
  %v625 = vsub.f32 %v606, %v621
  %628 = vset.pattern.permute.xlu0 0
  %629 = vperm.xlu0 %628, %v624
  %v630 = vpop.permute.xlu0 %629
  %631 = vset.pattern.permute.xlu0 0
  %632 = vperm.xlu0 %631, %v625
  %v633 = vpop.permute.xlu0 %632
  %v634 = vlaneseq
  %v635 = vshrl.u32 %v634, 7
  %v636 = vsub.s32 %v54, %v635
  %v637 = vrot.slane %v630, %v636
  %v638 = vlaneseq
  %v639 = vshrl.u32 %v638, 7
  %v640 = vsub.s32 %v54, %v639
  %v641 = vrot.slane %v633, %v640
  %v642 = vsel %vm337, %v641, %v637
  %vm644 = vcmask 58368
  %v645 = vsel %vm644, %v642, -inf
  %646 = vmax.xlane.f32.xlu0 %v645
  %v647 = vpop.xlane.xlu0 %646
  %v649 = vlaneseq
  %v650 = vshrl.u32 %v649, 7
  %v651 = vsub.s32 0, %v650
  %v652 = vrot.slane %v647, %v651
  %v653 = vlaneseq
  %v654 = vshrl.u32 %v653, 7
  %v655 = vsub.s32 1, %v654
  %v656 = vrot.slane %v647, %v655
  %vm659 = vcmp.ge.f32.partialorder %v624, %v652
  %vm660 = vcmp.ge.f32.partialorder %v625, %v656
  %662 = vbcast.lane.b32.xlu0 %v54, 256
  %v663 = vpop.permute.xlu0 %662
  %v664 = vsel %vm659, %v663, 8
  %v665 = vsel %vm660, %v663, 8
  %666 = vset.pattern.permute.xlu0 0
  %667 = vperm.xlu0 %666, %v664
  %v668 = vpop.permute.xlu0 %667
  %669 = vset.pattern.permute.xlu0 0
  %670 = vperm.xlu0 %669, %v665
  %v671 = vpop.permute.xlu0 %670
  %v672 = vlaneseq
  %v673 = vshrl.u32 %v672, 7
  %v674 = vsub.s32 %v54, %v673
  %v675 = vrot.slane %v668, %v674
  %v676 = vlaneseq
  %v677 = vshrl.u32 %v676, 7
  %v678 = vsub.s32 %v54, %v677
  %v679 = vrot.slane %v671, %v678
  %v680 = vsel %vm337, %v679, %v675
  %v681 = vsel %vm644, %v680, 2147483647
  %v682 = vand.u32 %v681, 65535
  %v683 = vshra.s32 %v681, 16
  %v684 = vcvt.s32.f32 %v682
  %v685 = vcvt.s32.f32 %v683
  %686 = vmin.xlane.f32.xlu0 %v685
  %v687 = vpop.xlane.xlu0 %686
  %vm688 = vcmp.eq.f32.partialorder %v685, %v687
  %v689 = vsel %vm688, %v684, inf
  %690 = vmin.xlane.f32.xlu0 %v689
  %v691 = vpop.xlane.xlu0 %690
  %v692 = vcvt.f32.s32 %v691
  %v693 = vcvt.f32.s32 %v687
  %v694 = vshll.u32 %v693, 16
  %v695 = vadd.s32 %v694, %v692
  %vm696 = vcmp.eq.s32.totalorder %v54, %v695
  %v697 = vsel %vm696, 1, 0
  %v698 = vcvt.s32.f32 %v697
  %v699 = vmax.f32 %v698, 0.0
  %v700 = vlaneseq
  %v701 = vshrl.u32 %v700, 7
  %v702 = vsub.s32 0, %v701
  %v703 = vrot.slane %v698, %v702
  %705 = vbcast.lane.b32.xlu0 %v703, 256
  %v706 = vpop.permute.xlu0 %705
  %v707 = vlaneseq
  %v708 = vshrl.u32 %v707, 7
  %v709 = vsub.s32 1, %v708
  %v710 = vrot.slane %v698, %v709
  %712 = vbcast.lane.b32.xlu0 %v710, 256
  %v713 = vpop.permute.xlu0 %712
  %v714 = vmul.f32 %v706, %v24
  %v715 = vmul.f32 %v713, %v25
  %v716 = vsel %vm59, %v714, 0.0
  %v717 = vrot.slane %v716, 4
  %v718 = vadd.f32 %v716, %v717
  %v719 = vrot.slane %v718, 2
  %v720 = vadd.f32 %v718, %v719
  %v721 = vrot.slane %v720, 1
  %v722 = vadd.f32 %v720, %v721
  %v723 = vsel %vm59, %v715, 0.0
  %v724 = vrot.slane %v723, 4
  %v725 = vadd.f32 %v723, %v724
  %v726 = vrot.slane %v725, 2
  %v727 = vadd.f32 %v725, %v726
  %v728 = vrot.slane %v727, 1
  %v729 = vadd.f32 %v727, %v728
  %v732 = vsel %vm337, %v729, %v722
  %735 = vrot.lane.b32.xlu0 %v157, 64
  %v736 = vpop.permute.xlu0 %735
  %v738 = vsel %vm59, %v732, %v736
  %v739 = vpack.c.bf16 %v738, %v738
  %v741 = vsel %vm90, %v739, 0
  %743 = vmatprep.subr.bf16.mxu0 0
  %744 = vmatpush1.bf16.msra.mxu0 %v82
  %745 = vmatprep.subr.bf16.mxu0 0
  %746 = vmatpush1.bf16.msra.mxu0 %v83
  %747 = vmatprep.subr.bf16.mxu0 0
  %748 = vmatpush1.bf16.msra.mxu0 %v84
  %749 = vmatprep.subr.bf16.mxu0 0
  %750 = vmatpush1.bf16.msra.mxu0 %v85
  %751 = vmatprep.subr.bf16.mxu0 0
  %752 = vmatpush1.bf16.msra.mxu0 0
  %753 = vmatprep.subr.bf16.mxu0 0
  %754 = vmatpush1.bf16.msra.mxu0 0
  %755 = vmatprep.subr.bf16.mxu0 0
  %756 = vmatpush1.bf16.msra.mxu0 0
  %757 = vmatprep.subr.bf16.mxu0 0
  %758 = vmatpush1.bf16.msra.mxu0 0
  %759 = vmatprep.subr.bf16.mxu0 0
  %760 = vmatpush1.bf16.msra.mxu0 0
  %761 = vmatprep.subr.bf16.mxu0 0
  %762 = vmatpush1.bf16.msra.mxu0 0
  %763 = vmatprep.subr.bf16.mxu0 0
  %764 = vmatpush1.bf16.msra.mxu0 0
  %765 = vmatprep.subr.bf16.mxu0 0
  %766 = vmatpush1.bf16.msra.mxu0 0
  %767 = vmatprep.subr.bf16.mxu0 0
  %768 = vmatpush1.bf16.msra.mxu0 0
  %769 = vmatprep.subr.bf16.mxu0 0
  %770 = vmatpush1.bf16.msra.mxu0 0
  %771 = vmatprep.subr.bf16.mxu0 0
  %772 = vmatpush1.bf16.msra.mxu0 0
  %773 = vmatprep.subr.bf16.mxu0 0
  %774 = vmatpush1.bf16.msra.mxu0 0
  %775 = vmatprep.mubr.bf16.mxu0 0
  %776 = vmatmul.mubr.bf16.gmra.mrb[0].mxu0 %v741
  %v777 = vpop.f32.mrb[0].mxu0
  %v778 = vadd.f32 %v65, %v777
  %v779 = vpop.f32.mrb[0].mxu0
  %v780 = vpop.f32.mrb[0].mxu0
  %v781 = vpop.f32.mrb[0].mxu0
  %782 = vdwg.mxu0
  %v783 = vxor.u32 %v778, 2147483648
  %v784 = vmul.f32 %v783, 1.442695
  %v785 = vpow.pop %v784
  %v786 = vadd.f32 %v785, 1.0
  %v787 = vrcp.pop %v786
  %v788 = vmul.f32 1.0, %v787
  %v789 = vtanh.pop %v778
  %v790 = vmul.f32 %v788, %v151
  %792 = vrot.lane.b32.xlu0 %v789, 64
  %v793 = vpop.permute.xlu0 %792
  %v795 = vmul.f32 %v788, %v793
  %797 = vrot.lane.b32.xlu0 %v795, 32
  %v798 = vpop.permute.xlu0 %797
  %v800 = vadd.f32 %v790, %v798
  %v801 = vtanh.pop %v800
  %803 = vrot.lane.b32.xlu0 %v801, 64
  %v804 = vpop.permute.xlu0 %803
  %v806 = vmul.f32 %v788, %v804
  %v807 = vpack.c.bf16 %v806, %v806
  %809 = vrot.lane.b32.xlu0 %v807, 32
  %v810 = vpop.permute.xlu0 %809
  %v812 = vsel %vm59, %v810, 0
  %814 = vmatprep.subr.bf16.mxu0 0
  %815 = vmatpush1.bf16.msra.mxu0 %v174
  %816 = vmatprep.subr.bf16.mxu0 0
  %817 = vmatpush1.bf16.msra.mxu0 %v175
  %818 = vmatprep.subr.bf16.mxu0 0
  %819 = vmatpush1.bf16.msra.mxu0 0
  %820 = vmatprep.subr.bf16.mxu0 0
  %821 = vmatpush1.bf16.msra.mxu0 0
  %822 = vmatprep.subr.bf16.mxu0 0
  %823 = vmatpush1.bf16.msra.mxu0 0
  %824 = vmatprep.subr.bf16.mxu0 0
  %825 = vmatpush1.bf16.msra.mxu0 0
  %826 = vmatprep.subr.bf16.mxu0 0
  %827 = vmatpush1.bf16.msra.mxu0 0
  %828 = vmatprep.subr.bf16.mxu0 0
  %829 = vmatpush1.bf16.msra.mxu0 0
  %830 = vmatprep.subr.bf16.mxu0 0
  %831 = vmatpush1.bf16.msra.mxu0 0
  %832 = vmatprep.subr.bf16.mxu0 0
  %833 = vmatpush1.bf16.msra.mxu0 0
  %834 = vmatprep.subr.bf16.mxu0 0
  %835 = vmatpush1.bf16.msra.mxu0 0
  %836 = vmatprep.subr.bf16.mxu0 0
  %837 = vmatpush1.bf16.msra.mxu0 0
  %838 = vmatprep.subr.bf16.mxu0 0
  %839 = vmatpush1.bf16.msra.mxu0 0
  %840 = vmatprep.subr.bf16.mxu0 0
  %841 = vmatpush1.bf16.msra.mxu0 0
  %842 = vmatprep.subr.bf16.mxu0 0
  %843 = vmatpush1.bf16.msra.mxu0 0
  %844 = vmatprep.subr.bf16.mxu0 0
  %845 = vmatpush1.bf16.msra.mxu0 0
  %846 = vmatprep.mubr.bf16.mxu0 0
  %847 = vmatmul.mubr.bf16.gmra.mrb[0].mxu0 %v812
  %v848 = vpop.f32.mrb[0].mxu0
  %v849 = vadd.f32 %v162, %v848
  %v850 = vpop.f32.mrb[0].mxu0
  %v851 = vpop.f32.mrb[0].mxu0
  %v852 = vpop.f32.mrb[0].mxu0
  %853 = vdwg.mxu0
  %v856 = vunpack.c.l.s4 1966171168
  %v857 = vunpack.c.0.s8 %v856
  %v858 = vlaneseq
  %v859 = vshrl.u32 %v858, 7
  %v860 = vsub.s32 %v857, %v859
  %v861 = vrot.slane %v849, %v860
  %v862 = vcombine.high %v861, %v861
  %v864 = vunpack.c.l.s4 1966171168
  %v865 = vunpack.c.0.s8 %v864
  %v866 = vlaneseq
  %v867 = vshrl.u32 %v866, 7
  %v868 = vsub.s32 %v865, %v867
  %v869 = vrot.slane %v861, %v868
  %v871 = vunpack.c.l.s4 1966171168
  %v872 = vunpack.c.0.s8 %v871
  %v873 = vlaneseq
  %v874 = vshrl.u32 %v873, 7
  %v875 = vsub.s32 %v872, %v874
  %v876 = vrot.slane %v862, %v875
  %v877 = vlaneseq
  %v878 = vshrl.u32 %v877, 7
  %v879 = vsub.s32 0, %v878
  %v880 = vrot.slane %v869, %v879
  %v881 = vlaneseq
  %v882 = vshrl.u32 %v881, 7
  %v883 = vsub.s32 0, %v882
  %v884 = vrot.slane %v876, %v883
  %v887 = vmul.f32 %v880, %v26
  %v888 = vmul.f32 %v880, %v27
  %v889 = vmul.f32 %v884, %v28
  %v890 = vmul.f32 %v884, %v29
  %v891 = vsel %vm59, %v887, 0.0
  %892 = vadd.xlane.f32.xlu0 %v891
  %v893 = vpop.xlane.xlu0 %892
  %v894 = vsel %vm59, %v888, 0.0
  %895 = vadd.xlane.f32.xlu0 %v894
  %v896 = vpop.xlane.xlu0 %895
  %v897 = vsel %vm59, %v889, 0.0
  %898 = vadd.xlane.f32.xlu0 %v897
  %v899 = vpop.xlane.xlu0 %898
  %v900 = vsel %vm59, %v890, 0.0
  %901 = vadd.xlane.f32.xlu0 %v900
  %v902 = vpop.xlane.xlu0 %901
  %v903 = vsub.f32 %v893, %v277
  %v904 = vsub.f32 %v896, %v281
  %v905 = vsub.f32 %v899, %v288
  %v906 = vsub.f32 %v902, %v292
  %911 = vset.pattern.permute.xlu0 0
  %912 = vperm.xlu0 %911, %v903
  %v913 = vpop.permute.xlu0 %912
  %914 = vset.pattern.permute.xlu0 0
  %915 = vperm.xlu0 %914, %v904
  %v916 = vpop.permute.xlu0 %915
  %917 = vset.pattern.permute.xlu0 0
  %918 = vperm.xlu0 %917, %v905
  %v919 = vpop.permute.xlu0 %918
  %920 = vset.pattern.permute.xlu0 0
  %921 = vperm.xlu0 %920, %v906
  %v922 = vpop.permute.xlu0 %921
  %v923 = vlaneseq
  %v924 = vshrl.u32 %v923, 7
  %v925 = vsub.s32 %v54, %v924
  %v926 = vrot.slane %v913, %v925
  %v927 = vlaneseq
  %v928 = vshrl.u32 %v927, 7
  %v929 = vsub.s32 %v321, %v928
  %v930 = vrot.slane %v916, %v929
  %v931 = vsel %vm326, %v930, %v926
  %v932 = vlaneseq
  %v933 = vshrl.u32 %v932, 7
  %v934 = vsub.s32 %v54, %v933
  %v935 = vrot.slane %v919, %v934
  %v936 = vlaneseq
  %v937 = vshrl.u32 %v936, 7
  %v938 = vsub.s32 %v321, %v937
  %v939 = vrot.slane %v922, %v938
  %v940 = vsel %vm326, %v939, %v935
  %v941 = vsel %vm337, %v940, %v931
  %v943 = vsel %vm340, %v941, -inf
  %944 = vmax.xlane.f32.xlu0 %v943
  %v945 = vpop.xlane.xlu0 %944
  %v947 = vlaneseq
  %v948 = vshrl.u32 %v947, 7
  %v949 = vsub.s32 0, %v948
  %v950 = vrot.slane %v945, %v949
  %v951 = vlaneseq
  %v952 = vshrl.u32 %v951, 7
  %v953 = vsub.s32 1, %v952
  %v954 = vrot.slane %v945, %v953
  %v957 = vsub.f32 %v903, %v950
  %v958 = vsub.f32 %v904, %v950
  %v959 = vsub.f32 %v905, %v954
  %v960 = vsub.f32 %v906, %v954
  %v961 = vmul.f32 %v957, 1.442695
  %v962 = vpow.pop %v961
  %v963 = vmul.f32 %v958, 1.442695
  %v964 = vpow.pop %v963
  %v965 = vmul.f32 %v959, 1.442695
  %v966 = vpow.pop %v965
  %v967 = vmul.f32 %v960, 1.442695
  %v968 = vpow.pop %v967
  %973 = vset.pattern.permute.xlu0 0
  %974 = vperm.xlu0 %973, %v962
  %v975 = vpop.permute.xlu0 %974
  %976 = vset.pattern.permute.xlu0 0
  %977 = vperm.xlu0 %976, %v964
  %v978 = vpop.permute.xlu0 %977
  %979 = vset.pattern.permute.xlu0 0
  %980 = vperm.xlu0 %979, %v966
  %v981 = vpop.permute.xlu0 %980
  %982 = vset.pattern.permute.xlu0 0
  %983 = vperm.xlu0 %982, %v968
  %v984 = vpop.permute.xlu0 %983
  %v985 = vlaneseq
  %v986 = vshrl.u32 %v985, 7
  %v987 = vsub.s32 %v54, %v986
  %v988 = vrot.slane %v975, %v987
  %v989 = vlaneseq
  %v990 = vshrl.u32 %v989, 7
  %v991 = vsub.s32 %v321, %v990
  %v992 = vrot.slane %v978, %v991
  %v993 = vsel %vm326, %v992, %v988
  %v994 = vlaneseq
  %v995 = vshrl.u32 %v994, 7
  %v996 = vsub.s32 %v54, %v995
  %v997 = vrot.slane %v981, %v996
  %v998 = vlaneseq
  %v999 = vshrl.u32 %v998, 7
  %v1000 = vsub.s32 %v321, %v999
  %v1001 = vrot.slane %v984, %v1000
  %v1002 = vsel %vm326, %v1001, %v997
  %v1003 = vsel %vm337, %v1002, %v993
  %v1005 = vsel %vm340, %v1003, 0.0
  %1006 = vadd.xlane.f32.xlu0 %v1005
  %v1007 = vpop.xlane.xlu0 %1006
  %v1008 = vrcp.pop %v1007
  %v1010 = vlaneseq
  %v1011 = vshrl.u32 %v1010, 7
  %v1012 = vsub.s32 0, %v1011
  %v1013 = vrot.slane %v1008, %v1012
  %v1014 = vlaneseq
  %v1015 = vshrl.u32 %v1014, 7
  %v1016 = vsub.s32 1, %v1015
  %v1017 = vrot.slane %v1008, %v1016
  %v1020 = vmul.f32 %v962, %v1013
  %v1021 = vmul.f32 %v964, %v1013
  %v1022 = vmul.f32 %v966, %v1017
  %v1023 = vmul.f32 %v968, %v1017
  %1025 = vset.pattern.permute.xlu0 0
  %1026 = vperm.xlu0 %1025, %v1020
  %v1027 = vpop.permute.xlu0 %1026
  %1030 = vset.pattern.permute.xlu0 0
  %1031 = vperm.xlu0 %1030, %v1021
  %v1032 = vpop.permute.xlu0 %1031
  %1035 = vset.pattern.permute.xlu0 0
  %1036 = vperm.xlu0 %1035, %v1022
  %v1037 = vpop.permute.xlu0 %1036
  %1040 = vset.pattern.permute.xlu0 0
  %1041 = vperm.xlu0 %1040, %v1023
  %v1042 = vpop.permute.xlu0 %1041
  %v1044 = vmul.f32 %v1027, %v26
  %v1045 = vmul.f32 %v1032, %v27
  %v1046 = vmul.f32 %v1037, %v28
  %v1047 = vmul.f32 %v1042, %v29
  %v1048 = vsel %vm59, %v1044, 0.0
  %v1049 = vsel %vm59, %v1045, 0.0
  %v1050 = vadd.f32 %v1048, %v1049
  %v1051 = vrot.slane %v1050, 4
  %v1052 = vadd.f32 %v1050, %v1051
  %v1053 = vrot.slane %v1052, 2
  %v1054 = vadd.f32 %v1052, %v1053
  %v1055 = vrot.slane %v1054, 1
  %v1056 = vadd.f32 %v1054, %v1055
  %v1057 = vsel %vm59, %v1046, 0.0
  %v1058 = vsel %vm59, %v1047, 0.0
  %v1059 = vadd.f32 %v1057, %v1058
  %v1060 = vrot.slane %v1059, 4
  %v1061 = vadd.f32 %v1059, %v1060
  %v1062 = vrot.slane %v1061, 2
  %v1063 = vadd.f32 %v1061, %v1062
  %v1064 = vrot.slane %v1063, 1
  %v1065 = vadd.f32 %v1063, %v1064
  %v1066 = vpack.c.bf16 %v1056, %v1056
  %v1067 = vpack.c.bf16 %v1065, %v1065
  %v1070 = vunpack.c.l.b16 %v1066
  %v1071 = vunpack.c.l.b16 %v1067
  %v1072 = vsel %vm337, %v1071, %v1070
  %v1073 = vpack.c.b16 %v1072, %v1072
  %v1075 = vsel %vm59, %v1073, 0
  %1077 = vmatprep.subr.bf16.mxu0 0
  %1078 = vmatpush1.bf16.msra.mxu0 %v480
  %1079 = vmatprep.subr.bf16.mxu0 0
  %1080 = vmatpush1.bf16.msra.mxu0 %v481
  %1081 = vmatprep.subr.bf16.mxu0 0
  %1082 = vmatpush1.bf16.msra.mxu0 0
  %1083 = vmatprep.subr.bf16.mxu0 0
  %1084 = vmatpush1.bf16.msra.mxu0 0
  %1085 = vmatprep.subr.bf16.mxu0 0
  %1086 = vmatpush1.bf16.msra.mxu0 0
  %1087 = vmatprep.subr.bf16.mxu0 0
  %1088 = vmatpush1.bf16.msra.mxu0 0
  %1089 = vmatprep.subr.bf16.mxu0 0
  %1090 = vmatpush1.bf16.msra.mxu0 0
  %1091 = vmatprep.subr.bf16.mxu0 0
  %1092 = vmatpush1.bf16.msra.mxu0 0
  %1093 = vmatprep.subr.bf16.mxu0 0
  %1094 = vmatpush1.bf16.msra.mxu0 0
  %1095 = vmatprep.subr.bf16.mxu0 0
  %1096 = vmatpush1.bf16.msra.mxu0 0
  %1097 = vmatprep.subr.bf16.mxu0 0
  %1098 = vmatpush1.bf16.msra.mxu0 0
  %1099 = vmatprep.subr.bf16.mxu0 0
  %1100 = vmatpush1.bf16.msra.mxu0 0
  %1101 = vmatprep.subr.bf16.mxu0 0
  %1102 = vmatpush1.bf16.msra.mxu0 0
  %1103 = vmatprep.subr.bf16.mxu0 0
  %1104 = vmatpush1.bf16.msra.mxu0 0
  %1105 = vmatprep.subr.bf16.mxu0 0
  %1106 = vmatpush1.bf16.msra.mxu0 0
  %1107 = vmatprep.subr.bf16.mxu0 0
  %1108 = vmatpush1.bf16.msra.mxu0 0
  %1109 = vmatprep.mubr.bf16.mxu0 0
  %1110 = vmatmul.mubr.bf16.gmra.mrb[0].mxu0 %v1075
  %v1111 = vpop.f32.mrb[0].mxu0
  %v1112 = vadd.f32 0.0, %v1111
  %v1113 = vpop.f32.mrb[0].mxu0
  %v1114 = vpop.f32.mrb[0].mxu0
  %v1115 = vpop.f32.mrb[0].mxu0
  %1116 = vdwg.mxu0
  %1118 = vrot.lane.b32.xlu0 %v1112, 32
  %v1119 = vpop.permute.xlu0 %1118
  %v1121 = vadd.f32 %v849, %v1119
  %v1124 = vunpack.c.l.s4 1966171168
  %v1125 = vunpack.c.0.s8 %v1124
  %v1126 = vlaneseq
  %v1127 = vshrl.u32 %v1126, 7
  %v1128 = vsub.s32 %v1125, %v1127
  %v1129 = vrot.slane %v1121, %v1128
  %v1130 = vcombine.high %v1129, %v1129
  %v1132 = vunpack.c.l.s4 1966171168
  %v1133 = vunpack.c.0.s8 %v1132
  %v1134 = vlaneseq
  %v1135 = vshrl.u32 %v1134, 7
  %v1136 = vsub.s32 %v1133, %v1135
  %v1137 = vrot.slane %v1129, %v1136
  %v1139 = vunpack.c.l.s4 1966171168
  %v1140 = vunpack.c.0.s8 %v1139
  %v1141 = vlaneseq
  %v1142 = vshrl.u32 %v1141, 7
  %v1143 = vsub.s32 %v1140, %v1142
  %v1144 = vrot.slane %v1130, %v1143
  %v1145 = vlaneseq
  %v1146 = vshrl.u32 %v1145, 7
  %v1147 = vsub.s32 0, %v1146
  %v1148 = vrot.slane %v1137, %v1147
  %v1149 = vlaneseq
  %v1150 = vshrl.u32 %v1149, 7
  %v1151 = vsub.s32 0, %v1150
  %v1152 = vrot.slane %v1144, %v1151
  %v1155 = vmul.f32 %v1148, %v568
  %v1156 = vmul.f32 %v1152, %v570
  %1159 = vrot.lane.b32.xlu0 %v1155, 96
  %v1160 = vpop.permute.xlu0 %1159
  %1161 = vrot.lane.b32.xlu0 %v1156, 96
  %v1162 = vpop.permute.xlu0 %1161
  %v1165 = vsel %vm59, %v1160, 0.0
  %1166 = vadd.xlane.f32.xlu0 %v1165
  %v1167 = vpop.xlane.xlu0 %1166
  %v1168 = vsel %vm59, %v1162, 0.0
  %1169 = vadd.xlane.f32.xlu0 %v1168
  %v1170 = vpop.xlane.xlu0 %1169
  %1171 = vset.pattern.permute.xlu0 64
  %1172 = vperm.xlu0 %1171, %v1121
  %v1173 = vpop.permute.xlu0 %1172
  %v1175 = vmul.f32 %v699, %v1173
  %v1177 = vlaneseq
  %v1178 = vshrl.u32 %v1177, 7
  %v1179 = vsub.s32 0, %v1178
  %v1180 = vrot.slane %v1175, %v1179
  %1182 = vbcast.lane.b32.xlu0 %v1180, 256
  %v1183 = vpop.permute.xlu0 %1182
  %v1184 = vlaneseq
  %v1185 = vshrl.u32 %v1184, 7
  %v1186 = vsub.s32 1, %v1185
  %v1187 = vrot.slane %v1175, %v1186
  %1189 = vbcast.lane.b32.xlu0 %v1187, 256
  %v1190 = vpop.permute.xlu0 %1189
  %v1193 = vadd.f32 %v1167, %v1183
  %v1194 = vadd.f32 %v1170, %v1190
  %v1195 = vsub.f32 %v1193, %v614
  %v1196 = vsub.f32 %v1194, %v621
  %1199 = vset.pattern.permute.xlu0 0
  %1200 = vperm.xlu0 %1199, %v1195
  %v1201 = vpop.permute.xlu0 %1200
  %1202 = vset.pattern.permute.xlu0 0
  %1203 = vperm.xlu0 %1202, %v1196
  %v1204 = vpop.permute.xlu0 %1203
  %v1205 = vlaneseq
  %v1206 = vshrl.u32 %v1205, 7
  %v1207 = vsub.s32 %v54, %v1206
  %v1208 = vrot.slane %v1201, %v1207
  %v1209 = vlaneseq
  %v1210 = vshrl.u32 %v1209, 7
  %v1211 = vsub.s32 %v54, %v1210
  %v1212 = vrot.slane %v1204, %v1211
  %v1213 = vsel %vm337, %v1212, %v1208
  %v1215 = vsel %vm644, %v1213, -inf
  %1216 = vmax.xlane.f32.xlu0 %v1215
  %v1217 = vpop.xlane.xlu0 %1216
  %v1219 = vlaneseq
  %v1220 = vshrl.u32 %v1219, 7
  %v1221 = vsub.s32 0, %v1220
  %v1222 = vrot.slane %v1217, %v1221
  %v1223 = vlaneseq
  %v1224 = vshrl.u32 %v1223, 7
  %v1225 = vsub.s32 1, %v1224
  %v1226 = vrot.slane %v1217, %v1225
  %vm1229 = vcmp.ge.f32.partialorder %v1195, %v1222
  %vm1230 = vcmp.ge.f32.partialorder %v1196, %v1226
  %v1231 = vsel %vm1229, %v663, 8
  %v1232 = vsel %vm1230, %v663, 8
  %1233 = vset.pattern.permute.xlu0 0
  %1234 = vperm.xlu0 %1233, %v1231
  %v1235 = vpop.permute.xlu0 %1234
  %1236 = vset.pattern.permute.xlu0 0
  %1237 = vperm.xlu0 %1236, %v1232
  %v1238 = vpop.permute.xlu0 %1237
  %v1239 = vlaneseq
  %v1240 = vshrl.u32 %v1239, 7
  %v1241 = vsub.s32 %v54, %v1240
  %v1242 = vrot.slane %v1235, %v1241
  %v1243 = vlaneseq
  %v1244 = vshrl.u32 %v1243, 7
  %v1245 = vsub.s32 %v54, %v1244
  %v1246 = vrot.slane %v1238, %v1245
  %v1247 = vsel %vm337, %v1246, %v1242
  %v1248 = vsel %vm644, %v1247, 2147483647
  %v1249 = vand.u32 %v1248, 65535
  %v1250 = vshra.s32 %v1248, 16
  %v1251 = vcvt.s32.f32 %v1249
  %v1252 = vcvt.s32.f32 %v1250
  %1253 = vmin.xlane.f32.xlu0 %v1252
  %v1254 = vpop.xlane.xlu0 %1253
  %vm1255 = vcmp.eq.f32.partialorder %v1252, %v1254
  %v1256 = vsel %vm1255, %v1251, inf
  %1257 = vmin.xlane.f32.xlu0 %v1256
  %v1258 = vpop.xlane.xlu0 %1257
  %v1259 = vcvt.f32.s32 %v1258
  %v1260 = vcvt.f32.s32 %v1254
  %v1261 = vshll.u32 %v1260, 16
  %v1262 = vadd.s32 %v1261, %v1259
  %vm1263 = vcmp.eq.s32.totalorder %v54, %v1262
  %v1264 = vsel %vm1263, 1, 0
  %v1265 = vcvt.s32.f32 %v1264
  %v1266 = vmax.f32 %v699, %v1265
  %v1267 = vlaneseq
  %v1268 = vshrl.u32 %v1267, 7
  %v1269 = vsub.s32 0, %v1268
  %v1270 = vrot.slane %v1265, %v1269
  %1272 = vbcast.lane.b32.xlu0 %v1270, 256
  %v1273 = vpop.permute.xlu0 %1272
  %v1274 = vlaneseq
  %v1275 = vshrl.u32 %v1274, 7
  %v1276 = vsub.s32 1, %v1275
  %v1277 = vrot.slane %v1265, %v1276
  %1279 = vbcast.lane.b32.xlu0 %v1277, 256
  %v1280 = vpop.permute.xlu0 %1279
  %v1281 = vmul.f32 %v1273, %v24
  %v1282 = vmul.f32 %v1280, %v25
  %v1283 = vsel %vm59, %v1281, 0.0
  %v1284 = vrot.slane %v1283, 4
  %v1285 = vadd.f32 %v1283, %v1284
  %v1286 = vrot.slane %v1285, 2
  %v1287 = vadd.f32 %v1285, %v1286
  %v1288 = vrot.slane %v1287, 1
  %v1289 = vadd.f32 %v1287, %v1288
  %v1290 = vsel %vm59, %v1282, 0.0
  %v1291 = vrot.slane %v1290, 4
  %v1292 = vadd.f32 %v1290, %v1291
  %v1293 = vrot.slane %v1292, 2
  %v1294 = vadd.f32 %v1292, %v1293
  %v1295 = vrot.slane %v1294, 1
  %v1296 = vadd.f32 %v1294, %v1295
  %v1299 = vsel %vm337, %v1296, %v1289
  %1302 = vrot.lane.b32.xlu0 %v806, 64
  %v1303 = vpop.permute.xlu0 %1302
  %v1305 = vsel %vm59, %v1299, %v1303
  %v1306 = vpack.c.bf16 %v1305, %v1305
  %v1308 = vsel %vm90, %v1306, 0
  %1310 = vmatprep.subr.bf16.mxu0 0
  %1311 = vmatpush1.bf16.msra.mxu0 %v82
  %1312 = vmatprep.subr.bf16.mxu0 0
  %1313 = vmatpush1.bf16.msra.mxu0 %v83
  %1314 = vmatprep.subr.bf16.mxu0 0
  %1315 = vmatpush1.bf16.msra.mxu0 %v84
  %1316 = vmatprep.subr.bf16.mxu0 0
  %1317 = vmatpush1.bf16.msra.mxu0 %v85
  %1318 = vmatprep.subr.bf16.mxu0 0
  %1319 = vmatpush1.bf16.msra.mxu0 0
  %1320 = vmatprep.subr.bf16.mxu0 0
  %1321 = vmatpush1.bf16.msra.mxu0 0
  %1322 = vmatprep.subr.bf16.mxu0 0
  %1323 = vmatpush1.bf16.msra.mxu0 0
  %1324 = vmatprep.subr.bf16.mxu0 0
  %1325 = vmatpush1.bf16.msra.mxu0 0
  %1326 = vmatprep.subr.bf16.mxu0 0
  %1327 = vmatpush1.bf16.msra.mxu0 0
  %1328 = vmatprep.subr.bf16.mxu0 0
  %1329 = vmatpush1.bf16.msra.mxu0 0
  %1330 = vmatprep.subr.bf16.mxu0 0
  %1331 = vmatpush1.bf16.msra.mxu0 0
  %1332 = vmatprep.subr.bf16.mxu0 0
  %1333 = vmatpush1.bf16.msra.mxu0 0
  %1334 = vmatprep.subr.bf16.mxu0 0
  %1335 = vmatpush1.bf16.msra.mxu0 0
  %1336 = vmatprep.subr.bf16.mxu0 0
  %1337 = vmatpush1.bf16.msra.mxu0 0
  %1338 = vmatprep.subr.bf16.mxu0 0
  %1339 = vmatpush1.bf16.msra.mxu0 0
  %1340 = vmatprep.subr.bf16.mxu0 0
  %1341 = vmatpush1.bf16.msra.mxu0 0
  %1342 = vmatprep.mubr.bf16.mxu0 0
  %1343 = vmatmul.mubr.bf16.gmra.mrb[0].mxu0 %v1308
  %v1344 = vpop.f32.mrb[0].mxu0
  %v1345 = vadd.f32 %v65, %v1344
  %v1346 = vpop.f32.mrb[0].mxu0
  %v1347 = vpop.f32.mrb[0].mxu0
  %v1348 = vpop.f32.mrb[0].mxu0
  %1349 = vdwg.mxu0
  %v1350 = vxor.u32 %v1345, 2147483648
  %v1351 = vmul.f32 %v1350, 1.442695
  %v1352 = vpow.pop %v1351
  %v1353 = vadd.f32 %v1352, 1.0
  %v1354 = vrcp.pop %v1353
  %v1355 = vmul.f32 1.0, %v1354
  %v1356 = vtanh.pop %v1345
  %v1357 = vmul.f32 %v1355, %v800
  %1359 = vrot.lane.b32.xlu0 %v1356, 64
  %v1360 = vpop.permute.xlu0 %1359
  %v1362 = vmul.f32 %v1355, %v1360
  %1364 = vrot.lane.b32.xlu0 %v1362, 32
  %v1365 = vpop.permute.xlu0 %1364
  %v1367 = vadd.f32 %v1357, %v1365
  %v1368 = vtanh.pop %v1367
  %1370 = vrot.lane.b32.xlu0 %v1368, 64
  %v1371 = vpop.permute.xlu0 %1370
  %v1373 = vmul.f32 %v1355, %v1371
  %v1374 = vpack.c.bf16 %v1373, %v1373
  %1376 = vrot.lane.b32.xlu0 %v1374, 32
  %v1377 = vpop.permute.xlu0 %1376
  %v1379 = vsel %vm59, %v1377, 0
  %1381 = vmatprep.subr.bf16.mxu0 0
  %1382 = vmatpush1.bf16.msra.mxu0 %v174
  %1383 = vmatprep.subr.bf16.mxu0 0
  %1384 = vmatpush1.bf16.msra.mxu0 %v175
  %1385 = vmatprep.subr.bf16.mxu0 0
  %1386 = vmatpush1.bf16.msra.mxu0 0
  %1387 = vmatprep.subr.bf16.mxu0 0
  %1388 = vmatpush1.bf16.msra.mxu0 0
  %1389 = vmatprep.subr.bf16.mxu0 0
  %1390 = vmatpush1.bf16.msra.mxu0 0
  %1391 = vmatprep.subr.bf16.mxu0 0
  %1392 = vmatpush1.bf16.msra.mxu0 0
  %1393 = vmatprep.subr.bf16.mxu0 0
  %1394 = vmatpush1.bf16.msra.mxu0 0
  %1395 = vmatprep.subr.bf16.mxu0 0
  %1396 = vmatpush1.bf16.msra.mxu0 0
  %1397 = vmatprep.subr.bf16.mxu0 0
  %1398 = vmatpush1.bf16.msra.mxu0 0
  %1399 = vmatprep.subr.bf16.mxu0 0
  %1400 = vmatpush1.bf16.msra.mxu0 0
  %1401 = vmatprep.subr.bf16.mxu0 0
  %1402 = vmatpush1.bf16.msra.mxu0 0
  %1403 = vmatprep.subr.bf16.mxu0 0
  %1404 = vmatpush1.bf16.msra.mxu0 0
  %1405 = vmatprep.subr.bf16.mxu0 0
  %1406 = vmatpush1.bf16.msra.mxu0 0
  %1407 = vmatprep.subr.bf16.mxu0 0
  %1408 = vmatpush1.bf16.msra.mxu0 0
  %1409 = vmatprep.subr.bf16.mxu0 0
  %1410 = vmatpush1.bf16.msra.mxu0 0
  %1411 = vmatprep.subr.bf16.mxu0 0
  %1412 = vmatpush1.bf16.msra.mxu0 0
  %1413 = vmatprep.mubr.bf16.mxu0 0
  %1414 = vmatmul.mubr.bf16.gmra.mrb[0].mxu0 %v1379
  %v1415 = vpop.f32.mrb[0].mxu0
  %v1416 = vadd.f32 %v162, %v1415
  %v1417 = vpop.f32.mrb[0].mxu0
  %v1418 = vpop.f32.mrb[0].mxu0
  %v1419 = vpop.f32.mrb[0].mxu0
  %1420 = vdwg.mxu0
  %v1423 = vunpack.c.l.s4 1966171168
  %v1424 = vunpack.c.0.s8 %v1423
  %v1425 = vlaneseq
  %v1426 = vshrl.u32 %v1425, 7
  %v1427 = vsub.s32 %v1424, %v1426
  %v1428 = vrot.slane %v1416, %v1427
  %v1429 = vcombine.high %v1428, %v1428
  %v1431 = vunpack.c.l.s4 1966171168
  %v1432 = vunpack.c.0.s8 %v1431
  %v1433 = vlaneseq
  %v1434 = vshrl.u32 %v1433, 7
  %v1435 = vsub.s32 %v1432, %v1434
  %v1436 = vrot.slane %v1428, %v1435
  %v1438 = vunpack.c.l.s4 1966171168
  %v1439 = vunpack.c.0.s8 %v1438
  %v1440 = vlaneseq
  %v1441 = vshrl.u32 %v1440, 7
  %v1442 = vsub.s32 %v1439, %v1441
  %v1443 = vrot.slane %v1429, %v1442
  %v1444 = vlaneseq
  %v1445 = vshrl.u32 %v1444, 7
  %v1446 = vsub.s32 0, %v1445
  %v1447 = vrot.slane %v1436, %v1446
  %v1448 = vlaneseq
  %v1449 = vshrl.u32 %v1448, 7
  %v1450 = vsub.s32 0, %v1449
  %v1451 = vrot.slane %v1443, %v1450
  %v1454 = vmul.f32 %v1447, %v26
  %v1455 = vmul.f32 %v1447, %v27
  %v1456 = vmul.f32 %v1451, %v28
  %v1457 = vmul.f32 %v1451, %v29
  %v1458 = vsel %vm59, %v1454, 0.0
  %1459 = vadd.xlane.f32.xlu0 %v1458
  %v1460 = vpop.xlane.xlu0 %1459
  %v1461 = vsel %vm59, %v1455, 0.0
  %1462 = vadd.xlane.f32.xlu0 %v1461
  %v1463 = vpop.xlane.xlu0 %1462
  %v1464 = vsel %vm59, %v1456, 0.0
  %1465 = vadd.xlane.f32.xlu0 %v1464
  %v1466 = vpop.xlane.xlu0 %1465
  %v1467 = vsel %vm59, %v1457, 0.0
  %1468 = vadd.xlane.f32.xlu0 %v1467
  %v1469 = vpop.xlane.xlu0 %1468
  %v1470 = vsub.f32 %v1460, %v277
  %v1471 = vsub.f32 %v1463, %v281
  %v1472 = vsub.f32 %v1466, %v288
  %v1473 = vsub.f32 %v1469, %v292
  %1478 = vset.pattern.permute.xlu0 0
  %1479 = vperm.xlu0 %1478, %v1470
  %v1480 = vpop.permute.xlu0 %1479
  %1481 = vset.pattern.permute.xlu0 0
  %1482 = vperm.xlu0 %1481, %v1471
  %v1483 = vpop.permute.xlu0 %1482
  %1484 = vset.pattern.permute.xlu0 0
  %1485 = vperm.xlu0 %1484, %v1472
  %v1486 = vpop.permute.xlu0 %1485
  %1487 = vset.pattern.permute.xlu0 0
  %1488 = vperm.xlu0 %1487, %v1473
  %v1489 = vpop.permute.xlu0 %1488
  %v1490 = vlaneseq
  %v1491 = vshrl.u32 %v1490, 7
  %v1492 = vsub.s32 %v54, %v1491
  %v1493 = vrot.slane %v1480, %v1492
  %v1494 = vlaneseq
  %v1495 = vshrl.u32 %v1494, 7
  %v1496 = vsub.s32 %v321, %v1495
  %v1497 = vrot.slane %v1483, %v1496
  %v1498 = vsel %vm326, %v1497, %v1493
  %v1499 = vlaneseq
  %v1500 = vshrl.u32 %v1499, 7
  %v1501 = vsub.s32 %v54, %v1500
  %v1502 = vrot.slane %v1486, %v1501
  %v1503 = vlaneseq
  %v1504 = vshrl.u32 %v1503, 7
  %v1505 = vsub.s32 %v321, %v1504
  %v1506 = vrot.slane %v1489, %v1505
  %v1507 = vsel %vm326, %v1506, %v1502
  %v1508 = vsel %vm337, %v1507, %v1498
  %v1510 = vsel %vm340, %v1508, -inf
  %1511 = vmax.xlane.f32.xlu0 %v1510
  %v1512 = vpop.xlane.xlu0 %1511
  %v1514 = vlaneseq
  %v1515 = vshrl.u32 %v1514, 7
  %v1516 = vsub.s32 0, %v1515
  %v1517 = vrot.slane %v1512, %v1516
  %v1518 = vlaneseq
  %v1519 = vshrl.u32 %v1518, 7
  %v1520 = vsub.s32 1, %v1519
  %v1521 = vrot.slane %v1512, %v1520
  %v1524 = vsub.f32 %v1470, %v1517
  %v1525 = vsub.f32 %v1471, %v1517
  %v1526 = vsub.f32 %v1472, %v1521
  %v1527 = vsub.f32 %v1473, %v1521
  %v1528 = vmul.f32 %v1524, 1.442695
  %v1529 = vpow.pop %v1528
  %v1530 = vmul.f32 %v1525, 1.442695
  %v1531 = vpow.pop %v1530
  %v1532 = vmul.f32 %v1526, 1.442695
  %v1533 = vpow.pop %v1532
  %v1534 = vmul.f32 %v1527, 1.442695
  %v1535 = vpow.pop %v1534
  %1540 = vset.pattern.permute.xlu0 0
  %1541 = vperm.xlu0 %1540, %v1529
  %v1542 = vpop.permute.xlu0 %1541
  %1543 = vset.pattern.permute.xlu0 0
  %1544 = vperm.xlu0 %1543, %v1531
  %v1545 = vpop.permute.xlu0 %1544
  %1546 = vset.pattern.permute.xlu0 0
  %1547 = vperm.xlu0 %1546, %v1533
  %v1548 = vpop.permute.xlu0 %1547
  %1549 = vset.pattern.permute.xlu0 0
  %1550 = vperm.xlu0 %1549, %v1535
  %v1551 = vpop.permute.xlu0 %1550
  %v1552 = vlaneseq
  %v1553 = vshrl.u32 %v1552, 7
  %v1554 = vsub.s32 %v54, %v1553
  %v1555 = vrot.slane %v1542, %v1554
  %v1556 = vlaneseq
  %v1557 = vshrl.u32 %v1556, 7
  %v1558 = vsub.s32 %v321, %v1557
  %v1559 = vrot.slane %v1545, %v1558
  %v1560 = vsel %vm326, %v1559, %v1555
  %v1561 = vlaneseq
  %v1562 = vshrl.u32 %v1561, 7
  %v1563 = vsub.s32 %v54, %v1562
  %v1564 = vrot.slane %v1548, %v1563
  %v1565 = vlaneseq
  %v1566 = vshrl.u32 %v1565, 7
  %v1567 = vsub.s32 %v321, %v1566
  %v1568 = vrot.slane %v1551, %v1567
  %v1569 = vsel %vm326, %v1568, %v1564
  %v1570 = vsel %vm337, %v1569, %v1560
  %v1572 = vsel %vm340, %v1570, 0.0
  %1573 = vadd.xlane.f32.xlu0 %v1572
  %v1574 = vpop.xlane.xlu0 %1573
  %v1575 = vrcp.pop %v1574
  %v1577 = vlaneseq
  %v1578 = vshrl.u32 %v1577, 7
  %v1579 = vsub.s32 0, %v1578
  %v1580 = vrot.slane %v1575, %v1579
  %v1581 = vlaneseq
  %v1582 = vshrl.u32 %v1581, 7
  %v1583 = vsub.s32 1, %v1582
  %v1584 = vrot.slane %v1575, %v1583
  %v1587 = vmul.f32 %v1529, %v1580
  %v1588 = vmul.f32 %v1531, %v1580
  %v1589 = vmul.f32 %v1533, %v1584
  %v1590 = vmul.f32 %v1535, %v1584
  %1592 = vset.pattern.permute.xlu0 0
  %1593 = vperm.xlu0 %1592, %v1587
  %v1594 = vpop.permute.xlu0 %1593
  %1597 = vset.pattern.permute.xlu0 0
  %1598 = vperm.xlu0 %1597, %v1588
  %v1599 = vpop.permute.xlu0 %1598
  %1602 = vset.pattern.permute.xlu0 0
  %1603 = vperm.xlu0 %1602, %v1589
  %v1604 = vpop.permute.xlu0 %1603
  %1607 = vset.pattern.permute.xlu0 0
  %1608 = vperm.xlu0 %1607, %v1590
  %v1609 = vpop.permute.xlu0 %1608
  %v1611 = vmul.f32 %v1594, %v26
  %v1612 = vmul.f32 %v1599, %v27
  %v1613 = vmul.f32 %v1604, %v28
  %v1614 = vmul.f32 %v1609, %v29
  %v1615 = vsel %vm59, %v1611, 0.0
  %v1616 = vsel %vm59, %v1612, 0.0
  %v1617 = vadd.f32 %v1615, %v1616
  %v1618 = vrot.slane %v1617, 4
  %v1619 = vadd.f32 %v1617, %v1618
  %v1620 = vrot.slane %v1619, 2
  %v1621 = vadd.f32 %v1619, %v1620
  %v1622 = vrot.slane %v1621, 1
  %v1623 = vadd.f32 %v1621, %v1622
  %v1624 = vsel %vm59, %v1613, 0.0
  %v1625 = vsel %vm59, %v1614, 0.0
  %v1626 = vadd.f32 %v1624, %v1625
  %v1627 = vrot.slane %v1626, 4
  %v1628 = vadd.f32 %v1626, %v1627
  %v1629 = vrot.slane %v1628, 2
  %v1630 = vadd.f32 %v1628, %v1629
  %v1631 = vrot.slane %v1630, 1
  %v1632 = vadd.f32 %v1630, %v1631
  %v1633 = vpack.c.bf16 %v1623, %v1623
  %v1634 = vpack.c.bf16 %v1632, %v1632
  %v1637 = vunpack.c.l.b16 %v1633
  %v1638 = vunpack.c.l.b16 %v1634
  %v1639 = vsel %vm337, %v1638, %v1637
  %v1640 = vpack.c.b16 %v1639, %v1639
  %v1642 = vsel %vm59, %v1640, 0
  %1644 = vmatprep.subr.bf16.mxu0 0
  %1645 = vmatpush1.bf16.msra.mxu0 %v480
  %1646 = vmatprep.subr.bf16.mxu0 0
  %1647 = vmatpush1.bf16.msra.mxu0 %v481
  %1648 = vmatprep.subr.bf16.mxu0 0
  %1649 = vmatpush1.bf16.msra.mxu0 0
  %1650 = vmatprep.subr.bf16.mxu0 0
  %1651 = vmatpush1.bf16.msra.mxu0 0
  %1652 = vmatprep.subr.bf16.mxu0 0
  %1653 = vmatpush1.bf16.msra.mxu0 0
  %1654 = vmatprep.subr.bf16.mxu0 0
  %1655 = vmatpush1.bf16.msra.mxu0 0
  %1656 = vmatprep.subr.bf16.mxu0 0
  %1657 = vmatpush1.bf16.msra.mxu0 0
  %1658 = vmatprep.subr.bf16.mxu0 0
  %1659 = vmatpush1.bf16.msra.mxu0 0
  %1660 = vmatprep.subr.bf16.mxu0 0
  %1661 = vmatpush1.bf16.msra.mxu0 0
  %1662 = vmatprep.subr.bf16.mxu0 0
  %1663 = vmatpush1.bf16.msra.mxu0 0
  %1664 = vmatprep.subr.bf16.mxu0 0
  %1665 = vmatpush1.bf16.msra.mxu0 0
  %1666 = vmatprep.subr.bf16.mxu0 0
  %1667 = vmatpush1.bf16.msra.mxu0 0
  %1668 = vmatprep.subr.bf16.mxu0 0
  %1669 = vmatpush1.bf16.msra.mxu0 0
  %1670 = vmatprep.subr.bf16.mxu0 0
  %1671 = vmatpush1.bf16.msra.mxu0 0
  %1672 = vmatprep.subr.bf16.mxu0 0
  %1673 = vmatpush1.bf16.msra.mxu0 0
  %1674 = vmatprep.subr.bf16.mxu0 0
  %1675 = vmatpush1.bf16.msra.mxu0 0
  %1676 = vmatprep.mubr.bf16.mxu0 0
  %1677 = vmatmul.mubr.bf16.gmra.mrb[0].mxu0 %v1642
  %v1678 = vpop.f32.mrb[0].mxu0
  %v1679 = vadd.f32 0.0, %v1678
  %v1680 = vpop.f32.mrb[0].mxu0
  %v1681 = vpop.f32.mrb[0].mxu0
  %v1682 = vpop.f32.mrb[0].mxu0
  %1683 = vdwg.mxu0
  %1685 = vrot.lane.b32.xlu0 %v1679, 32
  %v1686 = vpop.permute.xlu0 %1685
  %v1688 = vadd.f32 %v1416, %v1686
  %v1691 = vunpack.c.l.s4 1966171168
  %v1692 = vunpack.c.0.s8 %v1691
  %v1693 = vlaneseq
  %v1694 = vshrl.u32 %v1693, 7
  %v1695 = vsub.s32 %v1692, %v1694
  %v1696 = vrot.slane %v1688, %v1695
  %v1697 = vcombine.high %v1696, %v1696
  %v1699 = vunpack.c.l.s4 1966171168
  %v1700 = vunpack.c.0.s8 %v1699
  %v1701 = vlaneseq
  %v1702 = vshrl.u32 %v1701, 7
  %v1703 = vsub.s32 %v1700, %v1702
  %v1704 = vrot.slane %v1696, %v1703
  %v1706 = vunpack.c.l.s4 1966171168
  %v1707 = vunpack.c.0.s8 %v1706
  %v1708 = vlaneseq
  %v1709 = vshrl.u32 %v1708, 7
  %v1710 = vsub.s32 %v1707, %v1709
  %v1711 = vrot.slane %v1697, %v1710
  %v1712 = vlaneseq
  %v1713 = vshrl.u32 %v1712, 7
  %v1714 = vsub.s32 0, %v1713
  %v1715 = vrot.slane %v1704, %v1714
  %v1716 = vlaneseq
  %v1717 = vshrl.u32 %v1716, 7
  %v1718 = vsub.s32 0, %v1717
  %v1719 = vrot.slane %v1711, %v1718
  %v1722 = vmul.f32 %v1715, %v568
  %v1723 = vmul.f32 %v1719, %v570
  %1726 = vrot.lane.b32.xlu0 %v1722, 96
  %v1727 = vpop.permute.xlu0 %1726
  %1728 = vrot.lane.b32.xlu0 %v1723, 96
  %v1729 = vpop.permute.xlu0 %1728
  %v1732 = vsel %vm59, %v1727, 0.0
  %1733 = vadd.xlane.f32.xlu0 %v1732
  %v1734 = vpop.xlane.xlu0 %1733
  %v1735 = vsel %vm59, %v1729, 0.0
  %1736 = vadd.xlane.f32.xlu0 %v1735
  %v1737 = vpop.xlane.xlu0 %1736
  %1738 = vset.pattern.permute.xlu0 64
  %1739 = vperm.xlu0 %1738, %v1688
  %v1740 = vpop.permute.xlu0 %1739
  %v1742 = vmul.f32 %v1266, %v1740
  %v1744 = vlaneseq
  %v1745 = vshrl.u32 %v1744, 7
  %v1746 = vsub.s32 0, %v1745
  %v1747 = vrot.slane %v1742, %v1746
  %1749 = vbcast.lane.b32.xlu0 %v1747, 256
  %v1750 = vpop.permute.xlu0 %1749
  %v1751 = vlaneseq
  %v1752 = vshrl.u32 %v1751, 7
  %v1753 = vsub.s32 1, %v1752
  %v1754 = vrot.slane %v1742, %v1753
  %1756 = vbcast.lane.b32.xlu0 %v1754, 256
  %v1757 = vpop.permute.xlu0 %1756
  %v1760 = vadd.f32 %v1734, %v1750
  %v1761 = vadd.f32 %v1737, %v1757
  %v1762 = vsub.f32 %v1760, %v614
  %v1763 = vsub.f32 %v1761, %v621
  %1766 = vset.pattern.permute.xlu0 0
  %1767 = vperm.xlu0 %1766, %v1762
  %v1768 = vpop.permute.xlu0 %1767
  %1769 = vset.pattern.permute.xlu0 0
  %1770 = vperm.xlu0 %1769, %v1763
  %v1771 = vpop.permute.xlu0 %1770
  %v1772 = vlaneseq
  %v1773 = vshrl.u32 %v1772, 7
  %v1774 = vsub.s32 %v54, %v1773
  %v1775 = vrot.slane %v1768, %v1774
  %v1776 = vlaneseq
  %v1777 = vshrl.u32 %v1776, 7
  %v1778 = vsub.s32 %v54, %v1777
  %v1779 = vrot.slane %v1771, %v1778
  %v1780 = vsel %vm337, %v1779, %v1775
  %v1782 = vsel %vm644, %v1780, -inf
  %1783 = vmax.xlane.f32.xlu0 %v1782
  %v1784 = vpop.xlane.xlu0 %1783
  %v1786 = vlaneseq
  %v1787 = vshrl.u32 %v1786, 7
  %v1788 = vsub.s32 0, %v1787
  %v1789 = vrot.slane %v1784, %v1788
  %v1790 = vlaneseq
  %v1791 = vshrl.u32 %v1790, 7
  %v1792 = vsub.s32 1, %v1791
  %v1793 = vrot.slane %v1784, %v1792
  %vm1796 = vcmp.ge.f32.partialorder %v1762, %v1789
  %vm1797 = vcmp.ge.f32.partialorder %v1763, %v1793
  %v1798 = vsel %vm1796, %v663, 8
  %v1799 = vsel %vm1797, %v663, 8
  %1800 = vset.pattern.permute.xlu0 0
  %1801 = vperm.xlu0 %1800, %v1798
  %v1802 = vpop.permute.xlu0 %1801
  %1803 = vset.pattern.permute.xlu0 0
  %1804 = vperm.xlu0 %1803, %v1799
  %v1805 = vpop.permute.xlu0 %1804
  %v1806 = vlaneseq
  %v1807 = vshrl.u32 %v1806, 7
  %v1808 = vsub.s32 %v54, %v1807
  %v1809 = vrot.slane %v1802, %v1808
  %v1810 = vlaneseq
  %v1811 = vshrl.u32 %v1810, 7
  %v1812 = vsub.s32 %v54, %v1811
  %v1813 = vrot.slane %v1805, %v1812
  %v1814 = vsel %vm337, %v1813, %v1809
  %v1815 = vsel %vm644, %v1814, 2147483647
  %v1816 = vand.u32 %v1815, 65535
  %v1817 = vshra.s32 %v1815, 16
  %v1818 = vcvt.s32.f32 %v1816
  %v1819 = vcvt.s32.f32 %v1817
  %1820 = vmin.xlane.f32.xlu0 %v1819
  %v1821 = vpop.xlane.xlu0 %1820
  %vm1822 = vcmp.eq.f32.partialorder %v1819, %v1821
  %v1823 = vsel %vm1822, %v1818, inf
  %1824 = vmin.xlane.f32.xlu0 %v1823
  %v1825 = vpop.xlane.xlu0 %1824
  %v1826 = vcvt.f32.s32 %v1825
  %v1827 = vcvt.f32.s32 %v1821
  %v1828 = vshll.u32 %v1827, 16
  %v1829 = vadd.s32 %v1828, %v1826
  %vm1830 = vcmp.eq.s32.totalorder %v54, %v1829
  %v1831 = vsel %vm1830, 1, 0
  %v1832 = vcvt.s32.f32 %v1831
  %v1833 = vmax.f32 %v1266, %v1832
  %v1834 = vlaneseq
  %v1835 = vshrl.u32 %v1834, 7
  %v1836 = vsub.s32 0, %v1835
  %v1837 = vrot.slane %v1832, %v1836
  %1839 = vbcast.lane.b32.xlu0 %v1837, 256
  %v1840 = vpop.permute.xlu0 %1839
  %v1841 = vlaneseq
  %v1842 = vshrl.u32 %v1841, 7
  %v1843 = vsub.s32 1, %v1842
  %v1844 = vrot.slane %v1832, %v1843
  %1846 = vbcast.lane.b32.xlu0 %v1844, 256
  %v1847 = vpop.permute.xlu0 %1846
  %v1848 = vmul.f32 %v1840, %v24
  %v1849 = vmul.f32 %v1847, %v25
  %v1850 = vsel %vm59, %v1848, 0.0
  %v1851 = vrot.slane %v1850, 4
  %v1852 = vadd.f32 %v1850, %v1851
  %v1853 = vrot.slane %v1852, 2
  %v1854 = vadd.f32 %v1852, %v1853
  %v1855 = vrot.slane %v1854, 1
  %v1856 = vadd.f32 %v1854, %v1855
  %v1857 = vsel %vm59, %v1849, 0.0
  %v1858 = vrot.slane %v1857, 4
  %v1859 = vadd.f32 %v1857, %v1858
  %v1860 = vrot.slane %v1859, 2
  %v1861 = vadd.f32 %v1859, %v1860
  %v1862 = vrot.slane %v1861, 1
  %v1863 = vadd.f32 %v1861, %v1862
  %v1866 = vsel %vm337, %v1863, %v1856
  %1869 = vrot.lane.b32.xlu0 %v1373, 64
  %v1870 = vpop.permute.xlu0 %1869
  %v1872 = vsel %vm59, %v1866, %v1870
  %v1873 = vpack.c.bf16 %v1872, %v1872
  %v1875 = vsel %vm90, %v1873, 0
  %1877 = vmatprep.subr.bf16.mxu0 0
  %1878 = vmatpush1.bf16.msra.mxu0 %v82
  %1879 = vmatprep.subr.bf16.mxu0 0
  %1880 = vmatpush1.bf16.msra.mxu0 %v83
  %1881 = vmatprep.subr.bf16.mxu0 0
  %1882 = vmatpush1.bf16.msra.mxu0 %v84
  %1883 = vmatprep.subr.bf16.mxu0 0
  %1884 = vmatpush1.bf16.msra.mxu0 %v85
  %1885 = vmatprep.subr.bf16.mxu0 0
  %1886 = vmatpush1.bf16.msra.mxu0 0
  %1887 = vmatprep.subr.bf16.mxu0 0
  %1888 = vmatpush1.bf16.msra.mxu0 0
  %1889 = vmatprep.subr.bf16.mxu0 0
  %1890 = vmatpush1.bf16.msra.mxu0 0
  %1891 = vmatprep.subr.bf16.mxu0 0
  %1892 = vmatpush1.bf16.msra.mxu0 0
  %1893 = vmatprep.subr.bf16.mxu0 0
  %1894 = vmatpush1.bf16.msra.mxu0 0
  %1895 = vmatprep.subr.bf16.mxu0 0
  %1896 = vmatpush1.bf16.msra.mxu0 0
  %1897 = vmatprep.subr.bf16.mxu0 0
  %1898 = vmatpush1.bf16.msra.mxu0 0
  %1899 = vmatprep.subr.bf16.mxu0 0
  %1900 = vmatpush1.bf16.msra.mxu0 0
  %1901 = vmatprep.subr.bf16.mxu0 0
  %1902 = vmatpush1.bf16.msra.mxu0 0
  %1903 = vmatprep.subr.bf16.mxu0 0
  %1904 = vmatpush1.bf16.msra.mxu0 0
  %1905 = vmatprep.subr.bf16.mxu0 0
  %1906 = vmatpush1.bf16.msra.mxu0 0
  %1907 = vmatprep.subr.bf16.mxu0 0
  %1908 = vmatpush1.bf16.msra.mxu0 0
  %1909 = vmatprep.mubr.bf16.mxu0 0
  %1910 = vmatmul.mubr.bf16.gmra.mrb[0].mxu0 %v1875
  %v1911 = vpop.f32.mrb[0].mxu0
  %v1912 = vadd.f32 %v65, %v1911
  %v1913 = vpop.f32.mrb[0].mxu0
  %v1914 = vpop.f32.mrb[0].mxu0
  %v1915 = vpop.f32.mrb[0].mxu0
  %1916 = vdwg.mxu0
  %v1917 = vxor.u32 %v1912, 2147483648
  %v1918 = vmul.f32 %v1917, 1.442695
  %v1919 = vpow.pop %v1918
  %v1920 = vadd.f32 %v1919, 1.0
  %v1921 = vrcp.pop %v1920
  %v1922 = vmul.f32 1.0, %v1921
  %v1923 = vtanh.pop %v1912
  %v1924 = vmul.f32 %v1922, %v1367
  %1926 = vrot.lane.b32.xlu0 %v1923, 64
  %v1927 = vpop.permute.xlu0 %1926
  %v1929 = vmul.f32 %v1922, %v1927
  %1931 = vrot.lane.b32.xlu0 %v1929, 32
  %v1932 = vpop.permute.xlu0 %1931
  %v1934 = vadd.f32 %v1924, %v1932
  %v1935 = vtanh.pop %v1934
  %1937 = vrot.lane.b32.xlu0 %v1935, 64
  %v1938 = vpop.permute.xlu0 %1937
  %v1940 = vmul.f32 %v1922, %v1938
  %v1941 = vpack.c.bf16 %v1940, %v1940
  %1943 = vrot.lane.b32.xlu0 %v1941, 32
  %v1944 = vpop.permute.xlu0 %1943
  %v1946 = vsel %vm59, %v1944, 0
  %1948 = vmatprep.subr.bf16.mxu0 0
  %1949 = vmatpush1.bf16.msra.mxu0 %v174
  %1950 = vmatprep.subr.bf16.mxu0 0
  %1951 = vmatpush1.bf16.msra.mxu0 %v175
  %1952 = vmatprep.subr.bf16.mxu0 0
  %1953 = vmatpush1.bf16.msra.mxu0 0
  %1954 = vmatprep.subr.bf16.mxu0 0
  %1955 = vmatpush1.bf16.msra.mxu0 0
  %1956 = vmatprep.subr.bf16.mxu0 0
  %1957 = vmatpush1.bf16.msra.mxu0 0
  %1958 = vmatprep.subr.bf16.mxu0 0
  %1959 = vmatpush1.bf16.msra.mxu0 0
  %1960 = vmatprep.subr.bf16.mxu0 0
  %1961 = vmatpush1.bf16.msra.mxu0 0
  %1962 = vmatprep.subr.bf16.mxu0 0
  %1963 = vmatpush1.bf16.msra.mxu0 0
  %1964 = vmatprep.subr.bf16.mxu0 0
  %1965 = vmatpush1.bf16.msra.mxu0 0
  %1966 = vmatprep.subr.bf16.mxu0 0
  %1967 = vmatpush1.bf16.msra.mxu0 0
  %1968 = vmatprep.subr.bf16.mxu0 0
  %1969 = vmatpush1.bf16.msra.mxu0 0
  %1970 = vmatprep.subr.bf16.mxu0 0
  %1971 = vmatpush1.bf16.msra.mxu0 0
  %1972 = vmatprep.subr.bf16.mxu0 0
  %1973 = vmatpush1.bf16.msra.mxu0 0
  %1974 = vmatprep.subr.bf16.mxu0 0
  %1975 = vmatpush1.bf16.msra.mxu0 0
  %1976 = vmatprep.subr.bf16.mxu0 0
  %1977 = vmatpush1.bf16.msra.mxu0 0
  %1978 = vmatprep.subr.bf16.mxu0 0
  %1979 = vmatpush1.bf16.msra.mxu0 0
  %1980 = vmatprep.mubr.bf16.mxu0 0
  %1981 = vmatmul.mubr.bf16.gmra.mrb[0].mxu0 %v1946
  %v1982 = vpop.f32.mrb[0].mxu0
  %v1983 = vadd.f32 %v162, %v1982
  %v1984 = vpop.f32.mrb[0].mxu0
  %v1985 = vpop.f32.mrb[0].mxu0
  %v1986 = vpop.f32.mrb[0].mxu0
  %1987 = vdwg.mxu0
  %v1990 = vunpack.c.l.s4 1966171168
  %v1991 = vunpack.c.0.s8 %v1990
  %v1992 = vlaneseq
  %v1993 = vshrl.u32 %v1992, 7
  %v1994 = vsub.s32 %v1991, %v1993
  %v1995 = vrot.slane %v1983, %v1994
  %v1996 = vcombine.high %v1995, %v1995
  %v1998 = vunpack.c.l.s4 1966171168
  %v1999 = vunpack.c.0.s8 %v1998
  %v2000 = vlaneseq
  %v2001 = vshrl.u32 %v2000, 7
  %v2002 = vsub.s32 %v1999, %v2001
  %v2003 = vrot.slane %v1995, %v2002
  %v2005 = vunpack.c.l.s4 1966171168
  %v2006 = vunpack.c.0.s8 %v2005
  %v2007 = vlaneseq
  %v2008 = vshrl.u32 %v2007, 7
  %v2009 = vsub.s32 %v2006, %v2008
  %v2010 = vrot.slane %v1996, %v2009
  %v2011 = vlaneseq
  %v2012 = vshrl.u32 %v2011, 7
  %v2013 = vsub.s32 0, %v2012
  %v2014 = vrot.slane %v2003, %v2013
  %v2015 = vlaneseq
  %v2016 = vshrl.u32 %v2015, 7
  %v2017 = vsub.s32 0, %v2016
  %v2018 = vrot.slane %v2010, %v2017
  %v2021 = vmul.f32 %v2014, %v26
  %v2022 = vmul.f32 %v2014, %v27
  %v2023 = vmul.f32 %v2018, %v28
  %v2024 = vmul.f32 %v2018, %v29
  %v2025 = vsel %vm59, %v2021, 0.0
  %2026 = vadd.xlane.f32.xlu0 %v2025
  %v2027 = vpop.xlane.xlu0 %2026
  %v2028 = vsel %vm59, %v2022, 0.0
  %2029 = vadd.xlane.f32.xlu0 %v2028
  %v2030 = vpop.xlane.xlu0 %2029
  %v2031 = vsel %vm59, %v2023, 0.0
  %2032 = vadd.xlane.f32.xlu0 %v2031
  %v2033 = vpop.xlane.xlu0 %2032
  %v2034 = vsel %vm59, %v2024, 0.0
  %2035 = vadd.xlane.f32.xlu0 %v2034
  %v2036 = vpop.xlane.xlu0 %2035
  %v2037 = vsub.f32 %v2027, %v277
  %v2038 = vsub.f32 %v2030, %v281
  %v2039 = vsub.f32 %v2033, %v288
  %v2040 = vsub.f32 %v2036, %v292
  %2045 = vset.pattern.permute.xlu0 0
  %2046 = vperm.xlu0 %2045, %v2037
  %v2047 = vpop.permute.xlu0 %2046
  %2048 = vset.pattern.permute.xlu0 0
  %2049 = vperm.xlu0 %2048, %v2038
  %v2050 = vpop.permute.xlu0 %2049
  %2051 = vset.pattern.permute.xlu0 0
  %2052 = vperm.xlu0 %2051, %v2039
  %v2053 = vpop.permute.xlu0 %2052
  %2054 = vset.pattern.permute.xlu0 0
  %2055 = vperm.xlu0 %2054, %v2040
  %v2056 = vpop.permute.xlu0 %2055
  %v2057 = vlaneseq
  %v2058 = vshrl.u32 %v2057, 7
  %v2059 = vsub.s32 %v54, %v2058
  %v2060 = vrot.slane %v2047, %v2059
  %v2061 = vlaneseq
  %v2062 = vshrl.u32 %v2061, 7
  %v2063 = vsub.s32 %v321, %v2062
  %v2064 = vrot.slane %v2050, %v2063
  %v2065 = vsel %vm326, %v2064, %v2060
  %v2066 = vlaneseq
  %v2067 = vshrl.u32 %v2066, 7
  %v2068 = vsub.s32 %v54, %v2067
  %v2069 = vrot.slane %v2053, %v2068
  %v2070 = vlaneseq
  %v2071 = vshrl.u32 %v2070, 7
  %v2072 = vsub.s32 %v321, %v2071
  %v2073 = vrot.slane %v2056, %v2072
  %v2074 = vsel %vm326, %v2073, %v2069
  %v2075 = vsel %vm337, %v2074, %v2065
  %v2077 = vsel %vm340, %v2075, -inf
  %2078 = vmax.xlane.f32.xlu0 %v2077
  %v2079 = vpop.xlane.xlu0 %2078
  %v2081 = vlaneseq
  %v2082 = vshrl.u32 %v2081, 7
  %v2083 = vsub.s32 0, %v2082
  %v2084 = vrot.slane %v2079, %v2083
  %v2085 = vlaneseq
  %v2086 = vshrl.u32 %v2085, 7
  %v2087 = vsub.s32 1, %v2086
  %v2088 = vrot.slane %v2079, %v2087
  %v2091 = vsub.f32 %v2037, %v2084
  %v2092 = vsub.f32 %v2038, %v2084
  %v2093 = vsub.f32 %v2039, %v2088
  %v2094 = vsub.f32 %v2040, %v2088
  %v2095 = vmul.f32 %v2091, 1.442695
  %v2096 = vpow.pop %v2095
  %v2097 = vmul.f32 %v2092, 1.442695
  %v2098 = vpow.pop %v2097
  %v2099 = vmul.f32 %v2093, 1.442695
  %v2100 = vpow.pop %v2099
  %v2101 = vmul.f32 %v2094, 1.442695
  %v2102 = vpow.pop %v2101
  %2107 = vset.pattern.permute.xlu0 0
  %2108 = vperm.xlu0 %2107, %v2096
  %v2109 = vpop.permute.xlu0 %2108
  %2110 = vset.pattern.permute.xlu0 0
  %2111 = vperm.xlu0 %2110, %v2098
  %v2112 = vpop.permute.xlu0 %2111
  %2113 = vset.pattern.permute.xlu0 0
  %2114 = vperm.xlu0 %2113, %v2100
  %v2115 = vpop.permute.xlu0 %2114
  %2116 = vset.pattern.permute.xlu0 0
  %2117 = vperm.xlu0 %2116, %v2102
  %v2118 = vpop.permute.xlu0 %2117
  %v2119 = vlaneseq
  %v2120 = vshrl.u32 %v2119, 7
  %v2121 = vsub.s32 %v54, %v2120
  %v2122 = vrot.slane %v2109, %v2121
  %v2123 = vlaneseq
  %v2124 = vshrl.u32 %v2123, 7
  %v2125 = vsub.s32 %v321, %v2124
  %v2126 = vrot.slane %v2112, %v2125
  %v2127 = vsel %vm326, %v2126, %v2122
  %v2128 = vlaneseq
  %v2129 = vshrl.u32 %v2128, 7
  %v2130 = vsub.s32 %v54, %v2129
  %v2131 = vrot.slane %v2115, %v2130
  %v2132 = vlaneseq
  %v2133 = vshrl.u32 %v2132, 7
  %v2134 = vsub.s32 %v321, %v2133
  %v2135 = vrot.slane %v2118, %v2134
  %v2136 = vsel %vm326, %v2135, %v2131
  %v2137 = vsel %vm337, %v2136, %v2127
  %v2139 = vsel %vm340, %v2137, 0.0
  %2140 = vadd.xlane.f32.xlu0 %v2139
  %v2141 = vpop.xlane.xlu0 %2140
  %v2142 = vrcp.pop %v2141
  %v2144 = vlaneseq
  %v2145 = vshrl.u32 %v2144, 7
  %v2146 = vsub.s32 0, %v2145
  %v2147 = vrot.slane %v2142, %v2146
  %v2148 = vlaneseq
  %v2149 = vshrl.u32 %v2148, 7
  %v2150 = vsub.s32 1, %v2149
  %v2151 = vrot.slane %v2142, %v2150
  %v2154 = vmul.f32 %v2096, %v2147
  %v2155 = vmul.f32 %v2098, %v2147
  %v2156 = vmul.f32 %v2100, %v2151
  %v2157 = vmul.f32 %v2102, %v2151
  %2159 = vset.pattern.permute.xlu0 0
  %2160 = vperm.xlu0 %2159, %v2154
  %v2161 = vpop.permute.xlu0 %2160
  %2164 = vset.pattern.permute.xlu0 0
  %2165 = vperm.xlu0 %2164, %v2155
  %v2166 = vpop.permute.xlu0 %2165
  %2169 = vset.pattern.permute.xlu0 0
  %2170 = vperm.xlu0 %2169, %v2156
  %v2171 = vpop.permute.xlu0 %2170
  %2174 = vset.pattern.permute.xlu0 0
  %2175 = vperm.xlu0 %2174, %v2157
  %v2176 = vpop.permute.xlu0 %2175
  %v2178 = vmul.f32 %v2161, %v26
  %v2179 = vmul.f32 %v2166, %v27
  %v2180 = vmul.f32 %v2171, %v28
  %v2181 = vmul.f32 %v2176, %v29
  %v2182 = vsel %vm59, %v2178, 0.0
  %v2183 = vsel %vm59, %v2179, 0.0
  %v2184 = vadd.f32 %v2182, %v2183
  %v2185 = vrot.slane %v2184, 4
  %v2186 = vadd.f32 %v2184, %v2185
  %v2187 = vrot.slane %v2186, 2
  %v2188 = vadd.f32 %v2186, %v2187
  %v2189 = vrot.slane %v2188, 1
  %v2190 = vadd.f32 %v2188, %v2189
  %v2191 = vsel %vm59, %v2180, 0.0
  %v2192 = vsel %vm59, %v2181, 0.0
  %v2193 = vadd.f32 %v2191, %v2192
  %v2194 = vrot.slane %v2193, 4
  %v2195 = vadd.f32 %v2193, %v2194
  %v2196 = vrot.slane %v2195, 2
  %v2197 = vadd.f32 %v2195, %v2196
  %v2198 = vrot.slane %v2197, 1
  %v2199 = vadd.f32 %v2197, %v2198
  %v2200 = vpack.c.bf16 %v2190, %v2190
  %v2201 = vpack.c.bf16 %v2199, %v2199
  %v2204 = vunpack.c.l.b16 %v2200
  %v2205 = vunpack.c.l.b16 %v2201
  %v2206 = vsel %vm337, %v2205, %v2204
  %v2207 = vpack.c.b16 %v2206, %v2206
  %v2209 = vsel %vm59, %v2207, 0
  %2211 = vmatprep.subr.bf16.mxu0 0
  %2212 = vmatpush1.bf16.msra.mxu0 %v480
  %2213 = vmatprep.subr.bf16.mxu0 0
  %2214 = vmatpush1.bf16.msra.mxu0 %v481
  %2215 = vmatprep.subr.bf16.mxu0 0
  %2216 = vmatpush1.bf16.msra.mxu0 0
  %2217 = vmatprep.subr.bf16.mxu0 0
  %2218 = vmatpush1.bf16.msra.mxu0 0
  %2219 = vmatprep.subr.bf16.mxu0 0
  %2220 = vmatpush1.bf16.msra.mxu0 0
  %2221 = vmatprep.subr.bf16.mxu0 0
  %2222 = vmatpush1.bf16.msra.mxu0 0
  %2223 = vmatprep.subr.bf16.mxu0 0
  %2224 = vmatpush1.bf16.msra.mxu0 0
  %2225 = vmatprep.subr.bf16.mxu0 0
  %2226 = vmatpush1.bf16.msra.mxu0 0
  %2227 = vmatprep.subr.bf16.mxu0 0
  %2228 = vmatpush1.bf16.msra.mxu0 0
  %2229 = vmatprep.subr.bf16.mxu0 0
  %2230 = vmatpush1.bf16.msra.mxu0 0
  %2231 = vmatprep.subr.bf16.mxu0 0
  %2232 = vmatpush1.bf16.msra.mxu0 0
  %2233 = vmatprep.subr.bf16.mxu0 0
  %2234 = vmatpush1.bf16.msra.mxu0 0
  %2235 = vmatprep.subr.bf16.mxu0 0
  %2236 = vmatpush1.bf16.msra.mxu0 0
  %2237 = vmatprep.subr.bf16.mxu0 0
  %2238 = vmatpush1.bf16.msra.mxu0 0
  %2239 = vmatprep.subr.bf16.mxu0 0
  %2240 = vmatpush1.bf16.msra.mxu0 0
  %2241 = vmatprep.subr.bf16.mxu0 0
  %2242 = vmatpush1.bf16.msra.mxu0 0
  %2243 = vmatprep.mubr.bf16.mxu0 0
  %2244 = vmatmul.mubr.bf16.gmra.mrb[0].mxu0 %v2209
  %v2245 = vpop.f32.mrb[0].mxu0
  %v2246 = vadd.f32 0.0, %v2245
  %v2247 = vpop.f32.mrb[0].mxu0
  %v2248 = vpop.f32.mrb[0].mxu0
  %v2249 = vpop.f32.mrb[0].mxu0
  %2250 = vdwg.mxu0
  %2252 = vrot.lane.b32.xlu0 %v2246, 32
  %v2253 = vpop.permute.xlu0 %2252
  %v2255 = vadd.f32 %v1983, %v2253
  %v2258 = vunpack.c.l.s4 1966171168
  %v2259 = vunpack.c.0.s8 %v2258
  %v2260 = vlaneseq
  %v2261 = vshrl.u32 %v2260, 7
  %v2262 = vsub.s32 %v2259, %v2261
  %v2263 = vrot.slane %v2255, %v2262
  %v2264 = vcombine.high %v2263, %v2263
  %v2266 = vunpack.c.l.s4 1966171168
  %v2267 = vunpack.c.0.s8 %v2266
  %v2268 = vlaneseq
  %v2269 = vshrl.u32 %v2268, 7
  %v2270 = vsub.s32 %v2267, %v2269
  %v2271 = vrot.slane %v2263, %v2270
  %v2273 = vunpack.c.l.s4 1966171168
  %v2274 = vunpack.c.0.s8 %v2273
  %v2275 = vlaneseq
  %v2276 = vshrl.u32 %v2275, 7
  %v2277 = vsub.s32 %v2274, %v2276
  %v2278 = vrot.slane %v2264, %v2277
  %v2279 = vlaneseq
  %v2280 = vshrl.u32 %v2279, 7
  %v2281 = vsub.s32 0, %v2280
  %v2282 = vrot.slane %v2271, %v2281
  %v2283 = vlaneseq
  %v2284 = vshrl.u32 %v2283, 7
  %v2285 = vsub.s32 0, %v2284
  %v2286 = vrot.slane %v2278, %v2285
  %v2289 = vmul.f32 %v2282, %v568
  %v2290 = vmul.f32 %v2286, %v570
  %2293 = vrot.lane.b32.xlu0 %v2289, 96
  %v2294 = vpop.permute.xlu0 %2293
  %2295 = vrot.lane.b32.xlu0 %v2290, 96
  %v2296 = vpop.permute.xlu0 %2295
  %v2299 = vsel %vm59, %v2294, 0.0
  %2300 = vadd.xlane.f32.xlu0 %v2299
  %v2301 = vpop.xlane.xlu0 %2300
  %v2302 = vsel %vm59, %v2296, 0.0
  %2303 = vadd.xlane.f32.xlu0 %v2302
  %v2304 = vpop.xlane.xlu0 %2303
  %2305 = vset.pattern.permute.xlu0 64
  %2306 = vperm.xlu0 %2305, %v2255
  %v2307 = vpop.permute.xlu0 %2306
  %v2309 = vmul.f32 %v1833, %v2307
  %v2311 = vlaneseq
  %v2312 = vshrl.u32 %v2311, 7
  %v2313 = vsub.s32 0, %v2312
  %v2314 = vrot.slane %v2309, %v2313
  %2316 = vbcast.lane.b32.xlu0 %v2314, 256
  %v2317 = vpop.permute.xlu0 %2316
  %v2318 = vlaneseq
  %v2319 = vshrl.u32 %v2318, 7
  %v2320 = vsub.s32 1, %v2319
  %v2321 = vrot.slane %v2309, %v2320
  %2323 = vbcast.lane.b32.xlu0 %v2321, 256
  %v2324 = vpop.permute.xlu0 %2323
  %v2327 = vadd.f32 %v2301, %v2317
  %v2328 = vadd.f32 %v2304, %v2324
  %v2329 = vsub.f32 %v2327, %v614
  %v2330 = vsub.f32 %v2328, %v621
  %2333 = vset.pattern.permute.xlu0 0
  %2334 = vperm.xlu0 %2333, %v2329
  %v2335 = vpop.permute.xlu0 %2334
  %2336 = vset.pattern.permute.xlu0 0
  %2337 = vperm.xlu0 %2336, %v2330
  %v2338 = vpop.permute.xlu0 %2337
  %v2339 = vlaneseq
  %v2340 = vshrl.u32 %v2339, 7
  %v2341 = vsub.s32 %v54, %v2340
  %v2342 = vrot.slane %v2335, %v2341
  %v2343 = vlaneseq
  %v2344 = vshrl.u32 %v2343, 7
  %v2345 = vsub.s32 %v54, %v2344
  %v2346 = vrot.slane %v2338, %v2345
  %v2347 = vsel %vm337, %v2346, %v2342
  %v2349 = vsel %vm644, %v2347, -inf
  %2350 = vmax.xlane.f32.xlu0 %v2349
  %v2351 = vpop.xlane.xlu0 %2350
  %v2353 = vlaneseq
  %v2354 = vshrl.u32 %v2353, 7
  %v2355 = vsub.s32 0, %v2354
  %v2356 = vrot.slane %v2351, %v2355
  %v2357 = vlaneseq
  %v2358 = vshrl.u32 %v2357, 7
  %v2359 = vsub.s32 1, %v2358
  %v2360 = vrot.slane %v2351, %v2359
  %vm2363 = vcmp.ge.f32.partialorder %v2329, %v2356
  %vm2364 = vcmp.ge.f32.partialorder %v2330, %v2360
  %v2365 = vsel %vm2363, %v663, 8
  %v2366 = vsel %vm2364, %v663, 8
  %2367 = vset.pattern.permute.xlu0 0
  %2368 = vperm.xlu0 %2367, %v2365
  %v2369 = vpop.permute.xlu0 %2368
  %2370 = vset.pattern.permute.xlu0 0
  %2371 = vperm.xlu0 %2370, %v2366
  %v2372 = vpop.permute.xlu0 %2371
  %v2373 = vlaneseq
  %v2374 = vshrl.u32 %v2373, 7
  %v2375 = vsub.s32 %v54, %v2374
  %v2376 = vrot.slane %v2369, %v2375
  %v2377 = vlaneseq
  %v2378 = vshrl.u32 %v2377, 7
  %v2379 = vsub.s32 %v54, %v2378
  %v2380 = vrot.slane %v2372, %v2379
  %v2381 = vsel %vm337, %v2380, %v2376
  %v2382 = vsel %vm644, %v2381, 2147483647
  %v2383 = vand.u32 %v2382, 65535
  %v2384 = vshra.s32 %v2382, 16
  %v2385 = vcvt.s32.f32 %v2383
  %v2386 = vcvt.s32.f32 %v2384
  %2387 = vmin.xlane.f32.xlu0 %v2386
  %v2388 = vpop.xlane.xlu0 %2387
  %vm2389 = vcmp.eq.f32.partialorder %v2386, %v2388
  %v2390 = vsel %vm2389, %v2385, inf
  %2391 = vmin.xlane.f32.xlu0 %v2390
  %v2392 = vpop.xlane.xlu0 %2391
  %v2393 = vcvt.f32.s32 %v2392
  %v2394 = vcvt.f32.s32 %v2388
  %v2395 = vshll.u32 %v2394, 16
  %v2396 = vadd.s32 %v2395, %v2393
  %vm2397 = vcmp.eq.s32.totalorder %v54, %v2396
  %v2398 = vsel %vm2397, 1, 0
  %v2399 = vcvt.s32.f32 %v2398
  %v2400 = vmax.f32 %v1833, %v2399
  %v2401 = vlaneseq
  %v2402 = vshrl.u32 %v2401, 7
  %v2403 = vsub.s32 0, %v2402
  %v2404 = vrot.slane %v2399, %v2403
  %2406 = vbcast.lane.b32.xlu0 %v2404, 256
  %v2407 = vpop.permute.xlu0 %2406
  %v2408 = vlaneseq
  %v2409 = vshrl.u32 %v2408, 7
  %v2410 = vsub.s32 1, %v2409
  %v2411 = vrot.slane %v2399, %v2410
  %2413 = vbcast.lane.b32.xlu0 %v2411, 256
  %v2414 = vpop.permute.xlu0 %2413
  %v2415 = vmul.f32 %v2407, %v24
  %v2416 = vmul.f32 %v2414, %v25
  %v2417 = vsel %vm59, %v2415, 0.0
  %v2418 = vrot.slane %v2417, 4
  %v2419 = vadd.f32 %v2417, %v2418
  %v2420 = vrot.slane %v2419, 2
  %v2421 = vadd.f32 %v2419, %v2420
  %v2422 = vrot.slane %v2421, 1
  %v2423 = vadd.f32 %v2421, %v2422
  %v2424 = vsel %vm59, %v2416, 0.0
  %v2425 = vrot.slane %v2424, 4
  %v2426 = vadd.f32 %v2424, %v2425
  %v2427 = vrot.slane %v2426, 2
  %v2428 = vadd.f32 %v2426, %v2427
  %v2429 = vrot.slane %v2428, 1
  %v2430 = vadd.f32 %v2428, %v2429
  %v2433 = vsel %vm337, %v2430, %v2423
  %2436 = vrot.lane.b32.xlu0 %v1940, 64
  %v2437 = vpop.permute.xlu0 %2436
  %v2439 = vsel %vm59, %v2433, %v2437
  %v2440 = vpack.c.bf16 %v2439, %v2439
  %v2442 = vsel %vm90, %v2440, 0
  %2444 = vmatprep.subr.bf16.mxu0 0
  %2445 = vmatpush1.bf16.msra.mxu0 %v82
  %2446 = vmatprep.subr.bf16.mxu0 0
  %2447 = vmatpush1.bf16.msra.mxu0 %v83
  %2448 = vmatprep.subr.bf16.mxu0 0
  %2449 = vmatpush1.bf16.msra.mxu0 %v84
  %2450 = vmatprep.subr.bf16.mxu0 0
  %2451 = vmatpush1.bf16.msra.mxu0 %v85
  %2452 = vmatprep.subr.bf16.mxu0 0
  %2453 = vmatpush1.bf16.msra.mxu0 0
  %2454 = vmatprep.subr.bf16.mxu0 0
  %2455 = vmatpush1.bf16.msra.mxu0 0
  %2456 = vmatprep.subr.bf16.mxu0 0
  %2457 = vmatpush1.bf16.msra.mxu0 0
  %2458 = vmatprep.subr.bf16.mxu0 0
  %2459 = vmatpush1.bf16.msra.mxu0 0
  %2460 = vmatprep.subr.bf16.mxu0 0
  %2461 = vmatpush1.bf16.msra.mxu0 0
  %2462 = vmatprep.subr.bf16.mxu0 0
  %2463 = vmatpush1.bf16.msra.mxu0 0
  %2464 = vmatprep.subr.bf16.mxu0 0
  %2465 = vmatpush1.bf16.msra.mxu0 0
  %2466 = vmatprep.subr.bf16.mxu0 0
  %2467 = vmatpush1.bf16.msra.mxu0 0
  %2468 = vmatprep.subr.bf16.mxu0 0
  %2469 = vmatpush1.bf16.msra.mxu0 0
  %2470 = vmatprep.subr.bf16.mxu0 0
  %2471 = vmatpush1.bf16.msra.mxu0 0
  %2472 = vmatprep.subr.bf16.mxu0 0
  %2473 = vmatpush1.bf16.msra.mxu0 0
  %2474 = vmatprep.subr.bf16.mxu0 0
  %2475 = vmatpush1.bf16.msra.mxu0 0
  %2476 = vmatprep.mubr.bf16.mxu0 0
  %2477 = vmatmul.mubr.bf16.gmra.mrb[0].mxu0 %v2442
  %v2478 = vpop.f32.mrb[0].mxu0
  %v2479 = vadd.f32 %v65, %v2478
  %v2480 = vpop.f32.mrb[0].mxu0
  %v2481 = vpop.f32.mrb[0].mxu0
  %v2482 = vpop.f32.mrb[0].mxu0
  %2483 = vdwg.mxu0
  %v2484 = vxor.u32 %v2479, 2147483648
  %v2485 = vmul.f32 %v2484, 1.442695
  %v2486 = vpow.pop %v2485
  %v2487 = vadd.f32 %v2486, 1.0
  %v2488 = vrcp.pop %v2487
  %v2489 = vmul.f32 1.0, %v2488
  %v2490 = vtanh.pop %v2479
  %v2491 = vmul.f32 %v2489, %v1934
  %2493 = vrot.lane.b32.xlu0 %v2490, 64
  %v2494 = vpop.permute.xlu0 %2493
  %v2496 = vmul.f32 %v2489, %v2494
  %2498 = vrot.lane.b32.xlu0 %v2496, 32
  %v2499 = vpop.permute.xlu0 %2498
  %v2501 = vadd.f32 %v2491, %v2499
  %v2502 = vtanh.pop %v2501
  %2504 = vrot.lane.b32.xlu0 %v2502, 64
  %v2505 = vpop.permute.xlu0 %2504
  %v2507 = vmul.f32 %v2489, %v2505
  %v2508 = vpack.c.bf16 %v2507, %v2507
  %2510 = vrot.lane.b32.xlu0 %v2508, 32
  %v2511 = vpop.permute.xlu0 %2510
  %v2513 = vsel %vm59, %v2511, 0
  %2515 = vmatprep.subr.bf16.mxu0 0
  %2516 = vmatpush1.bf16.msra.mxu0 %v174
  %2517 = vmatprep.subr.bf16.mxu0 0
  %2518 = vmatpush1.bf16.msra.mxu0 %v175
  %2519 = vmatprep.subr.bf16.mxu0 0
  %2520 = vmatpush1.bf16.msra.mxu0 0
  %2521 = vmatprep.subr.bf16.mxu0 0
  %2522 = vmatpush1.bf16.msra.mxu0 0
  %2523 = vmatprep.subr.bf16.mxu0 0
  %2524 = vmatpush1.bf16.msra.mxu0 0
  %2525 = vmatprep.subr.bf16.mxu0 0
  %2526 = vmatpush1.bf16.msra.mxu0 0
  %2527 = vmatprep.subr.bf16.mxu0 0
  %2528 = vmatpush1.bf16.msra.mxu0 0
  %2529 = vmatprep.subr.bf16.mxu0 0
  %2530 = vmatpush1.bf16.msra.mxu0 0
  %2531 = vmatprep.subr.bf16.mxu0 0
  %2532 = vmatpush1.bf16.msra.mxu0 0
  %2533 = vmatprep.subr.bf16.mxu0 0
  %2534 = vmatpush1.bf16.msra.mxu0 0
  %2535 = vmatprep.subr.bf16.mxu0 0
  %2536 = vmatpush1.bf16.msra.mxu0 0
  %2537 = vmatprep.subr.bf16.mxu0 0
  %2538 = vmatpush1.bf16.msra.mxu0 0
  %2539 = vmatprep.subr.bf16.mxu0 0
  %2540 = vmatpush1.bf16.msra.mxu0 0
  %2541 = vmatprep.subr.bf16.mxu0 0
  %2542 = vmatpush1.bf16.msra.mxu0 0
  %2543 = vmatprep.subr.bf16.mxu0 0
  %2544 = vmatpush1.bf16.msra.mxu0 0
  %2545 = vmatprep.subr.bf16.mxu0 0
  %2546 = vmatpush1.bf16.msra.mxu0 0
  %2547 = vmatprep.mubr.bf16.mxu0 0
  %2548 = vmatmul.mubr.bf16.gmra.mrb[0].mxu0 %v2513
  %v2549 = vpop.f32.mrb[0].mxu0
  %v2550 = vadd.f32 %v162, %v2549
  %v2551 = vpop.f32.mrb[0].mxu0
  %v2552 = vpop.f32.mrb[0].mxu0
  %v2553 = vpop.f32.mrb[0].mxu0
  %2554 = vdwg.mxu0
  %v2557 = vunpack.c.l.s4 1966171168
  %v2558 = vunpack.c.0.s8 %v2557
  %v2559 = vlaneseq
  %v2560 = vshrl.u32 %v2559, 7
  %v2561 = vsub.s32 %v2558, %v2560
  %v2562 = vrot.slane %v2550, %v2561
  %v2563 = vcombine.high %v2562, %v2562
  %v2565 = vunpack.c.l.s4 1966171168
  %v2566 = vunpack.c.0.s8 %v2565
  %v2567 = vlaneseq
  %v2568 = vshrl.u32 %v2567, 7
  %v2569 = vsub.s32 %v2566, %v2568
  %v2570 = vrot.slane %v2562, %v2569
  %v2572 = vunpack.c.l.s4 1966171168
  %v2573 = vunpack.c.0.s8 %v2572
  %v2574 = vlaneseq
  %v2575 = vshrl.u32 %v2574, 7
  %v2576 = vsub.s32 %v2573, %v2575
  %v2577 = vrot.slane %v2563, %v2576
  %v2578 = vlaneseq
  %v2579 = vshrl.u32 %v2578, 7
  %v2580 = vsub.s32 0, %v2579
  %v2581 = vrot.slane %v2570, %v2580
  %v2582 = vlaneseq
  %v2583 = vshrl.u32 %v2582, 7
  %v2584 = vsub.s32 0, %v2583
  %v2585 = vrot.slane %v2577, %v2584
  %v2588 = vmul.f32 %v2581, %v26
  %v2589 = vmul.f32 %v2581, %v27
  %v2590 = vmul.f32 %v2585, %v28
  %v2591 = vmul.f32 %v2585, %v29
  %v2592 = vsel %vm59, %v2588, 0.0
  %2593 = vadd.xlane.f32.xlu0 %v2592
  %v2594 = vpop.xlane.xlu0 %2593
  %v2595 = vsel %vm59, %v2589, 0.0
  %2596 = vadd.xlane.f32.xlu0 %v2595
  %v2597 = vpop.xlane.xlu0 %2596
  %v2598 = vsel %vm59, %v2590, 0.0
  %2599 = vadd.xlane.f32.xlu0 %v2598
  %v2600 = vpop.xlane.xlu0 %2599
  %v2601 = vsel %vm59, %v2591, 0.0
  %2602 = vadd.xlane.f32.xlu0 %v2601
  %v2603 = vpop.xlane.xlu0 %2602
  %v2604 = vsub.f32 %v2594, %v277
  %v2605 = vsub.f32 %v2597, %v281
  %v2606 = vsub.f32 %v2600, %v288
  %v2607 = vsub.f32 %v2603, %v292
  %2612 = vset.pattern.permute.xlu0 0
  %2613 = vperm.xlu0 %2612, %v2604
  %v2614 = vpop.permute.xlu0 %2613
  %2615 = vset.pattern.permute.xlu0 0
  %2616 = vperm.xlu0 %2615, %v2605
  %v2617 = vpop.permute.xlu0 %2616
  %2618 = vset.pattern.permute.xlu0 0
  %2619 = vperm.xlu0 %2618, %v2606
  %v2620 = vpop.permute.xlu0 %2619
  %2621 = vset.pattern.permute.xlu0 0
  %2622 = vperm.xlu0 %2621, %v2607
  %v2623 = vpop.permute.xlu0 %2622
  %v2624 = vlaneseq
  %v2625 = vshrl.u32 %v2624, 7
  %v2626 = vsub.s32 %v54, %v2625
  %v2627 = vrot.slane %v2614, %v2626
  %v2628 = vlaneseq
  %v2629 = vshrl.u32 %v2628, 7
  %v2630 = vsub.s32 %v321, %v2629
  %v2631 = vrot.slane %v2617, %v2630
  %v2632 = vsel %vm326, %v2631, %v2627
  %v2633 = vlaneseq
  %v2634 = vshrl.u32 %v2633, 7
  %v2635 = vsub.s32 %v54, %v2634
  %v2636 = vrot.slane %v2620, %v2635
  %v2637 = vlaneseq
  %v2638 = vshrl.u32 %v2637, 7
  %v2639 = vsub.s32 %v321, %v2638
  %v2640 = vrot.slane %v2623, %v2639
  %v2641 = vsel %vm326, %v2640, %v2636
  %v2642 = vsel %vm337, %v2641, %v2632
  %v2644 = vsel %vm340, %v2642, -inf
  %2645 = vmax.xlane.f32.xlu0 %v2644
  %v2646 = vpop.xlane.xlu0 %2645
  %v2648 = vlaneseq
  %v2649 = vshrl.u32 %v2648, 7
  %v2650 = vsub.s32 0, %v2649
  %v2651 = vrot.slane %v2646, %v2650
  %v2652 = vlaneseq
  %v2653 = vshrl.u32 %v2652, 7
  %v2654 = vsub.s32 1, %v2653
  %v2655 = vrot.slane %v2646, %v2654
  %v2658 = vsub.f32 %v2604, %v2651
  %v2659 = vsub.f32 %v2605, %v2651
  %v2660 = vsub.f32 %v2606, %v2655
  %v2661 = vsub.f32 %v2607, %v2655
  %v2662 = vmul.f32 %v2658, 1.442695
  %v2663 = vpow.pop %v2662
  %v2664 = vmul.f32 %v2659, 1.442695
  %v2665 = vpow.pop %v2664
  %v2666 = vmul.f32 %v2660, 1.442695
  %v2667 = vpow.pop %v2666
  %v2668 = vmul.f32 %v2661, 1.442695
  %v2669 = vpow.pop %v2668
  %2674 = vset.pattern.permute.xlu0 0
  %2675 = vperm.xlu0 %2674, %v2663
  %v2676 = vpop.permute.xlu0 %2675
  %2677 = vset.pattern.permute.xlu0 0
  %2678 = vperm.xlu0 %2677, %v2665
  %v2679 = vpop.permute.xlu0 %2678
  %2680 = vset.pattern.permute.xlu0 0
  %2681 = vperm.xlu0 %2680, %v2667
  %v2682 = vpop.permute.xlu0 %2681
  %2683 = vset.pattern.permute.xlu0 0
  %2684 = vperm.xlu0 %2683, %v2669
  %v2685 = vpop.permute.xlu0 %2684
  %v2686 = vlaneseq
  %v2687 = vshrl.u32 %v2686, 7
  %v2688 = vsub.s32 %v54, %v2687
  %v2689 = vrot.slane %v2676, %v2688
  %v2690 = vlaneseq
  %v2691 = vshrl.u32 %v2690, 7
  %v2692 = vsub.s32 %v321, %v2691
  %v2693 = vrot.slane %v2679, %v2692
  %v2694 = vsel %vm326, %v2693, %v2689
  %v2695 = vlaneseq
  %v2696 = vshrl.u32 %v2695, 7
  %v2697 = vsub.s32 %v54, %v2696
  %v2698 = vrot.slane %v2682, %v2697
  %v2699 = vlaneseq
  %v2700 = vshrl.u32 %v2699, 7
  %v2701 = vsub.s32 %v321, %v2700
  %v2702 = vrot.slane %v2685, %v2701
  %v2703 = vsel %vm326, %v2702, %v2698
  %v2704 = vsel %vm337, %v2703, %v2694
  %v2706 = vsel %vm340, %v2704, 0.0
  %2707 = vadd.xlane.f32.xlu0 %v2706
  %v2708 = vpop.xlane.xlu0 %2707
  %v2709 = vrcp.pop %v2708
  %v2711 = vlaneseq
  %v2712 = vshrl.u32 %v2711, 7
  %v2713 = vsub.s32 0, %v2712
  %v2714 = vrot.slane %v2709, %v2713
  %v2715 = vlaneseq
  %v2716 = vshrl.u32 %v2715, 7
  %v2717 = vsub.s32 1, %v2716
  %v2718 = vrot.slane %v2709, %v2717
  %v2721 = vmul.f32 %v2663, %v2714
  %v2722 = vmul.f32 %v2665, %v2714
  %v2723 = vmul.f32 %v2667, %v2718
  %v2724 = vmul.f32 %v2669, %v2718
  %2726 = vset.pattern.permute.xlu0 0
  %2727 = vperm.xlu0 %2726, %v2721
  %v2728 = vpop.permute.xlu0 %2727
  %2731 = vset.pattern.permute.xlu0 0
  %2732 = vperm.xlu0 %2731, %v2722
  %v2733 = vpop.permute.xlu0 %2732
  %2736 = vset.pattern.permute.xlu0 0
  %2737 = vperm.xlu0 %2736, %v2723
  %v2738 = vpop.permute.xlu0 %2737
  %2741 = vset.pattern.permute.xlu0 0
  %2742 = vperm.xlu0 %2741, %v2724
  %v2743 = vpop.permute.xlu0 %2742
  %v2745 = vmul.f32 %v2728, %v26
  %v2746 = vmul.f32 %v2733, %v27
  %v2747 = vmul.f32 %v2738, %v28
  %v2748 = vmul.f32 %v2743, %v29
  %v2749 = vsel %vm59, %v2745, 0.0
  %v2750 = vsel %vm59, %v2746, 0.0
  %v2751 = vadd.f32 %v2749, %v2750
  %v2752 = vrot.slane %v2751, 4
  %v2753 = vadd.f32 %v2751, %v2752
  %v2754 = vrot.slane %v2753, 2
  %v2755 = vadd.f32 %v2753, %v2754
  %v2756 = vrot.slane %v2755, 1
  %v2757 = vadd.f32 %v2755, %v2756
  %v2758 = vsel %vm59, %v2747, 0.0
  %v2759 = vsel %vm59, %v2748, 0.0
  %v2760 = vadd.f32 %v2758, %v2759
  %v2761 = vrot.slane %v2760, 4
  %v2762 = vadd.f32 %v2760, %v2761
  %v2763 = vrot.slane %v2762, 2
  %v2764 = vadd.f32 %v2762, %v2763
  %v2765 = vrot.slane %v2764, 1
  %v2766 = vadd.f32 %v2764, %v2765
  %v2767 = vpack.c.bf16 %v2757, %v2757
  %v2768 = vpack.c.bf16 %v2766, %v2766
  %v2771 = vunpack.c.l.b16 %v2767
  %v2772 = vunpack.c.l.b16 %v2768
  %v2773 = vsel %vm337, %v2772, %v2771
  %v2774 = vpack.c.b16 %v2773, %v2773
  %v2776 = vsel %vm59, %v2774, 0
  %2778 = vmatprep.subr.bf16.mxu0 0
  %2779 = vmatpush1.bf16.msra.mxu0 %v480
  %2780 = vmatprep.subr.bf16.mxu0 0
  %2781 = vmatpush1.bf16.msra.mxu0 %v481
  %2782 = vmatprep.subr.bf16.mxu0 0
  %2783 = vmatpush1.bf16.msra.mxu0 0
  %2784 = vmatprep.subr.bf16.mxu0 0
  %2785 = vmatpush1.bf16.msra.mxu0 0
  %2786 = vmatprep.subr.bf16.mxu0 0
  %2787 = vmatpush1.bf16.msra.mxu0 0
  %2788 = vmatprep.subr.bf16.mxu0 0
  %2789 = vmatpush1.bf16.msra.mxu0 0
  %2790 = vmatprep.subr.bf16.mxu0 0
  %2791 = vmatpush1.bf16.msra.mxu0 0
  %2792 = vmatprep.subr.bf16.mxu0 0
  %2793 = vmatpush1.bf16.msra.mxu0 0
  %2794 = vmatprep.subr.bf16.mxu0 0
  %2795 = vmatpush1.bf16.msra.mxu0 0
  %2796 = vmatprep.subr.bf16.mxu0 0
  %2797 = vmatpush1.bf16.msra.mxu0 0
  %2798 = vmatprep.subr.bf16.mxu0 0
  %2799 = vmatpush1.bf16.msra.mxu0 0
  %2800 = vmatprep.subr.bf16.mxu0 0
  %2801 = vmatpush1.bf16.msra.mxu0 0
  %2802 = vmatprep.subr.bf16.mxu0 0
  %2803 = vmatpush1.bf16.msra.mxu0 0
  %2804 = vmatprep.subr.bf16.mxu0 0
  %2805 = vmatpush1.bf16.msra.mxu0 0
  %2806 = vmatprep.subr.bf16.mxu0 0
  %2807 = vmatpush1.bf16.msra.mxu0 0
  %2808 = vmatprep.subr.bf16.mxu0 0
  %2809 = vmatpush1.bf16.msra.mxu0 0
  %2810 = vmatprep.mubr.bf16.mxu0 0
  %2811 = vmatmul.mubr.bf16.gmra.mrb[0].mxu0 %v2776
  %v2812 = vpop.f32.mrb[0].mxu0
  %v2813 = vadd.f32 0.0, %v2812
  %v2814 = vpop.f32.mrb[0].mxu0
  %v2815 = vpop.f32.mrb[0].mxu0
  %v2816 = vpop.f32.mrb[0].mxu0
  %2817 = vdwg.mxu0
  %2819 = vrot.lane.b32.xlu0 %v2813, 32
  %v2820 = vpop.permute.xlu0 %2819
  %v2822 = vadd.f32 %v2550, %v2820
  %v2825 = vunpack.c.l.s4 1966171168
  %v2826 = vunpack.c.0.s8 %v2825
  %v2827 = vlaneseq
  %v2828 = vshrl.u32 %v2827, 7
  %v2829 = vsub.s32 %v2826, %v2828
  %v2830 = vrot.slane %v2822, %v2829
  %v2831 = vcombine.high %v2830, %v2830
  %v2833 = vunpack.c.l.s4 1966171168
  %v2834 = vunpack.c.0.s8 %v2833
  %v2835 = vlaneseq
  %v2836 = vshrl.u32 %v2835, 7
  %v2837 = vsub.s32 %v2834, %v2836
  %v2838 = vrot.slane %v2830, %v2837
  %v2840 = vunpack.c.l.s4 1966171168
  %v2841 = vunpack.c.0.s8 %v2840
  %v2842 = vlaneseq
  %v2843 = vshrl.u32 %v2842, 7
  %v2844 = vsub.s32 %v2841, %v2843
  %v2845 = vrot.slane %v2831, %v2844
  %v2846 = vlaneseq
  %v2847 = vshrl.u32 %v2846, 7
  %v2848 = vsub.s32 0, %v2847
  %v2849 = vrot.slane %v2838, %v2848
  %v2850 = vlaneseq
  %v2851 = vshrl.u32 %v2850, 7
  %v2852 = vsub.s32 0, %v2851
  %v2853 = vrot.slane %v2845, %v2852
  %v2856 = vmul.f32 %v2849, %v568
  %v2857 = vmul.f32 %v2853, %v570
  %2860 = vrot.lane.b32.xlu0 %v2856, 96
  %v2861 = vpop.permute.xlu0 %2860
  %2862 = vrot.lane.b32.xlu0 %v2857, 96
  %v2863 = vpop.permute.xlu0 %2862
  %v2866 = vsel %vm59, %v2861, 0.0
  %2867 = vadd.xlane.f32.xlu0 %v2866
  %v2868 = vpop.xlane.xlu0 %2867
  %v2869 = vsel %vm59, %v2863, 0.0
  %2870 = vadd.xlane.f32.xlu0 %v2869
  %v2871 = vpop.xlane.xlu0 %2870
  %2872 = vset.pattern.permute.xlu0 64
  %2873 = vperm.xlu0 %2872, %v2822
  %v2874 = vpop.permute.xlu0 %2873
  %v2876 = vmul.f32 %v2400, %v2874
  %v2878 = vlaneseq
  %v2879 = vshrl.u32 %v2878, 7
  %v2880 = vsub.s32 0, %v2879
  %v2881 = vrot.slane %v2876, %v2880
  %2883 = vbcast.lane.b32.xlu0 %v2881, 256
  %v2884 = vpop.permute.xlu0 %2883
  %v2885 = vlaneseq
  %v2886 = vshrl.u32 %v2885, 7
  %v2887 = vsub.s32 1, %v2886
  %v2888 = vrot.slane %v2876, %v2887
  %2890 = vbcast.lane.b32.xlu0 %v2888, 256
  %v2891 = vpop.permute.xlu0 %2890
  %v2894 = vadd.f32 %v2868, %v2884
  %v2895 = vadd.f32 %v2871, %v2891
  %v2896 = vsub.f32 %v2894, %v614
  %v2897 = vsub.f32 %v2895, %v621
  %2900 = vset.pattern.permute.xlu0 0
  %2901 = vperm.xlu0 %2900, %v2896
  %v2902 = vpop.permute.xlu0 %2901
  %2903 = vset.pattern.permute.xlu0 0
  %2904 = vperm.xlu0 %2903, %v2897
  %v2905 = vpop.permute.xlu0 %2904
  %v2906 = vlaneseq
  %v2907 = vshrl.u32 %v2906, 7
  %v2908 = vsub.s32 %v54, %v2907
  %v2909 = vrot.slane %v2902, %v2908
  %v2910 = vlaneseq
  %v2911 = vshrl.u32 %v2910, 7
  %v2912 = vsub.s32 %v54, %v2911
  %v2913 = vrot.slane %v2905, %v2912
  %v2914 = vsel %vm337, %v2913, %v2909
  %v2916 = vsel %vm644, %v2914, -inf
  %2917 = vmax.xlane.f32.xlu0 %v2916
  %v2918 = vpop.xlane.xlu0 %2917
  %v2920 = vlaneseq
  %v2921 = vshrl.u32 %v2920, 7
  %v2922 = vsub.s32 0, %v2921
  %v2923 = vrot.slane %v2918, %v2922
  %v2924 = vlaneseq
  %v2925 = vshrl.u32 %v2924, 7
  %v2926 = vsub.s32 1, %v2925
  %v2927 = vrot.slane %v2918, %v2926
  %vm2930 = vcmp.ge.f32.partialorder %v2896, %v2923
  %vm2931 = vcmp.ge.f32.partialorder %v2897, %v2927
  %v2932 = vsel %vm2930, %v663, 8
  %v2933 = vsel %vm2931, %v663, 8
  %2934 = vset.pattern.permute.xlu0 0
  %2935 = vperm.xlu0 %2934, %v2932
  %v2936 = vpop.permute.xlu0 %2935
  %2937 = vset.pattern.permute.xlu0 0
  %2938 = vperm.xlu0 %2937, %v2933
  %v2939 = vpop.permute.xlu0 %2938
  %v2940 = vlaneseq
  %v2941 = vshrl.u32 %v2940, 7
  %v2942 = vsub.s32 %v54, %v2941
  %v2943 = vrot.slane %v2936, %v2942
  %v2944 = vlaneseq
  %v2945 = vshrl.u32 %v2944, 7
  %v2946 = vsub.s32 %v54, %v2945
  %v2947 = vrot.slane %v2939, %v2946
  %v2948 = vsel %vm337, %v2947, %v2943
  %v2949 = vsel %vm644, %v2948, 2147483647
  %v2950 = vand.u32 %v2949, 65535
  %v2951 = vshra.s32 %v2949, 16
  %v2952 = vcvt.s32.f32 %v2950
  %v2953 = vcvt.s32.f32 %v2951
  %2954 = vmin.xlane.f32.xlu0 %v2953
  %v2955 = vpop.xlane.xlu0 %2954
  %vm2956 = vcmp.eq.f32.partialorder %v2953, %v2955
  %v2957 = vsel %vm2956, %v2952, inf
  %2958 = vmin.xlane.f32.xlu0 %v2957
  %v2959 = vpop.xlane.xlu0 %2958
  %v2960 = vcvt.f32.s32 %v2959
  %v2961 = vcvt.f32.s32 %v2955
  %v2962 = vshll.u32 %v2961, 16
  %v2963 = vadd.s32 %v2962, %v2960
  %vm2964 = vcmp.eq.s32.totalorder %v54, %v2963
  %v2965 = vsel %vm2964, 1, 0
  %v2966 = vcvt.s32.f32 %v2965
  %v2967 = vmax.f32 %v2400, %v2966
  %v2968 = vlaneseq
  %v2969 = vshrl.u32 %v2968, 7
  %v2970 = vsub.s32 0, %v2969
  %v2971 = vrot.slane %v2966, %v2970
  %2973 = vbcast.lane.b32.xlu0 %v2971, 256
  %v2974 = vpop.permute.xlu0 %2973
  %v2975 = vlaneseq
  %v2976 = vshrl.u32 %v2975, 7
  %v2977 = vsub.s32 1, %v2976
  %v2978 = vrot.slane %v2966, %v2977
  %2980 = vbcast.lane.b32.xlu0 %v2978, 256
  %v2981 = vpop.permute.xlu0 %2980
  %v2982 = vmul.f32 %v2974, %v24
  %v2983 = vmul.f32 %v2981, %v25
  %v2984 = vsel %vm59, %v2982, 0.0
  %v2985 = vrot.slane %v2984, 4
  %v2986 = vadd.f32 %v2984, %v2985
  %v2987 = vrot.slane %v2986, 2
  %v2988 = vadd.f32 %v2986, %v2987
  %v2989 = vrot.slane %v2988, 1
  %v2990 = vadd.f32 %v2988, %v2989
  %v2991 = vsel %vm59, %v2983, 0.0
  %v2992 = vrot.slane %v2991, 4
  %v2993 = vadd.f32 %v2991, %v2992
  %v2994 = vrot.slane %v2993, 2
  %v2995 = vadd.f32 %v2993, %v2994
  %v2996 = vrot.slane %v2995, 1
  %v2997 = vadd.f32 %v2995, %v2996
  %v3000 = vsel %vm337, %v2997, %v2990
  %3003 = vrot.lane.b32.xlu0 %v2507, 64
  %v3004 = vpop.permute.xlu0 %3003
  %v3006 = vsel %vm59, %v3000, %v3004
  %v3007 = vpack.c.bf16 %v3006, %v3006
  %v3009 = vsel %vm90, %v3007, 0
  %3011 = vmatprep.subr.bf16.mxu0 0
  %3012 = vmatpush1.bf16.msra.mxu0 %v82
  %3013 = vmatprep.subr.bf16.mxu0 0
  %3014 = vmatpush1.bf16.msra.mxu0 %v83
  %3015 = vmatprep.subr.bf16.mxu0 0
  %3016 = vmatpush1.bf16.msra.mxu0 %v84
  %3017 = vmatprep.subr.bf16.mxu0 0
  %3018 = vmatpush1.bf16.msra.mxu0 %v85
  %3019 = vmatprep.subr.bf16.mxu0 0
  %3020 = vmatpush1.bf16.msra.mxu0 0
  %3021 = vmatprep.subr.bf16.mxu0 0
  %3022 = vmatpush1.bf16.msra.mxu0 0
  %3023 = vmatprep.subr.bf16.mxu0 0
  %3024 = vmatpush1.bf16.msra.mxu0 0
  %3025 = vmatprep.subr.bf16.mxu0 0
  %3026 = vmatpush1.bf16.msra.mxu0 0
  %3027 = vmatprep.subr.bf16.mxu0 0
  %3028 = vmatpush1.bf16.msra.mxu0 0
  %3029 = vmatprep.subr.bf16.mxu0 0
  %3030 = vmatpush1.bf16.msra.mxu0 0
  %3031 = vmatprep.subr.bf16.mxu0 0
  %3032 = vmatpush1.bf16.msra.mxu0 0
  %3033 = vmatprep.subr.bf16.mxu0 0
  %3034 = vmatpush1.bf16.msra.mxu0 0
  %3035 = vmatprep.subr.bf16.mxu0 0
  %3036 = vmatpush1.bf16.msra.mxu0 0
  %3037 = vmatprep.subr.bf16.mxu0 0
  %3038 = vmatpush1.bf16.msra.mxu0 0
  %3039 = vmatprep.subr.bf16.mxu0 0
  %3040 = vmatpush1.bf16.msra.mxu0 0
  %3041 = vmatprep.subr.bf16.mxu0 0
  %3042 = vmatpush1.bf16.msra.mxu0 0
  %3043 = vmatprep.mubr.bf16.mxu0 0
  %3044 = vmatmul.mubr.bf16.gmra.mrb[0].mxu0 %v3009
  %v3045 = vpop.f32.mrb[0].mxu0
  %v3046 = vadd.f32 %v65, %v3045
  %v3047 = vpop.f32.mrb[0].mxu0
  %v3048 = vpop.f32.mrb[0].mxu0
  %v3049 = vpop.f32.mrb[0].mxu0
  %3050 = vdwg.mxu0
  %v3051 = vxor.u32 %v3046, 2147483648
  %v3052 = vmul.f32 %v3051, 1.442695
  %v3053 = vpow.pop %v3052
  %v3054 = vadd.f32 %v3053, 1.0
  %v3055 = vrcp.pop %v3054
  %v3056 = vmul.f32 1.0, %v3055
  %v3057 = vtanh.pop %v3046
  %v3058 = vmul.f32 %v3056, %v2501
  %3060 = vrot.lane.b32.xlu0 %v3057, 64
  %v3061 = vpop.permute.xlu0 %3060
  %v3063 = vmul.f32 %v3056, %v3061
  %3065 = vrot.lane.b32.xlu0 %v3063, 32
  %v3066 = vpop.permute.xlu0 %3065
  %v3068 = vadd.f32 %v3058, %v3066
  %v3069 = vtanh.pop %v3068
  %3071 = vrot.lane.b32.xlu0 %v3069, 64
  %v3072 = vpop.permute.xlu0 %3071
  %v3074 = vmul.f32 %v3056, %v3072
  %v3075 = vpack.c.bf16 %v3074, %v3074
  %3077 = vrot.lane.b32.xlu0 %v3075, 32
  %v3078 = vpop.permute.xlu0 %3077
  %v3080 = vsel %vm59, %v3078, 0
  %3082 = vmatprep.subr.bf16.mxu0 0
  %3083 = vmatpush1.bf16.msra.mxu0 %v174
  %3084 = vmatprep.subr.bf16.mxu0 0
  %3085 = vmatpush1.bf16.msra.mxu0 %v175
  %3086 = vmatprep.subr.bf16.mxu0 0
  %3087 = vmatpush1.bf16.msra.mxu0 0
  %3088 = vmatprep.subr.bf16.mxu0 0
  %3089 = vmatpush1.bf16.msra.mxu0 0
  %3090 = vmatprep.subr.bf16.mxu0 0
  %3091 = vmatpush1.bf16.msra.mxu0 0
  %3092 = vmatprep.subr.bf16.mxu0 0
  %3093 = vmatpush1.bf16.msra.mxu0 0
  %3094 = vmatprep.subr.bf16.mxu0 0
  %3095 = vmatpush1.bf16.msra.mxu0 0
  %3096 = vmatprep.subr.bf16.mxu0 0
  %3097 = vmatpush1.bf16.msra.mxu0 0
  %3098 = vmatprep.subr.bf16.mxu0 0
  %3099 = vmatpush1.bf16.msra.mxu0 0
  %3100 = vmatprep.subr.bf16.mxu0 0
  %3101 = vmatpush1.bf16.msra.mxu0 0
  %3102 = vmatprep.subr.bf16.mxu0 0
  %3103 = vmatpush1.bf16.msra.mxu0 0
  %3104 = vmatprep.subr.bf16.mxu0 0
  %3105 = vmatpush1.bf16.msra.mxu0 0
  %3106 = vmatprep.subr.bf16.mxu0 0
  %3107 = vmatpush1.bf16.msra.mxu0 0
  %3108 = vmatprep.subr.bf16.mxu0 0
  %3109 = vmatpush1.bf16.msra.mxu0 0
  %3110 = vmatprep.subr.bf16.mxu0 0
  %3111 = vmatpush1.bf16.msra.mxu0 0
  %3112 = vmatprep.subr.bf16.mxu0 0
  %3113 = vmatpush1.bf16.msra.mxu0 0
  %3114 = vmatprep.mubr.bf16.mxu0 0
  %3115 = vmatmul.mubr.bf16.gmra.mrb[0].mxu0 %v3080
  %v3116 = vpop.f32.mrb[0].mxu0
  %v3117 = vadd.f32 %v162, %v3116
  %v3118 = vpop.f32.mrb[0].mxu0
  %v3119 = vpop.f32.mrb[0].mxu0
  %v3120 = vpop.f32.mrb[0].mxu0
  %3121 = vdwg.mxu0
  %v3124 = vunpack.c.l.s4 1966171168
  %v3125 = vunpack.c.0.s8 %v3124
  %v3126 = vlaneseq
  %v3127 = vshrl.u32 %v3126, 7
  %v3128 = vsub.s32 %v3125, %v3127
  %v3129 = vrot.slane %v3117, %v3128
  %v3130 = vcombine.high %v3129, %v3129
  %v3132 = vunpack.c.l.s4 1966171168
  %v3133 = vunpack.c.0.s8 %v3132
  %v3134 = vlaneseq
  %v3135 = vshrl.u32 %v3134, 7
  %v3136 = vsub.s32 %v3133, %v3135
  %v3137 = vrot.slane %v3129, %v3136
  %v3139 = vunpack.c.l.s4 1966171168
  %v3140 = vunpack.c.0.s8 %v3139
  %v3141 = vlaneseq
  %v3142 = vshrl.u32 %v3141, 7
  %v3143 = vsub.s32 %v3140, %v3142
  %v3144 = vrot.slane %v3130, %v3143
  %v3145 = vlaneseq
  %v3146 = vshrl.u32 %v3145, 7
  %v3147 = vsub.s32 0, %v3146
  %v3148 = vrot.slane %v3137, %v3147
  %v3149 = vlaneseq
  %v3150 = vshrl.u32 %v3149, 7
  %v3151 = vsub.s32 0, %v3150
  %v3152 = vrot.slane %v3144, %v3151
  %v3155 = vmul.f32 %v3148, %v26
  %v3156 = vmul.f32 %v3148, %v27
  %v3157 = vmul.f32 %v3152, %v28
  %v3158 = vmul.f32 %v3152, %v29
  %v3159 = vsel %vm59, %v3155, 0.0
  %3160 = vadd.xlane.f32.xlu0 %v3159
  %v3161 = vpop.xlane.xlu0 %3160
  %v3162 = vsel %vm59, %v3156, 0.0
  %3163 = vadd.xlane.f32.xlu0 %v3162
  %v3164 = vpop.xlane.xlu0 %3163
  %v3165 = vsel %vm59, %v3157, 0.0
  %3166 = vadd.xlane.f32.xlu0 %v3165
  %v3167 = vpop.xlane.xlu0 %3166
  %v3168 = vsel %vm59, %v3158, 0.0
  %3169 = vadd.xlane.f32.xlu0 %v3168
  %v3170 = vpop.xlane.xlu0 %3169
  %v3171 = vsub.f32 %v3161, %v277
  %v3172 = vsub.f32 %v3164, %v281
  %v3173 = vsub.f32 %v3167, %v288
  %v3174 = vsub.f32 %v3170, %v292
  %3179 = vset.pattern.permute.xlu0 0
  %3180 = vperm.xlu0 %3179, %v3171
  %v3181 = vpop.permute.xlu0 %3180
  %3182 = vset.pattern.permute.xlu0 0
  %3183 = vperm.xlu0 %3182, %v3172
  %v3184 = vpop.permute.xlu0 %3183
  %3185 = vset.pattern.permute.xlu0 0
  %3186 = vperm.xlu0 %3185, %v3173
  %v3187 = vpop.permute.xlu0 %3186
  %3188 = vset.pattern.permute.xlu0 0
  %3189 = vperm.xlu0 %3188, %v3174
  %v3190 = vpop.permute.xlu0 %3189
  %v3191 = vlaneseq
  %v3192 = vshrl.u32 %v3191, 7
  %v3193 = vsub.s32 %v54, %v3192
  %v3194 = vrot.slane %v3181, %v3193
  %v3195 = vlaneseq
  %v3196 = vshrl.u32 %v3195, 7
  %v3197 = vsub.s32 %v321, %v3196
  %v3198 = vrot.slane %v3184, %v3197
  %v3199 = vsel %vm326, %v3198, %v3194
  %v3200 = vlaneseq
  %v3201 = vshrl.u32 %v3200, 7
  %v3202 = vsub.s32 %v54, %v3201
  %v3203 = vrot.slane %v3187, %v3202
  %v3204 = vlaneseq
  %v3205 = vshrl.u32 %v3204, 7
  %v3206 = vsub.s32 %v321, %v3205
  %v3207 = vrot.slane %v3190, %v3206
  %v3208 = vsel %vm326, %v3207, %v3203
  %v3209 = vsel %vm337, %v3208, %v3199
  %v3211 = vsel %vm340, %v3209, -inf
  %3212 = vmax.xlane.f32.xlu0 %v3211
  %v3213 = vpop.xlane.xlu0 %3212
  %v3215 = vlaneseq
  %v3216 = vshrl.u32 %v3215, 7
  %v3217 = vsub.s32 0, %v3216
  %v3218 = vrot.slane %v3213, %v3217
  %v3219 = vlaneseq
  %v3220 = vshrl.u32 %v3219, 7
  %v3221 = vsub.s32 1, %v3220
  %v3222 = vrot.slane %v3213, %v3221
  %v3225 = vsub.f32 %v3171, %v3218
  %v3226 = vsub.f32 %v3172, %v3218
  %v3227 = vsub.f32 %v3173, %v3222
  %v3228 = vsub.f32 %v3174, %v3222
  %v3229 = vmul.f32 %v3225, 1.442695
  %v3230 = vpow.pop %v3229
  %v3231 = vmul.f32 %v3226, 1.442695
  %v3232 = vpow.pop %v3231
  %v3233 = vmul.f32 %v3227, 1.442695
  %v3234 = vpow.pop %v3233
  %v3235 = vmul.f32 %v3228, 1.442695
  %v3236 = vpow.pop %v3235
  %3241 = vset.pattern.permute.xlu0 0
  %3242 = vperm.xlu0 %3241, %v3230
  %v3243 = vpop.permute.xlu0 %3242
  %3244 = vset.pattern.permute.xlu0 0
  %3245 = vperm.xlu0 %3244, %v3232
  %v3246 = vpop.permute.xlu0 %3245
  %3247 = vset.pattern.permute.xlu0 0
  %3248 = vperm.xlu0 %3247, %v3234
  %v3249 = vpop.permute.xlu0 %3248
  %3250 = vset.pattern.permute.xlu0 0
  %3251 = vperm.xlu0 %3250, %v3236
  %v3252 = vpop.permute.xlu0 %3251
  %v3253 = vlaneseq
  %v3254 = vshrl.u32 %v3253, 7
  %v3255 = vsub.s32 %v54, %v3254
  %v3256 = vrot.slane %v3243, %v3255
  %v3257 = vlaneseq
  %v3258 = vshrl.u32 %v3257, 7
  %v3259 = vsub.s32 %v321, %v3258
  %v3260 = vrot.slane %v3246, %v3259
  %v3261 = vsel %vm326, %v3260, %v3256
  %v3262 = vlaneseq
  %v3263 = vshrl.u32 %v3262, 7
  %v3264 = vsub.s32 %v54, %v3263
  %v3265 = vrot.slane %v3249, %v3264
  %v3266 = vlaneseq
  %v3267 = vshrl.u32 %v3266, 7
  %v3268 = vsub.s32 %v321, %v3267
  %v3269 = vrot.slane %v3252, %v3268
  %v3270 = vsel %vm326, %v3269, %v3265
  %v3271 = vsel %vm337, %v3270, %v3261
  %v3273 = vsel %vm340, %v3271, 0.0
  %3274 = vadd.xlane.f32.xlu0 %v3273
  %v3275 = vpop.xlane.xlu0 %3274
  %v3276 = vrcp.pop %v3275
  %v3278 = vlaneseq
  %v3279 = vshrl.u32 %v3278, 7
  %v3280 = vsub.s32 0, %v3279
  %v3281 = vrot.slane %v3276, %v3280
  %v3282 = vlaneseq
  %v3283 = vshrl.u32 %v3282, 7
  %v3284 = vsub.s32 1, %v3283
  %v3285 = vrot.slane %v3276, %v3284
  %v3288 = vmul.f32 %v3230, %v3281
  %v3289 = vmul.f32 %v3232, %v3281
  %v3290 = vmul.f32 %v3234, %v3285
  %v3291 = vmul.f32 %v3236, %v3285
  %3293 = vset.pattern.permute.xlu0 0
  %3294 = vperm.xlu0 %3293, %v3288
  %v3295 = vpop.permute.xlu0 %3294
  %3298 = vset.pattern.permute.xlu0 0
  %3299 = vperm.xlu0 %3298, %v3289
  %v3300 = vpop.permute.xlu0 %3299
  %3303 = vset.pattern.permute.xlu0 0
  %3304 = vperm.xlu0 %3303, %v3290
  %v3305 = vpop.permute.xlu0 %3304
  %3308 = vset.pattern.permute.xlu0 0
  %3309 = vperm.xlu0 %3308, %v3291
  %v3310 = vpop.permute.xlu0 %3309
  %v3312 = vmul.f32 %v3295, %v26
  %v3313 = vmul.f32 %v3300, %v27
  %v3314 = vmul.f32 %v3305, %v28
  %v3315 = vmul.f32 %v3310, %v29
  %v3316 = vsel %vm59, %v3312, 0.0
  %v3317 = vsel %vm59, %v3313, 0.0
  %v3318 = vadd.f32 %v3316, %v3317
  %v3319 = vrot.slane %v3318, 4
  %v3320 = vadd.f32 %v3318, %v3319
  %v3321 = vrot.slane %v3320, 2
  %v3322 = vadd.f32 %v3320, %v3321
  %v3323 = vrot.slane %v3322, 1
  %v3324 = vadd.f32 %v3322, %v3323
  %v3325 = vsel %vm59, %v3314, 0.0
  %v3326 = vsel %vm59, %v3315, 0.0
  %v3327 = vadd.f32 %v3325, %v3326
  %v3328 = vrot.slane %v3327, 4
  %v3329 = vadd.f32 %v3327, %v3328
  %v3330 = vrot.slane %v3329, 2
  %v3331 = vadd.f32 %v3329, %v3330
  %v3332 = vrot.slane %v3331, 1
  %v3333 = vadd.f32 %v3331, %v3332
  %v3334 = vpack.c.bf16 %v3324, %v3324
  %v3335 = vpack.c.bf16 %v3333, %v3333
  %v3338 = vunpack.c.l.b16 %v3334
  %v3339 = vunpack.c.l.b16 %v3335
  %v3340 = vsel %vm337, %v3339, %v3338
  %v3341 = vpack.c.b16 %v3340, %v3340
  %v3343 = vsel %vm59, %v3341, 0
  %3345 = vmatprep.subr.bf16.mxu0 0
  %3346 = vmatpush1.bf16.msra.mxu0 %v480
  %3347 = vmatprep.subr.bf16.mxu0 0
  %3348 = vmatpush1.bf16.msra.mxu0 %v481
  %3349 = vmatprep.subr.bf16.mxu0 0
  %3350 = vmatpush1.bf16.msra.mxu0 0
  %3351 = vmatprep.subr.bf16.mxu0 0
  %3352 = vmatpush1.bf16.msra.mxu0 0
  %3353 = vmatprep.subr.bf16.mxu0 0
  %3354 = vmatpush1.bf16.msra.mxu0 0
  %3355 = vmatprep.subr.bf16.mxu0 0
  %3356 = vmatpush1.bf16.msra.mxu0 0
  %3357 = vmatprep.subr.bf16.mxu0 0
  %3358 = vmatpush1.bf16.msra.mxu0 0
  %3359 = vmatprep.subr.bf16.mxu0 0
  %3360 = vmatpush1.bf16.msra.mxu0 0
  %3361 = vmatprep.subr.bf16.mxu0 0
  %3362 = vmatpush1.bf16.msra.mxu0 0
  %3363 = vmatprep.subr.bf16.mxu0 0
  %3364 = vmatpush1.bf16.msra.mxu0 0
  %3365 = vmatprep.subr.bf16.mxu0 0
  %3366 = vmatpush1.bf16.msra.mxu0 0
  %3367 = vmatprep.subr.bf16.mxu0 0
  %3368 = vmatpush1.bf16.msra.mxu0 0
  %3369 = vmatprep.subr.bf16.mxu0 0
  %3370 = vmatpush1.bf16.msra.mxu0 0
  %3371 = vmatprep.subr.bf16.mxu0 0
  %3372 = vmatpush1.bf16.msra.mxu0 0
  %3373 = vmatprep.subr.bf16.mxu0 0
  %3374 = vmatpush1.bf16.msra.mxu0 0
  %3375 = vmatprep.subr.bf16.mxu0 0
  %3376 = vmatpush1.bf16.msra.mxu0 0
  %3377 = vmatprep.mubr.bf16.mxu0 0
  %3378 = vmatmul.mubr.bf16.gmra.mrb[0].mxu0 %v3343
  %v3379 = vpop.f32.mrb[0].mxu0
  %v3380 = vadd.f32 0.0, %v3379
  %v3381 = vpop.f32.mrb[0].mxu0
  %v3382 = vpop.f32.mrb[0].mxu0
  %v3383 = vpop.f32.mrb[0].mxu0
  %3384 = vdwg.mxu0
  %3386 = vrot.lane.b32.xlu0 %v3380, 32
  %v3387 = vpop.permute.xlu0 %3386
  %v3389 = vadd.f32 %v3117, %v3387
  %v3392 = vunpack.c.l.s4 1966171168
  %v3393 = vunpack.c.0.s8 %v3392
  %v3394 = vlaneseq
  %v3395 = vshrl.u32 %v3394, 7
  %v3396 = vsub.s32 %v3393, %v3395
  %v3397 = vrot.slane %v3389, %v3396
  %v3398 = vcombine.high %v3397, %v3397
  %v3400 = vunpack.c.l.s4 1966171168
  %v3401 = vunpack.c.0.s8 %v3400
  %v3402 = vlaneseq
  %v3403 = vshrl.u32 %v3402, 7
  %v3404 = vsub.s32 %v3401, %v3403
  %v3405 = vrot.slane %v3397, %v3404
  %v3407 = vunpack.c.l.s4 1966171168
  %v3408 = vunpack.c.0.s8 %v3407
  %v3409 = vlaneseq
  %v3410 = vshrl.u32 %v3409, 7
  %v3411 = vsub.s32 %v3408, %v3410
  %v3412 = vrot.slane %v3398, %v3411
  %v3413 = vlaneseq
  %v3414 = vshrl.u32 %v3413, 7
  %v3415 = vsub.s32 0, %v3414
  %v3416 = vrot.slane %v3405, %v3415
  %v3417 = vlaneseq
  %v3418 = vshrl.u32 %v3417, 7
  %v3419 = vsub.s32 0, %v3418
  %v3420 = vrot.slane %v3412, %v3419
  %v3423 = vmul.f32 %v3416, %v568
  %v3424 = vmul.f32 %v3420, %v570
  %3427 = vrot.lane.b32.xlu0 %v3423, 96
  %v3428 = vpop.permute.xlu0 %3427
  %3429 = vrot.lane.b32.xlu0 %v3424, 96
  %v3430 = vpop.permute.xlu0 %3429
  %v3433 = vsel %vm59, %v3428, 0.0
  %3434 = vadd.xlane.f32.xlu0 %v3433
  %v3435 = vpop.xlane.xlu0 %3434
  %v3436 = vsel %vm59, %v3430, 0.0
  %3437 = vadd.xlane.f32.xlu0 %v3436
  %v3438 = vpop.xlane.xlu0 %3437
  %3439 = vset.pattern.permute.xlu0 64
  %3440 = vperm.xlu0 %3439, %v3389
  %v3441 = vpop.permute.xlu0 %3440
  %v3443 = vmul.f32 %v2967, %v3441
  %v3445 = vlaneseq
  %v3446 = vshrl.u32 %v3445, 7
  %v3447 = vsub.s32 0, %v3446
  %v3448 = vrot.slane %v3443, %v3447
  %3450 = vbcast.lane.b32.xlu0 %v3448, 256
  %v3451 = vpop.permute.xlu0 %3450
  %v3452 = vlaneseq
  %v3453 = vshrl.u32 %v3452, 7
  %v3454 = vsub.s32 1, %v3453
  %v3455 = vrot.slane %v3443, %v3454
  %3457 = vbcast.lane.b32.xlu0 %v3455, 256
  %v3458 = vpop.permute.xlu0 %3457
  %v3461 = vadd.f32 %v3435, %v3451
  %v3462 = vadd.f32 %v3438, %v3458
  %v3463 = vsub.f32 %v3461, %v614
  %v3464 = vsub.f32 %v3462, %v621
  %3467 = vset.pattern.permute.xlu0 0
  %3468 = vperm.xlu0 %3467, %v3463
  %v3469 = vpop.permute.xlu0 %3468
  %3470 = vset.pattern.permute.xlu0 0
  %3471 = vperm.xlu0 %3470, %v3464
  %v3472 = vpop.permute.xlu0 %3471
  %v3473 = vlaneseq
  %v3474 = vshrl.u32 %v3473, 7
  %v3475 = vsub.s32 %v54, %v3474
  %v3476 = vrot.slane %v3469, %v3475
  %v3477 = vlaneseq
  %v3478 = vshrl.u32 %v3477, 7
  %v3479 = vsub.s32 %v54, %v3478
  %v3480 = vrot.slane %v3472, %v3479
  %v3481 = vsel %vm337, %v3480, %v3476
  %v3483 = vsel %vm644, %v3481, -inf
  %3484 = vmax.xlane.f32.xlu0 %v3483
  %v3485 = vpop.xlane.xlu0 %3484
  %v3487 = vlaneseq
  %v3488 = vshrl.u32 %v3487, 7
  %v3489 = vsub.s32 0, %v3488
  %v3490 = vrot.slane %v3485, %v3489
  %v3491 = vlaneseq
  %v3492 = vshrl.u32 %v3491, 7
  %v3493 = vsub.s32 1, %v3492
  %v3494 = vrot.slane %v3485, %v3493
  %vm3497 = vcmp.ge.f32.partialorder %v3463, %v3490
  %vm3498 = vcmp.ge.f32.partialorder %v3464, %v3494
  %v3499 = vsel %vm3497, %v663, 8
  %v3500 = vsel %vm3498, %v663, 8
  %3501 = vset.pattern.permute.xlu0 0
  %3502 = vperm.xlu0 %3501, %v3499
  %v3503 = vpop.permute.xlu0 %3502
  %3504 = vset.pattern.permute.xlu0 0
  %3505 = vperm.xlu0 %3504, %v3500
  %v3506 = vpop.permute.xlu0 %3505
  %v3507 = vlaneseq
  %v3508 = vshrl.u32 %v3507, 7
  %v3509 = vsub.s32 %v54, %v3508
  %v3510 = vrot.slane %v3503, %v3509
  %v3511 = vlaneseq
  %v3512 = vshrl.u32 %v3511, 7
  %v3513 = vsub.s32 %v54, %v3512
  %v3514 = vrot.slane %v3506, %v3513
  %v3515 = vsel %vm337, %v3514, %v3510
  %v3516 = vsel %vm644, %v3515, 2147483647
  %v3517 = vand.u32 %v3516, 65535
  %v3518 = vshra.s32 %v3516, 16
  %v3519 = vcvt.s32.f32 %v3517
  %v3520 = vcvt.s32.f32 %v3518
  %3521 = vmin.xlane.f32.xlu0 %v3520
  %v3522 = vpop.xlane.xlu0 %3521
  %vm3523 = vcmp.eq.f32.partialorder %v3520, %v3522
  %v3524 = vsel %vm3523, %v3519, inf
  %3525 = vmin.xlane.f32.xlu0 %v3524
  %v3526 = vpop.xlane.xlu0 %3525
  %v3527 = vcvt.f32.s32 %v3526
  %v3528 = vcvt.f32.s32 %v3522
  %v3529 = vshll.u32 %v3528, 16
  %v3530 = vadd.s32 %v3529, %v3527
  %vm3531 = vcmp.eq.s32.totalorder %v54, %v3530
  %v3532 = vsel %vm3531, 1, 0
  %v3533 = vcvt.s32.f32 %v3532
  %v3534 = vmax.f32 %v2967, %v3533
  %v3535 = vlaneseq
  %v3536 = vshrl.u32 %v3535, 7
  %v3537 = vsub.s32 0, %v3536
  %v3538 = vrot.slane %v3533, %v3537
  %3540 = vbcast.lane.b32.xlu0 %v3538, 256
  %v3541 = vpop.permute.xlu0 %3540
  %v3542 = vlaneseq
  %v3543 = vshrl.u32 %v3542, 7
  %v3544 = vsub.s32 1, %v3543
  %v3545 = vrot.slane %v3533, %v3544
  %3547 = vbcast.lane.b32.xlu0 %v3545, 256
  %v3548 = vpop.permute.xlu0 %3547
  %v3549 = vmul.f32 %v3541, %v24
  %v3550 = vmul.f32 %v3548, %v25
  %v3551 = vsel %vm59, %v3549, 0.0
  %v3552 = vrot.slane %v3551, 4
  %v3553 = vadd.f32 %v3551, %v3552
  %v3554 = vrot.slane %v3553, 2
  %v3555 = vadd.f32 %v3553, %v3554
  %v3556 = vrot.slane %v3555, 1
  %v3557 = vadd.f32 %v3555, %v3556
  %v3558 = vsel %vm59, %v3550, 0.0
  %v3559 = vrot.slane %v3558, 4
  %v3560 = vadd.f32 %v3558, %v3559
  %v3561 = vrot.slane %v3560, 2
  %v3562 = vadd.f32 %v3560, %v3561
  %v3563 = vrot.slane %v3562, 1
  %v3564 = vadd.f32 %v3562, %v3563
  %v3567 = vsel %vm337, %v3564, %v3557
  %3570 = vrot.lane.b32.xlu0 %v3074, 64
  %v3571 = vpop.permute.xlu0 %3570
  %v3573 = vsel %vm59, %v3567, %v3571
  %v3574 = vpack.c.bf16 %v3573, %v3573
  %v3576 = vsel %vm90, %v3574, 0
  %3578 = vmatprep.subr.bf16.mxu0 0
  %3579 = vmatpush1.bf16.msra.mxu0 %v82
  %3580 = vmatprep.subr.bf16.mxu0 0
  %3581 = vmatpush1.bf16.msra.mxu0 %v83
  %3582 = vmatprep.subr.bf16.mxu0 0
  %3583 = vmatpush1.bf16.msra.mxu0 %v84
  %3584 = vmatprep.subr.bf16.mxu0 0
  %3585 = vmatpush1.bf16.msra.mxu0 %v85
  %3586 = vmatprep.subr.bf16.mxu0 0
  %3587 = vmatpush1.bf16.msra.mxu0 0
  %3588 = vmatprep.subr.bf16.mxu0 0
  %3589 = vmatpush1.bf16.msra.mxu0 0
  %3590 = vmatprep.subr.bf16.mxu0 0
  %3591 = vmatpush1.bf16.msra.mxu0 0
  %3592 = vmatprep.subr.bf16.mxu0 0
  %3593 = vmatpush1.bf16.msra.mxu0 0
  %3594 = vmatprep.subr.bf16.mxu0 0
  %3595 = vmatpush1.bf16.msra.mxu0 0
  %3596 = vmatprep.subr.bf16.mxu0 0
  %3597 = vmatpush1.bf16.msra.mxu0 0
  %3598 = vmatprep.subr.bf16.mxu0 0
  %3599 = vmatpush1.bf16.msra.mxu0 0
  %3600 = vmatprep.subr.bf16.mxu0 0
  %3601 = vmatpush1.bf16.msra.mxu0 0
  %3602 = vmatprep.subr.bf16.mxu0 0
  %3603 = vmatpush1.bf16.msra.mxu0 0
  %3604 = vmatprep.subr.bf16.mxu0 0
  %3605 = vmatpush1.bf16.msra.mxu0 0
  %3606 = vmatprep.subr.bf16.mxu0 0
  %3607 = vmatpush1.bf16.msra.mxu0 0
  %3608 = vmatprep.subr.bf16.mxu0 0
  %3609 = vmatpush1.bf16.msra.mxu0 0
  %3610 = vmatprep.mubr.bf16.mxu0 0
  %3611 = vmatmul.mubr.bf16.gmra.mrb[0].mxu0 %v3576
  %v3612 = vpop.f32.mrb[0].mxu0
  %v3613 = vadd.f32 %v65, %v3612
  %v3614 = vpop.f32.mrb[0].mxu0
  %v3615 = vpop.f32.mrb[0].mxu0
  %v3616 = vpop.f32.mrb[0].mxu0
  %3617 = vdwg.mxu0
  %v3618 = vxor.u32 %v3613, 2147483648
  %v3619 = vmul.f32 %v3618, 1.442695
  %v3620 = vpow.pop %v3619
  %v3621 = vadd.f32 %v3620, 1.0
  %v3622 = vrcp.pop %v3621
  %v3623 = vmul.f32 1.0, %v3622
  %v3624 = vtanh.pop %v3613
  %v3625 = vmul.f32 %v3623, %v3068
  %3627 = vrot.lane.b32.xlu0 %v3624, 64
  %v3628 = vpop.permute.xlu0 %3627
  %v3630 = vmul.f32 %v3623, %v3628
  %3632 = vrot.lane.b32.xlu0 %v3630, 32
  %v3633 = vpop.permute.xlu0 %3632
  %v3635 = vadd.f32 %v3625, %v3633
  %v3636 = vtanh.pop %v3635
  %3638 = vrot.lane.b32.xlu0 %v3636, 64
  %v3639 = vpop.permute.xlu0 %3638
  %v3641 = vmul.f32 %v3623, %v3639
  %v3642 = vpack.c.bf16 %v3641, %v3641
  %3644 = vrot.lane.b32.xlu0 %v3642, 32
  %v3645 = vpop.permute.xlu0 %3644
  %v3647 = vsel %vm59, %v3645, 0
  %3649 = vmatprep.subr.bf16.mxu0 0
  %3650 = vmatpush1.bf16.msra.mxu0 %v174
  %3651 = vmatprep.subr.bf16.mxu0 0
  %3652 = vmatpush1.bf16.msra.mxu0 %v175
  %3653 = vmatprep.subr.bf16.mxu0 0
  %3654 = vmatpush1.bf16.msra.mxu0 0
  %3655 = vmatprep.subr.bf16.mxu0 0
  %3656 = vmatpush1.bf16.msra.mxu0 0
  %3657 = vmatprep.subr.bf16.mxu0 0
  %3658 = vmatpush1.bf16.msra.mxu0 0
  %3659 = vmatprep.subr.bf16.mxu0 0
  %3660 = vmatpush1.bf16.msra.mxu0 0
  %3661 = vmatprep.subr.bf16.mxu0 0
  %3662 = vmatpush1.bf16.msra.mxu0 0
  %3663 = vmatprep.subr.bf16.mxu0 0
  %3664 = vmatpush1.bf16.msra.mxu0 0
  %3665 = vmatprep.subr.bf16.mxu0 0
  %3666 = vmatpush1.bf16.msra.mxu0 0
  %3667 = vmatprep.subr.bf16.mxu0 0
  %3668 = vmatpush1.bf16.msra.mxu0 0
  %3669 = vmatprep.subr.bf16.mxu0 0
  %3670 = vmatpush1.bf16.msra.mxu0 0
  %3671 = vmatprep.subr.bf16.mxu0 0
  %3672 = vmatpush1.bf16.msra.mxu0 0
  %3673 = vmatprep.subr.bf16.mxu0 0
  %3674 = vmatpush1.bf16.msra.mxu0 0
  %3675 = vmatprep.subr.bf16.mxu0 0
  %3676 = vmatpush1.bf16.msra.mxu0 0
  %3677 = vmatprep.subr.bf16.mxu0 0
  %3678 = vmatpush1.bf16.msra.mxu0 0
  %3679 = vmatprep.subr.bf16.mxu0 0
  %3680 = vmatpush1.bf16.msra.mxu0 0
  %3681 = vmatprep.mubr.bf16.mxu0 0
  %3682 = vmatmul.mubr.bf16.gmra.mrb[0].mxu0 %v3647
  %v3683 = vpop.f32.mrb[0].mxu0
  %v3684 = vadd.f32 %v162, %v3683
  %v3685 = vpop.f32.mrb[0].mxu0
  %v3686 = vpop.f32.mrb[0].mxu0
  %v3687 = vpop.f32.mrb[0].mxu0
  %3688 = vdwg.mxu0
  %v3691 = vunpack.c.l.s4 1966171168
  %v3692 = vunpack.c.0.s8 %v3691
  %v3693 = vlaneseq
  %v3694 = vshrl.u32 %v3693, 7
  %v3695 = vsub.s32 %v3692, %v3694
  %v3696 = vrot.slane %v3684, %v3695
  %v3697 = vcombine.high %v3696, %v3696
  %v3699 = vunpack.c.l.s4 1966171168
  %v3700 = vunpack.c.0.s8 %v3699
  %v3701 = vlaneseq
  %v3702 = vshrl.u32 %v3701, 7
  %v3703 = vsub.s32 %v3700, %v3702
  %v3704 = vrot.slane %v3696, %v3703
  %v3706 = vunpack.c.l.s4 1966171168
  %v3707 = vunpack.c.0.s8 %v3706
  %v3708 = vlaneseq
  %v3709 = vshrl.u32 %v3708, 7
  %v3710 = vsub.s32 %v3707, %v3709
  %v3711 = vrot.slane %v3697, %v3710
  %v3712 = vlaneseq
  %v3713 = vshrl.u32 %v3712, 7
  %v3714 = vsub.s32 0, %v3713
  %v3715 = vrot.slane %v3704, %v3714
  %v3716 = vlaneseq
  %v3717 = vshrl.u32 %v3716, 7
  %v3718 = vsub.s32 0, %v3717
  %v3719 = vrot.slane %v3711, %v3718
  %v3722 = vmul.f32 %v3715, %v26
  %v3723 = vmul.f32 %v3715, %v27
  %v3724 = vmul.f32 %v3719, %v28
  %v3725 = vmul.f32 %v3719, %v29
  %v3726 = vsel %vm59, %v3722, 0.0
  %3727 = vadd.xlane.f32.xlu0 %v3726
  %v3728 = vpop.xlane.xlu0 %3727
  %v3729 = vsel %vm59, %v3723, 0.0
  %3730 = vadd.xlane.f32.xlu0 %v3729
  %v3731 = vpop.xlane.xlu0 %3730
  %v3732 = vsel %vm59, %v3724, 0.0
  %3733 = vadd.xlane.f32.xlu0 %v3732
  %v3734 = vpop.xlane.xlu0 %3733
  %v3735 = vsel %vm59, %v3725, 0.0
  %3736 = vadd.xlane.f32.xlu0 %v3735
  %v3737 = vpop.xlane.xlu0 %3736
  %v3738 = vsub.f32 %v3728, %v277
  %v3739 = vsub.f32 %v3731, %v281
  %v3740 = vsub.f32 %v3734, %v288
  %v3741 = vsub.f32 %v3737, %v292
  %3746 = vset.pattern.permute.xlu0 0
  %3747 = vperm.xlu0 %3746, %v3738
  %v3748 = vpop.permute.xlu0 %3747
  %3749 = vset.pattern.permute.xlu0 0
  %3750 = vperm.xlu0 %3749, %v3739
  %v3751 = vpop.permute.xlu0 %3750
  %3752 = vset.pattern.permute.xlu0 0
  %3753 = vperm.xlu0 %3752, %v3740
  %v3754 = vpop.permute.xlu0 %3753
  %3755 = vset.pattern.permute.xlu0 0
  %3756 = vperm.xlu0 %3755, %v3741
  %v3757 = vpop.permute.xlu0 %3756
  %v3758 = vlaneseq
  %v3759 = vshrl.u32 %v3758, 7
  %v3760 = vsub.s32 %v54, %v3759
  %v3761 = vrot.slane %v3748, %v3760
  %v3762 = vlaneseq
  %v3763 = vshrl.u32 %v3762, 7
  %v3764 = vsub.s32 %v321, %v3763
  %v3765 = vrot.slane %v3751, %v3764
  %v3766 = vsel %vm326, %v3765, %v3761
  %v3767 = vlaneseq
  %v3768 = vshrl.u32 %v3767, 7
  %v3769 = vsub.s32 %v54, %v3768
  %v3770 = vrot.slane %v3754, %v3769
  %v3771 = vlaneseq
  %v3772 = vshrl.u32 %v3771, 7
  %v3773 = vsub.s32 %v321, %v3772
  %v3774 = vrot.slane %v3757, %v3773
  %v3775 = vsel %vm326, %v3774, %v3770
  %v3776 = vsel %vm337, %v3775, %v3766
  %v3778 = vsel %vm340, %v3776, -inf
  %3779 = vmax.xlane.f32.xlu0 %v3778
  %v3780 = vpop.xlane.xlu0 %3779
  %v3782 = vlaneseq
  %v3783 = vshrl.u32 %v3782, 7
  %v3784 = vsub.s32 0, %v3783
  %v3785 = vrot.slane %v3780, %v3784
  %v3786 = vlaneseq
  %v3787 = vshrl.u32 %v3786, 7
  %v3788 = vsub.s32 1, %v3787
  %v3789 = vrot.slane %v3780, %v3788
  %v3792 = vsub.f32 %v3738, %v3785
  %v3793 = vsub.f32 %v3739, %v3785
  %v3794 = vsub.f32 %v3740, %v3789
  %v3795 = vsub.f32 %v3741, %v3789
  %v3796 = vmul.f32 %v3792, 1.442695
  %v3797 = vpow.pop %v3796
  %v3798 = vmul.f32 %v3793, 1.442695
  %v3799 = vpow.pop %v3798
  %v3800 = vmul.f32 %v3794, 1.442695
  %v3801 = vpow.pop %v3800
  %v3802 = vmul.f32 %v3795, 1.442695
  %v3803 = vpow.pop %v3802
  %3808 = vset.pattern.permute.xlu0 0
  %3809 = vperm.xlu0 %3808, %v3797
  %v3810 = vpop.permute.xlu0 %3809
  %3811 = vset.pattern.permute.xlu0 0
  %3812 = vperm.xlu0 %3811, %v3799
  %v3813 = vpop.permute.xlu0 %3812
  %3814 = vset.pattern.permute.xlu0 0
  %3815 = vperm.xlu0 %3814, %v3801
  %v3816 = vpop.permute.xlu0 %3815
  %3817 = vset.pattern.permute.xlu0 0
  %3818 = vperm.xlu0 %3817, %v3803
  %v3819 = vpop.permute.xlu0 %3818
  %v3820 = vlaneseq
  %v3821 = vshrl.u32 %v3820, 7
  %v3822 = vsub.s32 %v54, %v3821
  %v3823 = vrot.slane %v3810, %v3822
  %v3824 = vlaneseq
  %v3825 = vshrl.u32 %v3824, 7
  %v3826 = vsub.s32 %v321, %v3825
  %v3827 = vrot.slane %v3813, %v3826
  %v3828 = vsel %vm326, %v3827, %v3823
  %v3829 = vlaneseq
  %v3830 = vshrl.u32 %v3829, 7
  %v3831 = vsub.s32 %v54, %v3830
  %v3832 = vrot.slane %v3816, %v3831
  %v3833 = vlaneseq
  %v3834 = vshrl.u32 %v3833, 7
  %v3835 = vsub.s32 %v321, %v3834
  %v3836 = vrot.slane %v3819, %v3835
  %v3837 = vsel %vm326, %v3836, %v3832
  %v3838 = vsel %vm337, %v3837, %v3828
  %v3840 = vsel %vm340, %v3838, 0.0
  %3841 = vadd.xlane.f32.xlu0 %v3840
  %v3842 = vpop.xlane.xlu0 %3841
  %v3843 = vrcp.pop %v3842
  %v3845 = vlaneseq
  %v3846 = vshrl.u32 %v3845, 7
  %v3847 = vsub.s32 0, %v3846
  %v3848 = vrot.slane %v3843, %v3847
  %v3849 = vlaneseq
  %v3850 = vshrl.u32 %v3849, 7
  %v3851 = vsub.s32 1, %v3850
  %v3852 = vrot.slane %v3843, %v3851
  %v3855 = vmul.f32 %v3797, %v3848
  %v3856 = vmul.f32 %v3799, %v3848
  %v3857 = vmul.f32 %v3801, %v3852
  %v3858 = vmul.f32 %v3803, %v3852
  %3860 = vset.pattern.permute.xlu0 0
  %3861 = vperm.xlu0 %3860, %v3855
  %v3862 = vpop.permute.xlu0 %3861
  %3865 = vset.pattern.permute.xlu0 0
  %3866 = vperm.xlu0 %3865, %v3856
  %v3867 = vpop.permute.xlu0 %3866
  %3870 = vset.pattern.permute.xlu0 0
  %3871 = vperm.xlu0 %3870, %v3857
  %v3872 = vpop.permute.xlu0 %3871
  %3875 = vset.pattern.permute.xlu0 0
  %3876 = vperm.xlu0 %3875, %v3858
  %v3877 = vpop.permute.xlu0 %3876
  %v3879 = vmul.f32 %v3862, %v26
  %v3880 = vmul.f32 %v3867, %v27
  %v3881 = vmul.f32 %v3872, %v28
  %v3882 = vmul.f32 %v3877, %v29
  %v3883 = vsel %vm59, %v3879, 0.0
  %v3884 = vsel %vm59, %v3880, 0.0
  %v3885 = vadd.f32 %v3883, %v3884
  %v3886 = vrot.slane %v3885, 4
  %v3887 = vadd.f32 %v3885, %v3886
  %v3888 = vrot.slane %v3887, 2
  %v3889 = vadd.f32 %v3887, %v3888
  %v3890 = vrot.slane %v3889, 1
  %v3891 = vadd.f32 %v3889, %v3890
  %v3892 = vsel %vm59, %v3881, 0.0
  %v3893 = vsel %vm59, %v3882, 0.0
  %v3894 = vadd.f32 %v3892, %v3893
  %v3895 = vrot.slane %v3894, 4
  %v3896 = vadd.f32 %v3894, %v3895
  %v3897 = vrot.slane %v3896, 2
  %v3898 = vadd.f32 %v3896, %v3897
  %v3899 = vrot.slane %v3898, 1
  %v3900 = vadd.f32 %v3898, %v3899
  %v3901 = vpack.c.bf16 %v3891, %v3891
  %v3902 = vpack.c.bf16 %v3900, %v3900
  %v3905 = vunpack.c.l.b16 %v3901
  %v3906 = vunpack.c.l.b16 %v3902
  %v3907 = vsel %vm337, %v3906, %v3905
  %v3908 = vpack.c.b16 %v3907, %v3907
  %v3910 = vsel %vm59, %v3908, 0
  %3912 = vmatprep.subr.bf16.mxu0 0
  %3913 = vmatpush1.bf16.msra.mxu0 %v480
  %3914 = vmatprep.subr.bf16.mxu0 0
  %3915 = vmatpush1.bf16.msra.mxu0 %v481
  %3916 = vmatprep.subr.bf16.mxu0 0
  %3917 = vmatpush1.bf16.msra.mxu0 0
  %3918 = vmatprep.subr.bf16.mxu0 0
  %3919 = vmatpush1.bf16.msra.mxu0 0
  %3920 = vmatprep.subr.bf16.mxu0 0
  %3921 = vmatpush1.bf16.msra.mxu0 0
  %3922 = vmatprep.subr.bf16.mxu0 0
  %3923 = vmatpush1.bf16.msra.mxu0 0
  %3924 = vmatprep.subr.bf16.mxu0 0
  %3925 = vmatpush1.bf16.msra.mxu0 0
  %3926 = vmatprep.subr.bf16.mxu0 0
  %3927 = vmatpush1.bf16.msra.mxu0 0
  %3928 = vmatprep.subr.bf16.mxu0 0
  %3929 = vmatpush1.bf16.msra.mxu0 0
  %3930 = vmatprep.subr.bf16.mxu0 0
  %3931 = vmatpush1.bf16.msra.mxu0 0
  %3932 = vmatprep.subr.bf16.mxu0 0
  %3933 = vmatpush1.bf16.msra.mxu0 0
  %3934 = vmatprep.subr.bf16.mxu0 0
  %3935 = vmatpush1.bf16.msra.mxu0 0
  %3936 = vmatprep.subr.bf16.mxu0 0
  %3937 = vmatpush1.bf16.msra.mxu0 0
  %3938 = vmatprep.subr.bf16.mxu0 0
  %3939 = vmatpush1.bf16.msra.mxu0 0
  %3940 = vmatprep.subr.bf16.mxu0 0
  %3941 = vmatpush1.bf16.msra.mxu0 0
  %3942 = vmatprep.subr.bf16.mxu0 0
  %3943 = vmatpush1.bf16.msra.mxu0 0
  %3944 = vmatprep.mubr.bf16.mxu0 0
  %3945 = vmatmul.mubr.bf16.gmra.mrb[0].mxu0 %v3910
  %v3946 = vpop.f32.mrb[0].mxu0
  %v3947 = vadd.f32 0.0, %v3946
  %v3948 = vpop.f32.mrb[0].mxu0
  %v3949 = vpop.f32.mrb[0].mxu0
  %v3950 = vpop.f32.mrb[0].mxu0
  %3951 = vdwg.mxu0
  %3953 = vrot.lane.b32.xlu0 %v3947, 32
  %v3954 = vpop.permute.xlu0 %3953
  %v3956 = vadd.f32 %v3684, %v3954
  %v3959 = vunpack.c.l.s4 1966171168
  %v3960 = vunpack.c.0.s8 %v3959
  %v3961 = vlaneseq
  %v3962 = vshrl.u32 %v3961, 7
  %v3963 = vsub.s32 %v3960, %v3962
  %v3964 = vrot.slane %v3956, %v3963
  %v3965 = vcombine.high %v3964, %v3964
  %v3967 = vunpack.c.l.s4 1966171168
  %v3968 = vunpack.c.0.s8 %v3967
  %v3969 = vlaneseq
  %v3970 = vshrl.u32 %v3969, 7
  %v3971 = vsub.s32 %v3968, %v3970
  %v3972 = vrot.slane %v3964, %v3971
  %v3974 = vunpack.c.l.s4 1966171168
  %v3975 = vunpack.c.0.s8 %v3974
  %v3976 = vlaneseq
  %v3977 = vshrl.u32 %v3976, 7
  %v3978 = vsub.s32 %v3975, %v3977
  %v3979 = vrot.slane %v3965, %v3978
  %v3980 = vlaneseq
  %v3981 = vshrl.u32 %v3980, 7
  %v3982 = vsub.s32 0, %v3981
  %v3983 = vrot.slane %v3972, %v3982
  %v3984 = vlaneseq
  %v3985 = vshrl.u32 %v3984, 7
  %v3986 = vsub.s32 0, %v3985
  %v3987 = vrot.slane %v3979, %v3986
  %v3990 = vmul.f32 %v3983, %v568
  %v3991 = vmul.f32 %v3987, %v570
  %3994 = vrot.lane.b32.xlu0 %v3990, 96
  %v3995 = vpop.permute.xlu0 %3994
  %3996 = vrot.lane.b32.xlu0 %v3991, 96
  %v3997 = vpop.permute.xlu0 %3996
  %v4000 = vsel %vm59, %v3995, 0.0
  %4001 = vadd.xlane.f32.xlu0 %v4000
  %v4002 = vpop.xlane.xlu0 %4001
  %v4003 = vsel %vm59, %v3997, 0.0
  %4004 = vadd.xlane.f32.xlu0 %v4003
  %v4005 = vpop.xlane.xlu0 %4004
  %4006 = vset.pattern.permute.xlu0 64
  %4007 = vperm.xlu0 %4006, %v3956
  %v4008 = vpop.permute.xlu0 %4007
  %v4010 = vmul.f32 %v3534, %v4008
  %v4012 = vlaneseq
  %v4013 = vshrl.u32 %v4012, 7
  %v4014 = vsub.s32 0, %v4013
  %v4015 = vrot.slane %v4010, %v4014
  %4017 = vbcast.lane.b32.xlu0 %v4015, 256
  %v4018 = vpop.permute.xlu0 %4017
  %v4019 = vlaneseq
  %v4020 = vshrl.u32 %v4019, 7
  %v4021 = vsub.s32 1, %v4020
  %v4022 = vrot.slane %v4010, %v4021
  %4024 = vbcast.lane.b32.xlu0 %v4022, 256
  %v4025 = vpop.permute.xlu0 %4024
  %v4028 = vadd.f32 %v4002, %v4018
  %v4029 = vadd.f32 %v4005, %v4025
  %v4030 = vsub.f32 %v4028, %v614
  %v4031 = vsub.f32 %v4029, %v621
  %4034 = vset.pattern.permute.xlu0 0
  %4035 = vperm.xlu0 %4034, %v4030
  %v4036 = vpop.permute.xlu0 %4035
  %4037 = vset.pattern.permute.xlu0 0
  %4038 = vperm.xlu0 %4037, %v4031
  %v4039 = vpop.permute.xlu0 %4038
  %v4040 = vlaneseq
  %v4041 = vshrl.u32 %v4040, 7
  %v4042 = vsub.s32 %v54, %v4041
  %v4043 = vrot.slane %v4036, %v4042
  %v4044 = vlaneseq
  %v4045 = vshrl.u32 %v4044, 7
  %v4046 = vsub.s32 %v54, %v4045
  %v4047 = vrot.slane %v4039, %v4046
  %v4048 = vsel %vm337, %v4047, %v4043
  %v4050 = vsel %vm644, %v4048, -inf
  %4051 = vmax.xlane.f32.xlu0 %v4050
  %v4052 = vpop.xlane.xlu0 %4051
  %v4054 = vlaneseq
  %v4055 = vshrl.u32 %v4054, 7
  %v4056 = vsub.s32 0, %v4055
  %v4057 = vrot.slane %v4052, %v4056
  %v4058 = vlaneseq
  %v4059 = vshrl.u32 %v4058, 7
  %v4060 = vsub.s32 1, %v4059
  %v4061 = vrot.slane %v4052, %v4060
  %vm4064 = vcmp.ge.f32.partialorder %v4030, %v4057
  %vm4065 = vcmp.ge.f32.partialorder %v4031, %v4061
  %v4066 = vsel %vm4064, %v663, 8
  %v4067 = vsel %vm4065, %v663, 8
  %4068 = vset.pattern.permute.xlu0 0
  %4069 = vperm.xlu0 %4068, %v4066
  %v4070 = vpop.permute.xlu0 %4069
  %4071 = vset.pattern.permute.xlu0 0
  %4072 = vperm.xlu0 %4071, %v4067
  %v4073 = vpop.permute.xlu0 %4072
  %v4074 = vlaneseq
  %v4075 = vshrl.u32 %v4074, 7
  %v4076 = vsub.s32 %v54, %v4075
  %v4077 = vrot.slane %v4070, %v4076
  %v4078 = vlaneseq
  %v4079 = vshrl.u32 %v4078, 7
  %v4080 = vsub.s32 %v54, %v4079
  %v4081 = vrot.slane %v4073, %v4080
  %v4082 = vsel %vm337, %v4081, %v4077
  %v4083 = vsel %vm644, %v4082, 2147483647
  %v4084 = vand.u32 %v4083, 65535
  %v4085 = vshra.s32 %v4083, 16
  %v4086 = vcvt.s32.f32 %v4084
  %v4087 = vcvt.s32.f32 %v4085
  %4088 = vmin.xlane.f32.xlu0 %v4087
  %v4089 = vpop.xlane.xlu0 %4088
  %vm4090 = vcmp.eq.f32.partialorder %v4087, %v4089
  %v4091 = vsel %vm4090, %v4086, inf
  %4092 = vmin.xlane.f32.xlu0 %v4091
  %v4093 = vpop.xlane.xlu0 %4092
  %v4094 = vcvt.f32.s32 %v4093
  %v4095 = vcvt.f32.s32 %v4089
  %v4096 = vshll.u32 %v4095, 16
  %v4097 = vadd.s32 %v4096, %v4094
  %vm4098 = vcmp.eq.s32.totalorder %v54, %v4097
  %v4099 = vsel %vm4098, 1, 0
  %v4100 = vcvt.s32.f32 %v4099
  %v4101 = vmax.f32 %v3534, %v4100
  %v4102 = vlaneseq
  %v4103 = vshrl.u32 %v4102, 7
  %v4104 = vsub.s32 0, %v4103
  %v4105 = vrot.slane %v4100, %v4104
  %4107 = vbcast.lane.b32.xlu0 %v4105, 256
  %v4108 = vpop.permute.xlu0 %4107
  %v4109 = vlaneseq
  %v4110 = vshrl.u32 %v4109, 7
  %v4111 = vsub.s32 1, %v4110
  %v4112 = vrot.slane %v4100, %v4111
  %4114 = vbcast.lane.b32.xlu0 %v4112, 256
  %v4115 = vpop.permute.xlu0 %4114
  %v4116 = vmul.f32 %v4108, %v24
  %v4117 = vmul.f32 %v4115, %v25
  %v4118 = vsel %vm59, %v4116, 0.0
  %v4119 = vrot.slane %v4118, 4
  %v4120 = vadd.f32 %v4118, %v4119
  %v4121 = vrot.slane %v4120, 2
  %v4122 = vadd.f32 %v4120, %v4121
  %v4123 = vrot.slane %v4122, 1
  %v4124 = vadd.f32 %v4122, %v4123
  %v4125 = vsel %vm59, %v4117, 0.0
  %v4126 = vrot.slane %v4125, 4
  %v4127 = vadd.f32 %v4125, %v4126
  %v4128 = vrot.slane %v4127, 2
  %v4129 = vadd.f32 %v4127, %v4128
  %v4130 = vrot.slane %v4129, 1
  %v4131 = vadd.f32 %v4129, %v4130
  %v4134 = vsel %vm337, %v4131, %v4124
  %4137 = vrot.lane.b32.xlu0 %v3641, 64
  %v4138 = vpop.permute.xlu0 %4137
  %v4140 = vsel %vm59, %v4134, %v4138
  %v4141 = vpack.c.bf16 %v4140, %v4140
  %v4143 = vsel %vm90, %v4141, 0
  %4145 = vmatprep.subr.bf16.mxu0 0
  %4146 = vmatpush1.bf16.msra.mxu0 %v82
  %4147 = vmatprep.subr.bf16.mxu0 0
  %4148 = vmatpush1.bf16.msra.mxu0 %v83
  %4149 = vmatprep.subr.bf16.mxu0 0
  %4150 = vmatpush1.bf16.msra.mxu0 %v84
  %4151 = vmatprep.subr.bf16.mxu0 0
  %4152 = vmatpush1.bf16.msra.mxu0 %v85
  %4153 = vmatprep.subr.bf16.mxu0 0
  %4154 = vmatpush1.bf16.msra.mxu0 0
  %4155 = vmatprep.subr.bf16.mxu0 0
  %4156 = vmatpush1.bf16.msra.mxu0 0
  %4157 = vmatprep.subr.bf16.mxu0 0
  %4158 = vmatpush1.bf16.msra.mxu0 0
  %4159 = vmatprep.subr.bf16.mxu0 0
  %4160 = vmatpush1.bf16.msra.mxu0 0
  %4161 = vmatprep.subr.bf16.mxu0 0
  %4162 = vmatpush1.bf16.msra.mxu0 0
  %4163 = vmatprep.subr.bf16.mxu0 0
  %4164 = vmatpush1.bf16.msra.mxu0 0
  %4165 = vmatprep.subr.bf16.mxu0 0
  %4166 = vmatpush1.bf16.msra.mxu0 0
  %4167 = vmatprep.subr.bf16.mxu0 0
  %4168 = vmatpush1.bf16.msra.mxu0 0
  %4169 = vmatprep.subr.bf16.mxu0 0
  %4170 = vmatpush1.bf16.msra.mxu0 0
  %4171 = vmatprep.subr.bf16.mxu0 0
  %4172 = vmatpush1.bf16.msra.mxu0 0
  %4173 = vmatprep.subr.bf16.mxu0 0
  %4174 = vmatpush1.bf16.msra.mxu0 0
  %4175 = vmatprep.subr.bf16.mxu0 0
  %4176 = vmatpush1.bf16.msra.mxu0 0
  %4177 = vmatprep.mubr.bf16.mxu0 0
  %4178 = vmatmul.mubr.bf16.gmra.mrb[0].mxu0 %v4143
  %v4179 = vpop.f32.mrb[0].mxu0
  %v4180 = vadd.f32 %v65, %v4179
  %v4181 = vpop.f32.mrb[0].mxu0
  %v4182 = vpop.f32.mrb[0].mxu0
  %v4183 = vpop.f32.mrb[0].mxu0
  %4184 = vdwg.mxu0
  %v4185 = vxor.u32 %v4180, 2147483648
  %v4186 = vmul.f32 %v4185, 1.442695
  %v4187 = vpow.pop %v4186
  %v4188 = vadd.f32 %v4187, 1.0
  %v4189 = vrcp.pop %v4188
  %v4190 = vmul.f32 1.0, %v4189
  %v4191 = vtanh.pop %v4180
  %v4192 = vmul.f32 %v4190, %v3635
  %4194 = vrot.lane.b32.xlu0 %v4191, 64
  %v4195 = vpop.permute.xlu0 %4194
  %v4197 = vmul.f32 %v4190, %v4195
  %4199 = vrot.lane.b32.xlu0 %v4197, 32
  %v4200 = vpop.permute.xlu0 %4199
  %v4202 = vadd.f32 %v4192, %v4200
  %v4203 = vtanh.pop %v4202
  %4205 = vrot.lane.b32.xlu0 %v4203, 64
  %v4206 = vpop.permute.xlu0 %4205
  %v4208 = vmul.f32 %v4190, %v4206
  %v4209 = vpack.c.bf16 %v4208, %v4208
  %4211 = vrot.lane.b32.xlu0 %v4209, 32
  %v4212 = vpop.permute.xlu0 %4211
  %v4214 = vsel %vm59, %v4212, 0
  %4216 = vmatprep.subr.bf16.mxu0 0
  %4217 = vmatpush1.bf16.msra.mxu0 %v174
  %4218 = vmatprep.subr.bf16.mxu0 0
  %4219 = vmatpush1.bf16.msra.mxu0 %v175
  %4220 = vmatprep.subr.bf16.mxu0 0
  %4221 = vmatpush1.bf16.msra.mxu0 0
  %4222 = vmatprep.subr.bf16.mxu0 0
  %4223 = vmatpush1.bf16.msra.mxu0 0
  %4224 = vmatprep.subr.bf16.mxu0 0
  %4225 = vmatpush1.bf16.msra.mxu0 0
  %4226 = vmatprep.subr.bf16.mxu0 0
  %4227 = vmatpush1.bf16.msra.mxu0 0
  %4228 = vmatprep.subr.bf16.mxu0 0
  %4229 = vmatpush1.bf16.msra.mxu0 0
  %4230 = vmatprep.subr.bf16.mxu0 0
  %4231 = vmatpush1.bf16.msra.mxu0 0
  %4232 = vmatprep.subr.bf16.mxu0 0
  %4233 = vmatpush1.bf16.msra.mxu0 0
  %4234 = vmatprep.subr.bf16.mxu0 0
  %4235 = vmatpush1.bf16.msra.mxu0 0
  %4236 = vmatprep.subr.bf16.mxu0 0
  %4237 = vmatpush1.bf16.msra.mxu0 0
  %4238 = vmatprep.subr.bf16.mxu0 0
  %4239 = vmatpush1.bf16.msra.mxu0 0
  %4240 = vmatprep.subr.bf16.mxu0 0
  %4241 = vmatpush1.bf16.msra.mxu0 0
  %4242 = vmatprep.subr.bf16.mxu0 0
  %4243 = vmatpush1.bf16.msra.mxu0 0
  %4244 = vmatprep.subr.bf16.mxu0 0
  %4245 = vmatpush1.bf16.msra.mxu0 0
  %4246 = vmatprep.subr.bf16.mxu0 0
  %4247 = vmatpush1.bf16.msra.mxu0 0
  %4248 = vmatprep.mubr.bf16.mxu0 0
  %4249 = vmatmul.mubr.bf16.gmra.mrb[0].mxu0 %v4214
  %v4250 = vpop.f32.mrb[0].mxu0
  %v4251 = vadd.f32 %v162, %v4250
  %v4252 = vpop.f32.mrb[0].mxu0
  %v4253 = vpop.f32.mrb[0].mxu0
  %v4254 = vpop.f32.mrb[0].mxu0
  %4255 = vdwg.mxu0
  %v4258 = vunpack.c.l.s4 1966171168
  %v4259 = vunpack.c.0.s8 %v4258
  %v4260 = vlaneseq
  %v4261 = vshrl.u32 %v4260, 7
  %v4262 = vsub.s32 %v4259, %v4261
  %v4263 = vrot.slane %v4251, %v4262
  %v4264 = vcombine.high %v4263, %v4263
  %v4266 = vunpack.c.l.s4 1966171168
  %v4267 = vunpack.c.0.s8 %v4266
  %v4268 = vlaneseq
  %v4269 = vshrl.u32 %v4268, 7
  %v4270 = vsub.s32 %v4267, %v4269
  %v4271 = vrot.slane %v4263, %v4270
  %v4273 = vunpack.c.l.s4 1966171168
  %v4274 = vunpack.c.0.s8 %v4273
  %v4275 = vlaneseq
  %v4276 = vshrl.u32 %v4275, 7
  %v4277 = vsub.s32 %v4274, %v4276
  %v4278 = vrot.slane %v4264, %v4277
  %v4279 = vlaneseq
  %v4280 = vshrl.u32 %v4279, 7
  %v4281 = vsub.s32 0, %v4280
  %v4282 = vrot.slane %v4271, %v4281
  %v4283 = vlaneseq
  %v4284 = vshrl.u32 %v4283, 7
  %v4285 = vsub.s32 0, %v4284
  %v4286 = vrot.slane %v4278, %v4285
  %v4289 = vmul.f32 %v4282, %v26
  %v4290 = vmul.f32 %v4282, %v27
  %v4291 = vmul.f32 %v4286, %v28
  %v4292 = vmul.f32 %v4286, %v29
  %v4293 = vsel %vm59, %v4289, 0.0
  %4294 = vadd.xlane.f32.xlu0 %v4293
  %v4295 = vpop.xlane.xlu0 %4294
  %v4296 = vsel %vm59, %v4290, 0.0
  %4297 = vadd.xlane.f32.xlu0 %v4296
  %v4298 = vpop.xlane.xlu0 %4297
  %v4299 = vsel %vm59, %v4291, 0.0
  %4300 = vadd.xlane.f32.xlu0 %v4299
  %v4301 = vpop.xlane.xlu0 %4300
  %v4302 = vsel %vm59, %v4292, 0.0
  %4303 = vadd.xlane.f32.xlu0 %v4302
  %v4304 = vpop.xlane.xlu0 %4303
  %v4305 = vsub.f32 %v4295, %v277
  %v4306 = vsub.f32 %v4298, %v281
  %v4307 = vsub.f32 %v4301, %v288
  %v4308 = vsub.f32 %v4304, %v292
  %4313 = vset.pattern.permute.xlu0 0
  %4314 = vperm.xlu0 %4313, %v4305
  %v4315 = vpop.permute.xlu0 %4314
  %4316 = vset.pattern.permute.xlu0 0
  %4317 = vperm.xlu0 %4316, %v4306
  %v4318 = vpop.permute.xlu0 %4317
  %4319 = vset.pattern.permute.xlu0 0
  %4320 = vperm.xlu0 %4319, %v4307
  %v4321 = vpop.permute.xlu0 %4320
  %4322 = vset.pattern.permute.xlu0 0
  %4323 = vperm.xlu0 %4322, %v4308
  %v4324 = vpop.permute.xlu0 %4323
  %v4325 = vlaneseq
  %v4326 = vshrl.u32 %v4325, 7
  %v4327 = vsub.s32 %v54, %v4326
  %v4328 = vrot.slane %v4315, %v4327
  %v4329 = vlaneseq
  %v4330 = vshrl.u32 %v4329, 7
  %v4331 = vsub.s32 %v321, %v4330
  %v4332 = vrot.slane %v4318, %v4331
  %v4333 = vsel %vm326, %v4332, %v4328
  %v4334 = vlaneseq
  %v4335 = vshrl.u32 %v4334, 7
  %v4336 = vsub.s32 %v54, %v4335
  %v4337 = vrot.slane %v4321, %v4336
  %v4338 = vlaneseq
  %v4339 = vshrl.u32 %v4338, 7
  %v4340 = vsub.s32 %v321, %v4339
  %v4341 = vrot.slane %v4324, %v4340
  %v4342 = vsel %vm326, %v4341, %v4337
  %v4343 = vsel %vm337, %v4342, %v4333
  %v4345 = vsel %vm340, %v4343, -inf
  %4346 = vmax.xlane.f32.xlu0 %v4345
  %v4347 = vpop.xlane.xlu0 %4346
  %v4349 = vlaneseq
  %v4350 = vshrl.u32 %v4349, 7
  %v4351 = vsub.s32 0, %v4350
  %v4352 = vrot.slane %v4347, %v4351
  %v4353 = vlaneseq
  %v4354 = vshrl.u32 %v4353, 7
  %v4355 = vsub.s32 1, %v4354
  %v4356 = vrot.slane %v4347, %v4355
  %v4359 = vsub.f32 %v4305, %v4352
  %v4360 = vsub.f32 %v4306, %v4352
  %v4361 = vsub.f32 %v4307, %v4356
  %v4362 = vsub.f32 %v4308, %v4356
  %v4363 = vmul.f32 %v4359, 1.442695
  %v4364 = vpow.pop %v4363
  %v4365 = vmul.f32 %v4360, 1.442695
  %v4366 = vpow.pop %v4365
  %v4367 = vmul.f32 %v4361, 1.442695
  %v4368 = vpow.pop %v4367
  %v4369 = vmul.f32 %v4362, 1.442695
  %v4370 = vpow.pop %v4369
  %4375 = vset.pattern.permute.xlu0 0
  %4376 = vperm.xlu0 %4375, %v4364
  %v4377 = vpop.permute.xlu0 %4376
  %4378 = vset.pattern.permute.xlu0 0
  %4379 = vperm.xlu0 %4378, %v4366
  %v4380 = vpop.permute.xlu0 %4379
  %4381 = vset.pattern.permute.xlu0 0
  %4382 = vperm.xlu0 %4381, %v4368
  %v4383 = vpop.permute.xlu0 %4382
  %4384 = vset.pattern.permute.xlu0 0
  %4385 = vperm.xlu0 %4384, %v4370
  %v4386 = vpop.permute.xlu0 %4385
  %v4387 = vlaneseq
  %v4388 = vshrl.u32 %v4387, 7
  %v4389 = vsub.s32 %v54, %v4388
  %v4390 = vrot.slane %v4377, %v4389
  %v4391 = vlaneseq
  %v4392 = vshrl.u32 %v4391, 7
  %v4393 = vsub.s32 %v321, %v4392
  %v4394 = vrot.slane %v4380, %v4393
  %v4395 = vsel %vm326, %v4394, %v4390
  %v4396 = vlaneseq
  %v4397 = vshrl.u32 %v4396, 7
  %v4398 = vsub.s32 %v54, %v4397
  %v4399 = vrot.slane %v4383, %v4398
  %v4400 = vlaneseq
  %v4401 = vshrl.u32 %v4400, 7
  %v4402 = vsub.s32 %v321, %v4401
  %v4403 = vrot.slane %v4386, %v4402
  %v4404 = vsel %vm326, %v4403, %v4399
  %v4405 = vsel %vm337, %v4404, %v4395
  %v4407 = vsel %vm340, %v4405, 0.0
  %4408 = vadd.xlane.f32.xlu0 %v4407
  %v4409 = vpop.xlane.xlu0 %4408
  %v4410 = vrcp.pop %v4409
  %v4412 = vlaneseq
  %v4413 = vshrl.u32 %v4412, 7
  %v4414 = vsub.s32 0, %v4413
  %v4415 = vrot.slane %v4410, %v4414
  %v4416 = vlaneseq
  %v4417 = vshrl.u32 %v4416, 7
  %v4418 = vsub.s32 1, %v4417
  %v4419 = vrot.slane %v4410, %v4418
  %v4422 = vmul.f32 %v4364, %v4415
  %v4423 = vmul.f32 %v4366, %v4415
  %v4424 = vmul.f32 %v4368, %v4419
  %v4425 = vmul.f32 %v4370, %v4419
  %4427 = vset.pattern.permute.xlu0 0
  %4428 = vperm.xlu0 %4427, %v4422
  %v4429 = vpop.permute.xlu0 %4428
  %4432 = vset.pattern.permute.xlu0 0
  %4433 = vperm.xlu0 %4432, %v4423
  %v4434 = vpop.permute.xlu0 %4433
  %4437 = vset.pattern.permute.xlu0 0
  %4438 = vperm.xlu0 %4437, %v4424
  %v4439 = vpop.permute.xlu0 %4438
  %4442 = vset.pattern.permute.xlu0 0
  %4443 = vperm.xlu0 %4442, %v4425
  %v4444 = vpop.permute.xlu0 %4443
  %v4446 = vmul.f32 %v4429, %v26
  %v4447 = vmul.f32 %v4434, %v27
  %v4448 = vmul.f32 %v4439, %v28
  %v4449 = vmul.f32 %v4444, %v29
  %v4450 = vsel %vm59, %v4446, 0.0
  %v4451 = vsel %vm59, %v4447, 0.0
  %v4452 = vadd.f32 %v4450, %v4451
  %v4453 = vrot.slane %v4452, 4
  %v4454 = vadd.f32 %v4452, %v4453
  %v4455 = vrot.slane %v4454, 2
  %v4456 = vadd.f32 %v4454, %v4455
  %v4457 = vrot.slane %v4456, 1
  %v4458 = vadd.f32 %v4456, %v4457
  %v4459 = vsel %vm59, %v4448, 0.0
  %v4460 = vsel %vm59, %v4449, 0.0
  %v4461 = vadd.f32 %v4459, %v4460
  %v4462 = vrot.slane %v4461, 4
  %v4463 = vadd.f32 %v4461, %v4462
  %v4464 = vrot.slane %v4463, 2
  %v4465 = vadd.f32 %v4463, %v4464
  %v4466 = vrot.slane %v4465, 1
  %v4467 = vadd.f32 %v4465, %v4466
  %v4468 = vpack.c.bf16 %v4458, %v4458
  %v4469 = vpack.c.bf16 %v4467, %v4467
  %v4472 = vunpack.c.l.b16 %v4468
  %v4473 = vunpack.c.l.b16 %v4469
  %v4474 = vsel %vm337, %v4473, %v4472
  %v4475 = vpack.c.b16 %v4474, %v4474
  %v4477 = vsel %vm59, %v4475, 0
  %4479 = vmatprep.subr.bf16.mxu0 0
  %4480 = vmatpush1.bf16.msra.mxu0 %v480
  %4481 = vmatprep.subr.bf16.mxu0 0
  %4482 = vmatpush1.bf16.msra.mxu0 %v481
  %4483 = vmatprep.subr.bf16.mxu0 0
  %4484 = vmatpush1.bf16.msra.mxu0 0
  %4485 = vmatprep.subr.bf16.mxu0 0
  %4486 = vmatpush1.bf16.msra.mxu0 0
  %4487 = vmatprep.subr.bf16.mxu0 0
  %4488 = vmatpush1.bf16.msra.mxu0 0
  %4489 = vmatprep.subr.bf16.mxu0 0
  %4490 = vmatpush1.bf16.msra.mxu0 0
  %4491 = vmatprep.subr.bf16.mxu0 0
  %4492 = vmatpush1.bf16.msra.mxu0 0
  %4493 = vmatprep.subr.bf16.mxu0 0
  %4494 = vmatpush1.bf16.msra.mxu0 0
  %4495 = vmatprep.subr.bf16.mxu0 0
  %4496 = vmatpush1.bf16.msra.mxu0 0
  %4497 = vmatprep.subr.bf16.mxu0 0
  %4498 = vmatpush1.bf16.msra.mxu0 0
  %4499 = vmatprep.subr.bf16.mxu0 0
  %4500 = vmatpush1.bf16.msra.mxu0 0
  %4501 = vmatprep.subr.bf16.mxu0 0
  %4502 = vmatpush1.bf16.msra.mxu0 0
  %4503 = vmatprep.subr.bf16.mxu0 0
  %4504 = vmatpush1.bf16.msra.mxu0 0
  %4505 = vmatprep.subr.bf16.mxu0 0
  %4506 = vmatpush1.bf16.msra.mxu0 0
  %4507 = vmatprep.subr.bf16.mxu0 0
  %4508 = vmatpush1.bf16.msra.mxu0 0
  %4509 = vmatprep.subr.bf16.mxu0 0
  %4510 = vmatpush1.bf16.msra.mxu0 0
  %4511 = vmatprep.mubr.bf16.mxu0 0
  %4512 = vmatmul.mubr.bf16.gmra.mrb[0].mxu0 %v4477
  %v4513 = vpop.f32.mrb[0].mxu0
  %v4514 = vadd.f32 0.0, %v4513
  %v4515 = vpop.f32.mrb[0].mxu0
  %v4516 = vpop.f32.mrb[0].mxu0
  %v4517 = vpop.f32.mrb[0].mxu0
  %4518 = vdwg.mxu0
  %4520 = vrot.lane.b32.xlu0 %v4514, 32
  %v4521 = vpop.permute.xlu0 %4520
  %v4523 = vadd.f32 %v4251, %v4521
  %v4526 = vunpack.c.l.s4 1966171168
  %v4527 = vunpack.c.0.s8 %v4526
  %v4528 = vlaneseq
  %v4529 = vshrl.u32 %v4528, 7
  %v4530 = vsub.s32 %v4527, %v4529
  %v4531 = vrot.slane %v4523, %v4530
  %v4532 = vcombine.high %v4531, %v4531
  %v4534 = vunpack.c.l.s4 1966171168
  %v4535 = vunpack.c.0.s8 %v4534
  %v4536 = vlaneseq
  %v4537 = vshrl.u32 %v4536, 7
  %v4538 = vsub.s32 %v4535, %v4537
  %v4539 = vrot.slane %v4531, %v4538
  %v4541 = vunpack.c.l.s4 1966171168
  %v4542 = vunpack.c.0.s8 %v4541
  %v4543 = vlaneseq
  %v4544 = vshrl.u32 %v4543, 7
  %v4545 = vsub.s32 %v4542, %v4544
  %v4546 = vrot.slane %v4532, %v4545
  %v4547 = vlaneseq
  %v4548 = vshrl.u32 %v4547, 7
  %v4549 = vsub.s32 0, %v4548
  %v4550 = vrot.slane %v4539, %v4549
  %v4551 = vlaneseq
  %v4552 = vshrl.u32 %v4551, 7
  %v4553 = vsub.s32 0, %v4552
  %v4554 = vrot.slane %v4546, %v4553
  %v4557 = vmul.f32 %v4550, %v568
  %v4558 = vmul.f32 %v4554, %v570
  %4561 = vrot.lane.b32.xlu0 %v4557, 96
  %v4562 = vpop.permute.xlu0 %4561
  %4563 = vrot.lane.b32.xlu0 %v4558, 96
  %v4564 = vpop.permute.xlu0 %4563
  %v4567 = vsel %vm59, %v4562, 0.0
  %4568 = vadd.xlane.f32.xlu0 %v4567
  %v4569 = vpop.xlane.xlu0 %4568
  %v4570 = vsel %vm59, %v4564, 0.0
  %4571 = vadd.xlane.f32.xlu0 %v4570
  %v4572 = vpop.xlane.xlu0 %4571
  %4573 = vset.pattern.permute.xlu0 64
  %4574 = vperm.xlu0 %4573, %v4523
  %v4575 = vpop.permute.xlu0 %4574
  %v4577 = vmul.f32 %v4101, %v4575
  %v4579 = vlaneseq
  %v4580 = vshrl.u32 %v4579, 7
  %v4581 = vsub.s32 0, %v4580
  %v4582 = vrot.slane %v4577, %v4581
  %4584 = vbcast.lane.b32.xlu0 %v4582, 256
  %v4585 = vpop.permute.xlu0 %4584
  %v4586 = vlaneseq
  %v4587 = vshrl.u32 %v4586, 7
  %v4588 = vsub.s32 1, %v4587
  %v4589 = vrot.slane %v4577, %v4588
  %4591 = vbcast.lane.b32.xlu0 %v4589, 256
  %v4592 = vpop.permute.xlu0 %4591
  %v4595 = vadd.f32 %v4569, %v4585
  %v4596 = vadd.f32 %v4572, %v4592
  %v4597 = vsub.f32 %v4595, %v614
  %v4598 = vsub.f32 %v4596, %v621
  %v4599 = vlaneseq
  %v4600 = vshrl.u32 %v4599, 7
  %v4601 = vsub.s32 %v321, %v4600
  %v4602 = vrot.slane %v1201, %v4601
  %v4603 = vlaneseq
  %v4604 = vshrl.u32 %v4603, 7
  %v4605 = vsub.s32 %v321, %v4604
  %v4606 = vrot.slane %v1204, %v4605
  %v4607 = vsel %vm337, %v4606, %v4602
  %v4609 = vadd.s32 %v54, 4294967280
  %v4610 = vlaneseq
  %v4611 = vshrl.u32 %v4610, 7
  %v4612 = vsub.s32 %v4609, %v4611
  %v4613 = vrot.slane %v1768, %v4612
  %v4614 = vlaneseq
  %v4615 = vshrl.u32 %v4614, 7
  %v4616 = vsub.s32 %v4609, %v4615
  %v4617 = vrot.slane %v1771, %v4616
  %v4618 = vsel %vm337, %v4617, %v4613
  %v4620 = vadd.s32 %v54, 4294967272
  %v4621 = vlaneseq
  %v4622 = vshrl.u32 %v4621, 7
  %v4623 = vsub.s32 %v4620, %v4622
  %v4624 = vrot.slane %v2335, %v4623
  %v4625 = vlaneseq
  %v4626 = vshrl.u32 %v4625, 7
  %v4627 = vsub.s32 %v4620, %v4626
  %v4628 = vrot.slane %v2338, %v4627
  %v4629 = vsel %vm337, %v4628, %v4624
  %v4631 = vadd.s32 %v54, 4294967264
  %v4632 = vlaneseq
  %v4633 = vshrl.u32 %v4632, 7
  %v4634 = vsub.s32 %v4631, %v4633
  %v4635 = vrot.slane %v2902, %v4634
  %v4636 = vlaneseq
  %v4637 = vshrl.u32 %v4636, 7
  %v4638 = vsub.s32 %v4631, %v4637
  %v4639 = vrot.slane %v2905, %v4638
  %v4640 = vsel %vm337, %v4639, %v4635
  %v4642 = vadd.s32 %v54, 4294967256
  %v4643 = vlaneseq
  %v4644 = vshrl.u32 %v4643, 7
  %v4645 = vsub.s32 %v4642, %v4644
  %v4646 = vrot.slane %v3469, %v4645
  %v4647 = vlaneseq
  %v4648 = vshrl.u32 %v4647, 7
  %v4649 = vsub.s32 %v4642, %v4648
  %v4650 = vrot.slane %v3472, %v4649
  %v4651 = vsel %vm337, %v4650, %v4646
  %v4653 = vadd.s32 %v54, 4294967248
  %v4654 = vlaneseq
  %v4655 = vshrl.u32 %v4654, 7
  %v4656 = vsub.s32 %v4653, %v4655
  %v4657 = vrot.slane %v4036, %v4656
  %v4658 = vlaneseq
  %v4659 = vshrl.u32 %v4658, 7
  %v4660 = vsub.s32 %v4653, %v4659
  %v4661 = vrot.slane %v4039, %v4660
  %v4662 = vsel %vm337, %v4661, %v4657
  %4666 = vset.pattern.permute.xlu0 0
  %4667 = vperm.xlu0 %4666, %v4597
  %v4668 = vpop.permute.xlu0 %4667
  %4669 = vset.pattern.permute.xlu0 0
  %4670 = vperm.xlu0 %4669, %v4598
  %v4671 = vpop.permute.xlu0 %4670
  %v4672 = vadd.s32 %v54, 4294967240
  %v4673 = vlaneseq
  %v4674 = vshrl.u32 %v4673, 7
  %v4675 = vsub.s32 %v4672, %v4674
  %v4676 = vrot.slane %v4668, %v4675
  %v4677 = vlaneseq
  %v4678 = vshrl.u32 %v4677, 7
  %v4679 = vsub.s32 %v4672, %v4678
  %v4680 = vrot.slane %v4671, %v4679
  %v4681 = vsel %vm337, %v4680, %v4676
  %vm4683 = vcmask 64512
  %v4684 = vsel %vm4683, %v642, %v4607
  %vm4685 = vcmask 130048
  %v4686 = vsel %vm4685, %v4684, %v4618
  %vm4687 = vcmask 195584
  %v4688 = vsel %vm4687, %v4686, %v4629
  %v4689 = vsel %vm59, %v4688, %v4640
  %vm4690 = vcmask 326656
  %v4691 = vsel %vm4690, %v4689, %v4651
  %vm4692 = vcmask 392192
  %v4693 = vsel %vm4692, %v4691, %v4662
  %vm4694 = vcmask 457728
  %v4695 = vsel %vm4694, %v4693, %v4681
  %vm4696 = vcmask 517120
  %4697 = vst.msk [vmem:[%s6] sm:$0x3] %vm4696, %v4695
  // Predicated region
  $region26: #{pointer_decoder_forward.1} parent=0 // pred_check
    _
  $region27: #{pointer_decoder_forward.1} parent=0 // pred_check_branch
    %4699 = sbr.rel (0) target = $region29
  $region28: #{pointer_decoder_forward.1} parent=0 // pred_region
    _
  $region29: #{pointer_decoder_forward.1} parent=0 // pred_fallthru
    _
  // Predicated region
  $region30: #{pointer_decoder_forward.1} parent=0 // pred_check
    _
  $region31: #{pointer_decoder_forward.1} parent=0 // pred_check_branch
    %4701 = sbr.rel (0) target = $region33
  $region32: #{pointer_decoder_forward.1} parent=0 // pred_region
    _
  $region33: #{pointer_decoder_forward.1} parent=0 // pred_fallthru
    _

</llo_original>
